<compile_context>
chip_gen: v7x
topology: tpu7x:2x2x1
jax: 0.10.0
libtpu: 0.0.40
codegen_flags: <defaults>
</compile_context>

<pallas_src>
import functools

import jax
import jax.numpy as jnp
from jax.experimental import pallas as pl
from jax.experimental.pallas import tpu as pltpu

LEAKY_SLOPE = 0.01
BN_EPS = 1e-5
HIDDEN = 512


def _leaky_relu(x):
    return jnp.where(x > 0, x, LEAKY_SLOPE * x)


def _round_up(x, m):
    return ((x + m - 1) // m) * m


def decoder_forward(x, params, input_channel, input_height, input_width):
    """x: (B, latent_dim) float32 -> (B, C, H, H) float32 (module forces W=H)."""
    del input_width  # the PyTorch module sets input_width = input_height
    w1, b1, w2, b2, gamma, beta, w3, b3 = params
    B, latent_dim = x.shape
    H = HIDDEN
    out_feats = w3.shape[1]

    f32, bf16 = jnp.float32, jnp.bfloat16

    # ---- tiling / padding choices ------------------------------------------
    k_pad = _round_up(latent_dim, 128)        # lane-friendly contraction dim
    out_pad = _round_up(out_feats, 256)       # lane-dense output columns
    tn = 512 if out_pad % 512 == 0 else 256   # 256-multiple N tiles (MXU-friendly)
    num_n = out_pad // tn

    # ---- pad + cast MXU operands to bf16 -------------------------------------
    w1_p = jnp.pad(w1, ((0, k_pad - latent_dim), (0, 0))).astype(bf16)
    w2_b = w2.astype(bf16)
    w3_p = jnp.pad(w3, ((0, 0), (0, out_pad - out_feats))).astype(bf16)
    b1_r = b1.reshape(1, H).astype(f32)
    b2_r = b2.reshape(1, H).astype(f32)
    g_r = gamma.reshape(1, H).astype(f32)
    be_r = beta.reshape(1, H).astype(f32)
    b3_r = jnp.pad(b3.reshape(1, out_feats),
                   ((0, 0), (0, out_pad - out_feats))).astype(f32)

    inv_b = 1.0 / float(B)

    # =========================================================================
    # Path A: small/medium batch -> single fused kernel, h2 never leaves VMEM.
    # =========================================================================
    if B <= 2048:
        b_pad = _round_up(B, 16)              # bf16 sublane-friendly batch pad
        x_p = jnp.pad(x, ((0, b_pad - B), (0, k_pad - latent_dim))).astype(bf16)

        def fused_kernel(x_ref, w1_ref, b1_ref, w2_ref, b2_ref, g_ref, be_ref,
                         w3_ref, b3_ref, o_ref, h_vmem):
            # Phase 0 (first grid step): Linear1 + LeakyReLU + Linear2 + BN +
            # LeakyReLU for the whole (padded) batch, parked in VMEM as bf16.
            @pl.when(pl.program_id(0) == 0)
            def _():
                h = jnp.dot(x_ref[...], w1_ref[...],
                            preferred_element_type=jnp.float32) + b1_ref[...]
                h = _leaky_relu(h)
                h2 = jnp.dot(h.astype(jnp.bfloat16), w2_ref[...],
                             preferred_element_type=jnp.float32) + b2_ref[...]
                if b_pad != B:  # mask padded batch rows out of the statistics
                    row = jax.lax.broadcasted_iota(jnp.int32, h2.shape, 0)
                    h2s = jnp.where(row < B, h2, 0.0)
                else:
                    h2s = h2
                mean = jnp.sum(h2s, axis=0, keepdims=True) * inv_b
                var = jnp.maximum(
                    jnp.sum(h2s * h2s, axis=0, keepdims=True) * inv_b
                    - mean * mean, 0.0)
                scale = g_ref[...] * jax.lax.rsqrt(var + BN_EPS)
                shift = be_ref[...] - mean * scale
                h_vmem[...] = _leaky_relu(h2 * scale + shift).astype(jnp.bfloat16)

            # Every step: one 512-wide column tile of Linear3.
            out = jnp.dot(h_vmem[...], w3_ref[...],
                          preferred_element_type=jnp.float32) + b3_ref[...]
            o_ref[...] = out.astype(o_ref.dtype)

        cost = pl.CostEstimate(
            flops=2 * b_pad * (k_pad * H + H * H + H * out_pad),
            transcendentals=H,
            bytes_accessed=(x_p.size + w1_p.size + w2_b.size + w3_p.size) * 2
            + (4 * H + out_pad) * 4 + b_pad * out_pad * 4,
        )

        out_flat = pl.pallas_call(
            fused_kernel,
            out_shape=jax.ShapeDtypeStruct((b_pad, out_pad), f32),
            grid=(num_n,),
            in_specs=[
                pl.BlockSpec((b_pad, k_pad), lambda j: (0, 0)),
                pl.BlockSpec((k_pad, H), lambda j: (0, 0)),
                pl.BlockSpec((1, H), lambda j: (0, 0)),
                pl.BlockSpec((H, H), lambda j: (0, 0)),
                pl.BlockSpec((1, H), lambda j: (0, 0)),
                pl.BlockSpec((1, H), lambda j: (0, 0)),
                pl.BlockSpec((1, H), lambda j: (0, 0)),
                pl.BlockSpec((H, tn), lambda j: (0, j)),
                pl.BlockSpec((1, tn), lambda j: (0, j)),
            ],
            out_specs=pl.BlockSpec((b_pad, tn), lambda j: (0, j)),
            scratch_shapes=[pltpu.VMEM((b_pad, H), bf16)],
            compiler_params=pltpu.CompilerParams(
                dimension_semantics=("arbitrary",),   # step 0 must run first
                vmem_limit_bytes=32 << 20,
            ),
            cost_estimate=cost,
        )(x_p, w1_p, b1_r, w2_b, b2_r, g_r, be_r, w3_p, b3_r)

        return out_flat[:B, :out_feats].reshape(
            B, input_channel, input_height, input_height)

    # =========================================================================
    # Path B: large batch -> two passes with a bf16 h2 intermediate in HBM.
    # =========================================================================
    tm = 512
    b_pad = _round_up(B, tm)
    num_m = b_pad // tm
    x_p = jnp.pad(x, ((0, b_pad - B), (0, k_pad - latent_dim))).astype(bf16)

    # ---- Pass 1: h2 = Linear2(LeakyReLU(Linear1(x))) + per-tile sum / sumsq ----
    def pass1_kernel(x_ref, w1_ref, b1_ref, w2_ref, b2_ref,
                     h2_ref, sum_ref, sq_ref):
        i = pl.program_id(0)
        h = jnp.dot(x_ref[...], w1_ref[...],
                    preferred_element_type=jnp.float32) + b1_ref[...]
        h = _leaky_relu(h)
        h2 = jnp.dot(h.astype(jnp.bfloat16), w2_ref[...],
                     preferred_element_type=jnp.float32) + b2_ref[...]
        h2_ref[...] = h2.astype(h2_ref.dtype)   # bf16 intermediate (halves HBM)

        if b_pad != B:
            # Only the last batch tile contains padded rows -> gate the mask.
            @pl.when(i < num_m - 1)
            def _():
                sum_ref[...] = jnp.sum(h2, axis=0, keepdims=True)[None]
                sq_ref[...] = jnp.sum(h2 * h2, axis=0, keepdims=True)[None]

            @pl.when(i == num_m - 1)
            def _():
                row = i * tm + jax.lax.broadcasted_iota(jnp.int32, h2.shape, 0)
                h2m = jnp.where(row < B, h2, 0.0)
                sum_ref[...] = jnp.sum(h2m, axis=0, keepdims=True)[None]
                sq_ref[...] = jnp.sum(h2m * h2m, axis=0, keepdims=True)[None]
        else:
            sum_ref[...] = jnp.sum(h2, axis=0, keepdims=True)[None]
            sq_ref[...] = jnp.sum(h2 * h2, axis=0, keepdims=True)[None]

    cost1 = pl.CostEstimate(
        flops=2 * b_pad * (k_pad * H + H * H),
        transcendentals=0,
        bytes_accessed=(x_p.size + w1_p.size + w2_b.size + b_pad * H) * 2
        + (2 * H + 2 * num_m * H) * 4,
    )

    h2, sums, sqs = pl.pallas_call(
        pass1_kernel,
        out_shape=(
            jax.ShapeDtypeStruct((b_pad, H), bf16),
            jax.ShapeDtypeStruct((num_m, 1, H), f32),
            jax.ShapeDtypeStruct((num_m, 1, H), f32),
        ),
        grid=(num_m,),
        in_specs=[
            pl.BlockSpec((tm, k_pad), lambda i: (i, 0)),
            pl.BlockSpec((k_pad, H), lambda i: (0, 0)),
            pl.BlockSpec((1, H), lambda i: (0, 0)),
            pl.BlockSpec((H, H), lambda i: (0, 0)),
            pl.BlockSpec((1, H), lambda i: (0, 0)),
        ],
        out_specs=(
            pl.BlockSpec((tm, H), lambda i: (i, 0)),
            pl.BlockSpec((1, 1, H), lambda i: (i, 0, 0)),
            pl.BlockSpec((1, 1, H), lambda i: (i, 0, 0)),
        ),
        compiler_params=pltpu.CompilerParams(
            dimension_semantics=("parallel",),   # no resident accumulator
            vmem_limit_bytes=32 << 20,
        ),
        cost_estimate=cost1,
    )(x_p, w1_p, b1_r, w2_b, b2_r)

    # ---- BN finalize hoisted out of the grid (tiny (1,512) JAX ops) ----------
    mean = jnp.sum(sums, axis=0) * inv_b                       # (1, H)
    var = jnp.maximum(jnp.sum(sqs, axis=0) * inv_b - mean * mean, 0.0)
    scale = g_r * jax.lax.rsqrt(var + BN_EPS)
    shift = be_r - mean * scale

    # ---- Pass 2: BN affine + LeakyReLU + Linear3 ------------------------------
    def pass2_kernel(h2_ref, sc_ref, sh_ref, w3_ref, b3_ref, o_ref):
        h = _leaky_relu(h2_ref[...].astype(jnp.float32) * sc_ref[...] + sh_ref[...])
        out = jnp.dot(h.astype(jnp.bfloat16), w3_ref[...],
                      preferred_element_type=jnp.float32) + b3_ref[...]
        o_ref[...] = out.astype(o_ref.dtype)

    # Grid order: keep the *larger* streamed operand invariant on the inner axis
    # so it is fetched only once.
    w3_bytes = H * out_pad * 2
    h2_bytes = b_pad * H * 2
    if w3_bytes >= h2_bytes:
        grid2 = (num_n, num_m)
        h2_spec = pl.BlockSpec((tm, H), lambda n, m: (m, 0))
        vec_spec = pl.BlockSpec((1, H), lambda n, m: (0, 0))
        w3_spec = pl.BlockSpec((H, tn), lambda n, m: (0, n))
        b3_spec = pl.BlockSpec((1, tn), lambda n, m: (0, n))
        o_spec = pl.BlockSpec((tm, tn), lambda n, m: (m, n))
    else:
        grid2 = (num_m, num_n)
        h2_spec = pl.BlockSpec((tm, H), lambda m, n: (m, 0))
        vec_spec = pl.BlockSpec((1, H), lambda m, n: (0, 0))
        w3_spec = pl.BlockSpec((H, tn), lambda m, n: (0, n))
        b3_spec = pl.BlockSpec((1, tn), lambda m, n: (0, n))
        o_spec = pl.BlockSpec((tm, tn), lambda m, n: (m, n))

    cost2 = pl.CostEstimate(
        flops=2 * b_pad * H * out_pad,
        transcendentals=0,
        bytes_accessed=(w3_p.size + b_pad * H) * 2
        + (b_pad * out_pad + 2 * H + out_pad) * 4,
    )

    out_flat = pl.pallas_call(
        pass2_kernel,
        out_shape=jax.ShapeDtypeStruct((b_pad, out_pad), f32),
        grid=grid2,
        in_specs=[h2_spec, vec_spec, vec_spec, w3_spec, b3_spec],
        out_specs=o_spec,
        compiler_params=pltpu.CompilerParams(
            dimension_semantics=("parallel", "parallel"),
            vmem_limit_bytes=32 << 20,
        ),
        cost_estimate=cost2,
    )(h2, scale, shift, w3_p, b3_r)

    return out_flat[:B, :out_feats].reshape(
        B, input_channel, input_height, input_height)


def make_params(key, latent_dim, hidden, out_feats):
    """Deterministic synthetic parameters (not a checkpoint load)."""
    ks = jax.random.split(key, 6)
    scale = 0.05
    w1 = scale * jax.random.normal(ks[0], (latent_dim, hidden), jnp.float32)
    b1 = scale * jax.random.normal(ks[1], (1, hidden), jnp.float32)
    w2 = scale * jax.random.normal(ks[2], (hidden, hidden), jnp.float32)
    b2 = scale * jax.random.normal(ks[3], (1, hidden), jnp.float32)
    gamma = jnp.ones((1, hidden), jnp.float32)      # BatchNorm1d weight init
    beta = jnp.zeros((1, hidden), jnp.float32)      # BatchNorm1d bias init
    w3 = scale * jax.random.normal(ks[4], (hidden, out_feats), jnp.float32)
    b3 = scale * jax.random.normal(ks[5], (1, out_feats), jnp.float32)
    return (w1, b1, w2, b2, gamma, beta, w3, b3)


def decoder_ref(x, params):
    """Pure-JAX reference mirroring the kernel's precision (bf16 MXU operands,
    f32 accumulation, f32 BatchNorm statistics/affine), matching the PyTorch
    training-mode forward up to bf16 quantization."""
    w1, b1, w2, b2, gamma, beta, w3, b3 = params
    bf16 = jnp.bfloat16

    def mm(a, w):
        return jnp.dot(a.astype(bf16), w.astype(bf16),
                       preferred_element_type=jnp.float32)

    h = _leaky_relu(mm(x, w1) + b1)
    h = mm(h, w2) + b2
    mean = jnp.mean(h, axis=0, keepdims=True)
    var = jnp.maximum(jnp.mean(h * h, axis=0, keepdims=True) - mean * mean, 0.0)
    h = (h - mean) * jax.lax.rsqrt(var + BN_EPS) * gamma + beta
    h = _leaky_relu(h)
    return mm(h, w3) + b3


if __name__ == "__main__":
    # Small, module-consistent shapes.
    B = 2
    input_height = 16
    input_width = 16          # module forces width = height anyway
    input_channel = 4
    latent_dim = 15
    out_feats = input_height * input_height * input_channel  # width := height

    key = jax.random.PRNGKey(0)
    kx, kp = jax.random.split(key)
    x = jax.random.normal(kx, (B, latent_dim), jnp.float32)
    params = make_params(kp, latent_dim, HIDDEN, out_feats)

    fwd = jax.jit(functools.partial(
        decoder_forward,
        input_channel=input_channel,
        input_height=input_height,
        input_width=input_width))

    out = fwd(x, params)
    out = jax.block_until_ready(out)

    assert out.shape == (B, input_channel, input_height, input_height)

    ref = decoder_ref(x, params).reshape(B, input_channel, input_height, input_height)
    # Tolerance covers bf16-MXU accumulation-order differences vs. the XLA reference.
    max_err = float(jnp.max(jnp.abs(out - ref)))
    assert jnp.allclose(out, ref, atol=5e-3, rtol=5e-3), f"max abs err {max_err}"

    print("KERNEL_OK")
</pallas_src>

<mosaic_0001>
module attributes {stable_mosaic.version = 11 : i64} {
  func.func @fused_kernel(%arg0: i32, %arg1: memref<16x128xbf16, #tpu.memory_space<vmem>>, %arg2: memref<128x512xbf16, #tpu.memory_space<vmem>>, %arg3: memref<1x512xf32, #tpu.memory_space<vmem>>, %arg4: memref<512x512xbf16, #tpu.memory_space<vmem>>, %arg5: memref<1x512xf32, #tpu.memory_space<vmem>>, %arg6: memref<1x512xf32, #tpu.memory_space<vmem>>, %arg7: memref<1x512xf32, #tpu.memory_space<vmem>>, %arg8: memref<512x512xbf16, #tpu.memory_space<vmem>>, %arg9: memref<1x512xf32, #tpu.memory_space<vmem>>, %arg10: memref<16x512xf32, #tpu.memory_space<vmem>>, %arg11: memref<16x512xbf16, #tpu.memory_space<vmem>>) attributes {dimension_semantics = [#tpu.dimension_semantics<arbitrary>], iteration_bounds = array<i64: 2>, scalar_prefetch = 0 : i64, scratch_operands = 1 : i64, tpu.core_type = #tpu.core_type<tc>, window_params = [{pipeline_mode = #tpu.pipeline_mode<synchronous>, transform_indices = @transform_0, window_bounds = array<i64: 16, 128>}, {pipeline_mode = #tpu.pipeline_mode<synchronous>, transform_indices = @transform_1, window_bounds = array<i64: 128, 512>}, {pipeline_mode = #tpu.pipeline_mode<synchronous>, transform_indices = @transform_2, window_bounds = array<i64: 1, 512>}, {pipeline_mode = #tpu.pipeline_mode<synchronous>, transform_indices = @transform_3, window_bounds = array<i64: 512, 512>}, {pipeline_mode = #tpu.pipeline_mode<synchronous>, transform_indices = @transform_4, window_bounds = array<i64: 1, 512>}, {pipeline_mode = #tpu.pipeline_mode<synchronous>, transform_indices = @transform_5, window_bounds = array<i64: 1, 512>}, {pipeline_mode = #tpu.pipeline_mode<synchronous>, transform_indices = @transform_6, window_bounds = array<i64: 1, 512>}, {transform_indices = @transform_7, window_bounds = array<i64: 512, 512>}, {transform_indices = @transform_8, window_bounds = array<i64: 1, 512>}, {transform_indices = @transform_9, window_bounds = array<i64: 16, 512>}]} {
    %c0_i32 = arith.constant 0 : i32
    %0 = arith.cmpi eq, %arg0, %c0_i32 : i32
    %1 = arith.extui %0 : i1 to i32
    %c0_i32_0 = arith.constant 0 : i32
    %2 = arith.cmpi ne, %1, %c0_i32_0 : i32
    scf.if %2 {
      %c0_8 = arith.constant 0 : index
      %c0_9 = arith.constant 0 : index
      %10 = vector.load %arg1[%c0_8, %c0_9] : memref<16x128xbf16, #tpu.memory_space<vmem>>, vector<16x128xbf16>
      %c0_10 = arith.constant 0 : index
      %c0_11 = arith.constant 0 : index
      %11 = vector.load %arg2[%c0_10, %c0_11] : memref<128x512xbf16, #tpu.memory_space<vmem>>, vector<128x512xbf16>
      %cst_12 = arith.constant dense<0.000000e+00> : vector<16x512xf32>
      %12 = tpu.matmul %10, %11, %cst_12 {dimension_numbers = #tpu.dot_dimension_numbers<[1], [0], [0], [1], [0, 0, 1, 1], [], []>} : vector<16x128xbf16>, vector<128x512xbf16>, vector<16x512xf32> -> vector<16x512xf32>
      %c0_13 = arith.constant 0 : index
      %c0_14 = arith.constant 0 : index
      %13 = vector.load %arg3[%c0_13, %c0_14] : memref<1x512xf32, #tpu.memory_space<vmem>>, vector<1x512xf32>
      %14 = vector.broadcast %13 : vector<1x512xf32> to vector<16x512xf32>
      %15 = arith.addf %12, %14 : vector<16x512xf32>
      %cst_15 = arith.constant 0.000000e+00 : f32
      %16 = vector.broadcast %cst_15 : f32 to vector<16x512xf32>
      %17 = arith.cmpf ogt, %15, %16 : vector<16x512xf32>
      %cst_16 = arith.constant 0.00999999977 : f32
      %18 = vector.broadcast %cst_16 : f32 to vector<16x512xf32>
      %19 = arith.mulf %18, %15 : vector<16x512xf32>
      %20 = arith.select %17, %15, %19 : vector<16x512xi1>, vector<16x512xf32>
      %21 = arith.truncf %20 : vector<16x512xf32> to vector<16x512xbf16>
      %c0_17 = arith.constant 0 : index
      %c0_18 = arith.constant 0 : index
      %22 = vector.load %arg4[%c0_17, %c0_18] : memref<512x512xbf16, #tpu.memory_space<vmem>>, vector<512x512xbf16>
      %cst_19 = arith.constant dense<0.000000e+00> : vector<16x512xf32>
      %23 = tpu.matmul %21, %22, %cst_19 {dimension_numbers = #tpu.dot_dimension_numbers<[1], [0], [0], [1], [0, 0, 1, 1], [], []>} : vector<16x512xbf16>, vector<512x512xbf16>, vector<16x512xf32> -> vector<16x512xf32>
      %c0_20 = arith.constant 0 : index
      %c0_21 = arith.constant 0 : index
      %24 = vector.load %arg5[%c0_20, %c0_21] : memref<1x512xf32, #tpu.memory_space<vmem>>, vector<1x512xf32>
      %25 = vector.broadcast %24 : vector<1x512xf32> to vector<16x512xf32>
      %26 = arith.addf %23, %25 : vector<16x512xf32>
      %27 = tpu.iota {dimensions = array<i32: 0>} : vector<16x512xi32>
      %c2_i32 = arith.constant 2 : i32
      %28 = vector.broadcast %c2_i32 : i32 to vector<16x512xi32>
      %29 = arith.cmpi slt, %27, %28 : vector<16x512xi32>
      %cst_22 = arith.constant 0.000000e+00 : f32
      %30 = vector.broadcast %cst_22 : f32 to vector<16x512xf32>
      %31 = arith.select %29, %26, %30 : vector<16x512xi1>, vector<16x512xf32>
      %cst_23 = arith.constant dense<0.000000e+00> : vector<512xf32>
      %32 = vector.multi_reduction <add>, %31, %cst_23 [0] : vector<16x512xf32> to vector<512xf32>
      %33 = vector.shape_cast %32 : vector<512xf32> to vector<1x512xf32>
      %cst_24 = arith.constant 5.000000e-01 : f32
      %34 = vector.broadcast %cst_24 : f32 to vector<1x512xf32>
      %35 = arith.mulf %33, %34 : vector<1x512xf32>
      %36 = arith.mulf %31, %31 : vector<16x512xf32>
      %cst_25 = arith.constant dense<0.000000e+00> : vector<512xf32>
      %37 = vector.multi_reduction <add>, %36, %cst_25 [0] : vector<16x512xf32> to vector<512xf32>
      %38 = vector.shape_cast %37 : vector<512xf32> to vector<1x512xf32>
      %cst_26 = arith.constant 5.000000e-01 : f32
      %39 = vector.broadcast %cst_26 : f32 to vector<1x512xf32>
      %40 = arith.mulf %38, %39 : vector<1x512xf32>
      %41 = arith.mulf %35, %35 : vector<1x512xf32>
      %42 = arith.subf %40, %41 : vector<1x512xf32>
      %cst_27 = arith.constant 0.000000e+00 : f32
      %43 = vector.broadcast %cst_27 : f32 to vector<1x512xf32>
      %44 = arith.maximumf %42, %43 : vector<1x512xf32>
      %c0_28 = arith.constant 0 : index
      %c0_29 = arith.constant 0 : index
      %45 = vector.load %arg6[%c0_28, %c0_29] : memref<1x512xf32, #tpu.memory_space<vmem>>, vector<1x512xf32>
      %cst_30 = arith.constant 9.99999974E-6 : f32
      %46 = vector.broadcast %cst_30 : f32 to vector<1x512xf32>
      %47 = arith.addf %44, %46 : vector<1x512xf32>
      %48 = math.rsqrt %47 : vector<1x512xf32>
      %49 = arith.mulf %45, %48 : vector<1x512xf32>
      %c0_31 = arith.constant 0 : index
      %c0_32 = arith.constant 0 : index
      %50 = vector.load %arg7[%c0_31, %c0_32] : memref<1x512xf32, #tpu.memory_space<vmem>>, vector<1x512xf32>
      %51 = arith.mulf %35, %49 : vector<1x512xf32>
      %52 = arith.subf %50, %51 : vector<1x512xf32>
      %53 = vector.broadcast %49 : vector<1x512xf32> to vector<16x512xf32>
      %54 = arith.mulf %26, %53 : vector<16x512xf32>
      %55 = vector.broadcast %52 : vector<1x512xf32> to vector<16x512xf32>
      %56 = arith.addf %54, %55 : vector<16x512xf32>
      %cst_33 = arith.constant 0.000000e+00 : f32
      %57 = vector.broadcast %cst_33 : f32 to vector<16x512xf32>
      %58 = arith.cmpf ogt, %56, %57 : vector<16x512xf32>
      %cst_34 = arith.constant 0.00999999977 : f32
      %59 = vector.broadcast %cst_34 : f32 to vector<16x512xf32>
      %60 = arith.mulf %59, %56 : vector<16x512xf32>
      %61 = arith.select %58, %56, %60 : vector<16x512xi1>, vector<16x512xf32>
      %62 = arith.truncf %61 : vector<16x512xf32> to vector<16x512xbf16>
      %c0_35 = arith.constant 0 : index
      %c0_36 = arith.constant 0 : index
      %63 = vector.load %arg11[%c0_35, %c0_36] : memref<16x512xbf16, #tpu.memory_space<vmem>>, vector<16x512xbf16>
      tpu.vector_store %arg11[%c0_35, %c0_36], %62 {strides = array<i32>} : memref<16x512xbf16, #tpu.memory_space<vmem>>, vector<16x512xbf16>,
    } else {
    }
    %c0 = arith.constant 0 : index
    %c0_1 = arith.constant 0 : index
    %3 = vector.load %arg11[%c0, %c0_1] : memref<16x512xbf16, #tpu.memory_space<vmem>>, vector<16x512xbf16>
    %c0_2 = arith.constant 0 : index
    %c0_3 = arith.constant 0 : index
    %4 = vector.load %arg8[%c0_2, %c0_3] : memref<512x512xbf16, #tpu.memory_space<vmem>>, vector<512x512xbf16>
    %cst = arith.constant dense<0.000000e+00> : vector<16x512xf32>
    %5 = tpu.matmul %3, %4, %cst {dimension_numbers = #tpu.dot_dimension_numbers<[1], [0], [0], [1], [0, 0, 1, 1], [], []>} : vector<16x512xbf16>, vector<512x512xbf16>, vector<16x512xf32> -> vector<16x512xf32>
    %c0_4 = arith.constant 0 : index
    %c0_5 = arith.constant 0 : index
    %6 = vector.load %arg9[%c0_4, %c0_5] : memref<1x512xf32, #tpu.memory_space<vmem>>, vector<1x512xf32>
    %7 = vector.broadcast %6 : vector<1x512xf32> to vector<16x512xf32>
    %8 = arith.addf %5, %7 : vector<16x512xf32>
    %c0_6 = arith.constant 0 : index
    %c0_7 = arith.constant 0 : index
    %9 = vector.load %arg10[%c0_6, %c0_7] : memref<16x512xf32, #tpu.memory_space<vmem>>, vector<16x512xf32>
    tpu.vector_store %arg10[%c0_6, %c0_7], %8 {strides = array<i32>} : memref<16x512xf32, #tpu.memory_space<vmem>>, vector<16x512xf32>,
    return
  }
  func.func @transform_0(%arg0: i32) -> (i32, i32) {
    %c0_i32 = arith.constant 0 : i32
    %c0_i32_0 = arith.constant 0 : i32
    %c0_i32_1 = arith.constant 0 : i32
    return %c0_i32, %c0_i32_0 : i32, i32
  }
  func.func @transform_1(%arg0: i32) -> (i32, i32) {
    %c0_i32 = arith.constant 0 : i32
    %c0_i32_0 = arith.constant 0 : i32
    %c0_i32_1 = arith.constant 0 : i32
    return %c0_i32, %c0_i32_0 : i32, i32
  }
  func.func @transform_2(%arg0: i32) -> (i32, i32) {
    %c0_i32 = arith.constant 0 : i32
    %c0_i32_0 = arith.constant 0 : i32
    %c0_i32_1 = arith.constant 0 : i32
    return %c0_i32, %c0_i32_0 : i32, i32
  }
  func.func @transform_3(%arg0: i32) -> (i32, i32) {
    %c0_i32 = arith.constant 0 : i32
    %c0_i32_0 = arith.constant 0 : i32
    %c0_i32_1 = arith.constant 0 : i32
    return %c0_i32, %c0_i32_0 : i32, i32
  }
  func.func @transform_4(%arg0: i32) -> (i32, i32) {
    %c0_i32 = arith.constant 0 : i32
    %c0_i32_0 = arith.constant 0 : i32
    %c0_i32_1 = arith.constant 0 : i32
    return %c0_i32, %c0_i32_0 : i32, i32
  }
  func.func @transform_5(%arg0: i32) -> (i32, i32) {
    %c0_i32 = arith.constant 0 : i32
    %c0_i32_0 = arith.constant 0 : i32
    %c0_i32_1 = arith.constant 0 : i32
    return %c0_i32, %c0_i32_0 : i32, i32
  }
  func.func @transform_6(%arg0: i32) -> (i32, i32) {
    %c0_i32 = arith.constant 0 : i32
    %c0_i32_0 = arith.constant 0 : i32
    %c0_i32_1 = arith.constant 0 : i32
    return %c0_i32, %c0_i32_0 : i32, i32
  }
  func.func @transform_7(%arg0: i32) -> (i32, i32) {
    %c0_i32 = arith.constant 0 : i32
    %c0_i32_0 = arith.constant 0 : i32
    return %c0_i32, %arg0 : i32, i32
  }
  func.func @transform_8(%arg0: i32) -> (i32, i32) {
    %c0_i32 = arith.constant 0 : i32
    %c0_i32_0 = arith.constant 0 : i32
    return %c0_i32, %arg0 : i32, i32
  }
  func.func @transform_9(%arg0: i32) -> (i32, i32) {
    %c0_i32 = arith.constant 0 : i32
    %c0_i32_0 = arith.constant 0 : i32
    return %c0_i32, %arg0 : i32, i32
  }
}

</mosaic_0001>

<llo_original>
// kernel: decoder_forward.1
$region0: #{decoder_forward.1}
  #allocation0 [shape = 'u32[]', space=smem, size = 0x4, offset = 0x4, fixed_abs, tag = 'smem constant byte address 0x4 - core index']
  #allocation1 [shape = 'u32[144,128]{1,0:T(1,128)}', space=vmem, size = 0x12000, scoped, tag = 'internal scratch']
  #allocation2 [shape = 'bf16[16,512]{1,0:T(16,128)(2,1)}', space=vmem, size = 0x4000, scoped, tag = 'scratch operand']
  %s0 = inlined_call_operand.vmem [shape: bf16[16,128], index: 0, kind: input, shape index: {}]
  %s1 = inlined_call_operand.vmem [shape: bf16[128,512], index: 1, kind: input, shape index: {}]
  %s2 = inlined_call_operand.vmem [shape: f32[1,512], index: 2, kind: input, shape index: {}]
  %s3 = inlined_call_operand.vmem [shape: bf16[512,512], index: 3, kind: input, shape index: {}]
  %s4 = inlined_call_operand.vmem [shape: f32[1,512], index: 4, kind: input, shape index: {}]
  %s5 = inlined_call_operand.vmem [shape: f32[1,512], index: 5, kind: input, shape index: {}]
  %s6 = inlined_call_operand.vmem [shape: f32[1,512], index: 6, kind: input, shape index: {}]
  %s7 = inlined_call_operand.vmem [shape: bf16[512,1024], index: 7, kind: input, shape index: {}]
  %s8 = inlined_call_operand.vmem [shape: f32[1,1024], index: 8, kind: input, shape index: {}]
  %s9 = inlined_call_operand.vmem [shape: f32[16,1024], index: 9, kind: output, shape index: {}]
  %s10 = sld [smem:[#allocation0]]
  $region115: #{decoder_forward.1} parent=0
    _
  %s12 = ssub.s32 1, %s10
  %s13 = scalar_select 0, %s12, %s10
  $region1: #{decoder_forward.1} parent=0
    #allocation3 [shape = 'u8[1048576]{0}', space=vmem, size = 0x100000, scoped, tag = 'input window, operand 7']
    #allocation4 [shape = 'u8[65536]{0}', space=vmem, size = 0x10000, scoped, tag = 'output window, operand 0']
    loop: start=0, step=1, limit=4
    $region2: #{decoder_forward.1} parent=1 // loop_pre_header
      _
    $region3: #{decoder_forward.1} parent=1 // loop_header
      %s15 = sphi 0, %s19
      %p16 = scmp.ge.s32.totalorder %s15, 4
      %s23 = sphi 0, %s23
      %s25 = sphi 0, %s23
      %s26 = sphi 0, %s25
      %s40 = sphi 0, %s26
      %s44 = sphi 0, %s44
      %s46 = sphi 0, %s44
      %s47 = sphi 0, %s46
      %s61 = sphi 0, %s47
      %s65 = sphi 0, %s65
      %s67 = sphi 0, %s65
      %s68 = sphi 0, %s67
      %s82 = sphi 0, %s68
      %s86 = sphi 0, %s86
      %s88 = sphi 0, %s86
      %s89 = sphi 0, %s88
      %s103 = sphi 0, %s89
      %s107 = sphi 0, %s107
      %s109 = sphi 0, %s107
      %s110 = sphi 0, %s109
      %s124 = sphi 0, %s110
      %s128 = sphi 0, %s128
      %s130 = sphi 0, %s128
      %s131 = sphi 0, %s130
      %s145 = sphi 0, %s131
      %s149 = sphi 0, %s149
      %s151 = sphi 0, %s149
      %s152 = sphi 0, %s151
      %s166 = sphi 0, %s152
      %s172 = sphi 0, %s174
      %s175 = sphi 0, %s172
      %s176 = sphi 0, %s175
      %s192 = sphi 0, %s176
      %s198 = sphi 0, %s200
      %s201 = sphi 0, %s198
      %s202 = sphi 0, %s201
      %s218 = sphi 0, %s202
      %s224 = sphi 0, %s226
      %s227 = sphi 0, %s224
      %s228 = sphi 0, %s227
      %s244 = sphi 0, %s228
    $region4: #{decoder_forward.1} parent=1 // loop_header_branch
      %18 = sbr.rel (%p16) target = $region8
    $region5: #{decoder_forward.1} parent=1 // loop_body
      %s20 = ssub.s32 %s15, 1
      %s21 = ssub.s32 %s15, 2
      %s22 = sadd.s32 %s15, 1
      %s24 = sadd.s32 %s23, 1
      %p27 = scmp.eq.s32.totalorder %s15, 1
      %p28 = scmp.ne.s32.totalorder %s23, %s25
      %p29 = scmp.eq.s32.totalorder %s15, 0
      %p30 = por %p28, %p29
      %p31 = scmp.ne.s32.totalorder %s23, %s25
      %p32 = scmp.eq.s32.totalorder %s20, 1
      %p33 = por %p31, %p32
      %p34 = scmp.ne.s32.totalorder %s25, %s26
      %p35 = scmp.eq.s32.totalorder %s20, 0
      %p36 = por %p34, %p35
      %p37 = scmp.ne.s32.totalorder %s25, %s26
      %p38 = scmp.eq.s32.totalorder %s21, 1
      %p39 = por %p37, %p38
      %p41 = scmp.ne.s32.totalorder %s26, %s40
      %p42 = scmp.eq.s32.totalorder %s21, 0
      %p43 = por %p41, %p42
      %s45 = sadd.s32 %s44, 1
      %p48 = scmp.eq.s32.totalorder %s15, 1
      %p49 = scmp.ne.s32.totalorder %s44, %s46
      %p50 = scmp.eq.s32.totalorder %s15, 0
      %p51 = por %p49, %p50
      %p52 = scmp.ne.s32.totalorder %s44, %s46
      %p53 = scmp.eq.s32.totalorder %s20, 1
      %p54 = por %p52, %p53
      %p55 = scmp.ne.s32.totalorder %s46, %s47
      %p56 = scmp.eq.s32.totalorder %s20, 0
      %p57 = por %p55, %p56
      %p58 = scmp.ne.s32.totalorder %s46, %s47
      %p59 = scmp.eq.s32.totalorder %s21, 1
      %p60 = por %p58, %p59
      %p62 = scmp.ne.s32.totalorder %s47, %s61
      %p63 = scmp.eq.s32.totalorder %s21, 0
      %p64 = por %p62, %p63
      %s66 = sadd.s32 %s65, 1
      %p69 = scmp.eq.s32.totalorder %s15, 1
      %p70 = scmp.ne.s32.totalorder %s65, %s67
      %p71 = scmp.eq.s32.totalorder %s15, 0
      %p72 = por %p70, %p71
      %p73 = scmp.ne.s32.totalorder %s65, %s67
      %p74 = scmp.eq.s32.totalorder %s20, 1
      %p75 = por %p73, %p74
      %p76 = scmp.ne.s32.totalorder %s67, %s68
      %p77 = scmp.eq.s32.totalorder %s20, 0
      %p78 = por %p76, %p77
      %p79 = scmp.ne.s32.totalorder %s67, %s68
      %p80 = scmp.eq.s32.totalorder %s21, 1
      %p81 = por %p79, %p80
      %p83 = scmp.ne.s32.totalorder %s68, %s82
      %p84 = scmp.eq.s32.totalorder %s21, 0
      %p85 = por %p83, %p84
      %s87 = sadd.s32 %s86, 1
      %p90 = scmp.eq.s32.totalorder %s15, 1
      %p91 = scmp.ne.s32.totalorder %s86, %s88
      %p92 = scmp.eq.s32.totalorder %s15, 0
      %p93 = por %p91, %p92
      %p94 = scmp.ne.s32.totalorder %s86, %s88
      %p95 = scmp.eq.s32.totalorder %s20, 1
      %p96 = por %p94, %p95
      %p97 = scmp.ne.s32.totalorder %s88, %s89
      %p98 = scmp.eq.s32.totalorder %s20, 0
      %p99 = por %p97, %p98
      %p100 = scmp.ne.s32.totalorder %s88, %s89
      %p101 = scmp.eq.s32.totalorder %s21, 1
      %p102 = por %p100, %p101
      %p104 = scmp.ne.s32.totalorder %s89, %s103
      %p105 = scmp.eq.s32.totalorder %s21, 0
      %p106 = por %p104, %p105
      %s108 = sadd.s32 %s107, 1
      %p111 = scmp.eq.s32.totalorder %s15, 1
      %p112 = scmp.ne.s32.totalorder %s107, %s109
      %p113 = scmp.eq.s32.totalorder %s15, 0
      %p114 = por %p112, %p113
      %p115 = scmp.ne.s32.totalorder %s107, %s109
      %p116 = scmp.eq.s32.totalorder %s20, 1
      %p117 = por %p115, %p116
      %p118 = scmp.ne.s32.totalorder %s109, %s110
      %p119 = scmp.eq.s32.totalorder %s20, 0
      %p120 = por %p118, %p119
      %p121 = scmp.ne.s32.totalorder %s109, %s110
      %p122 = scmp.eq.s32.totalorder %s21, 1
      %p123 = por %p121, %p122
      %p125 = scmp.ne.s32.totalorder %s110, %s124
      %p126 = scmp.eq.s32.totalorder %s21, 0
      %p127 = por %p125, %p126
      %s129 = sadd.s32 %s128, 1
      %p132 = scmp.eq.s32.totalorder %s15, 1
      %p133 = scmp.ne.s32.totalorder %s128, %s130
      %p134 = scmp.eq.s32.totalorder %s15, 0
      %p135 = por %p133, %p134
      %p136 = scmp.ne.s32.totalorder %s128, %s130
      %p137 = scmp.eq.s32.totalorder %s20, 1
      %p138 = por %p136, %p137
      %p139 = scmp.ne.s32.totalorder %s130, %s131
      %p140 = scmp.eq.s32.totalorder %s20, 0
      %p141 = por %p139, %p140
      %p142 = scmp.ne.s32.totalorder %s130, %s131
      %p143 = scmp.eq.s32.totalorder %s21, 1
      %p144 = por %p142, %p143
      %p146 = scmp.ne.s32.totalorder %s131, %s145
      %p147 = scmp.eq.s32.totalorder %s21, 0
      %p148 = por %p146, %p147
      %s150 = sadd.s32 %s149, 1
      %p153 = scmp.eq.s32.totalorder %s15, 1
      %p154 = scmp.ne.s32.totalorder %s149, %s151
      %p155 = scmp.eq.s32.totalorder %s15, 0
      %p156 = por %p154, %p155
      %p157 = scmp.ne.s32.totalorder %s149, %s151
      %p158 = scmp.eq.s32.totalorder %s20, 1
      %p159 = por %p157, %p158
      %p160 = scmp.ne.s32.totalorder %s151, %s152
      %p161 = scmp.eq.s32.totalorder %s20, 0
      %p162 = por %p160, %p161
      %p163 = scmp.ne.s32.totalorder %s151, %s152
      %p164 = scmp.eq.s32.totalorder %s21, 1
      %p165 = por %p163, %p164
      %p167 = scmp.ne.s32.totalorder %s152, %s166
      %p168 = scmp.eq.s32.totalorder %s21, 0
      %p169 = por %p167, %p168
      %s170 = ssub.s32 %s15, %s22
      %p171 = scmp.eq.s32.totalorder %s170, 0
      %s173 = sadd.s32 %s172, 1
      %s174 = scalar_select %p171, %s172, %s173
      %p177 = pneg %p171
      %p178 = scmp.eq.s32.totalorder %s15, 1
      %p179 = por %p177, %p178
      %p180 = scmp.ne.s32.totalorder %s172, %s175
      %p181 = scmp.eq.s32.totalorder %s15, 0
      %p182 = por %p180, %p181
      %p183 = scmp.ne.s32.totalorder %s172, %s175
      %p184 = scmp.eq.s32.totalorder %s20, 1
      %p185 = por %p183, %p184
      %p186 = scmp.ne.s32.totalorder %s175, %s176
      %p187 = scmp.eq.s32.totalorder %s20, 0
      %p188 = por %p186, %p187
      %p189 = scmp.ne.s32.totalorder %s175, %s176
      %p190 = scmp.eq.s32.totalorder %s21, 1
      %p191 = por %p189, %p190
      %p193 = scmp.ne.s32.totalorder %s176, %s192
      %p194 = scmp.eq.s32.totalorder %s21, 0
      %p195 = por %p193, %p194
      %s196 = ssub.s32 %s15, %s22
      %p197 = scmp.eq.s32.totalorder %s196, 0
      %s199 = sadd.s32 %s198, 1
      %s200 = scalar_select %p197, %s198, %s199
      %p203 = pneg %p197
      %p204 = scmp.eq.s32.totalorder %s15, 1
      %p205 = por %p203, %p204
      %p206 = scmp.ne.s32.totalorder %s198, %s201
      %p207 = scmp.eq.s32.totalorder %s15, 0
      %p208 = por %p206, %p207
      %p209 = scmp.ne.s32.totalorder %s198, %s201
      %p210 = scmp.eq.s32.totalorder %s20, 1
      %p211 = por %p209, %p210
      %p212 = scmp.ne.s32.totalorder %s201, %s202
      %p213 = scmp.eq.s32.totalorder %s20, 0
      %p214 = por %p212, %p213
      %p215 = scmp.ne.s32.totalorder %s201, %s202
      %p216 = scmp.eq.s32.totalorder %s21, 1
      %p217 = por %p215, %p216
      %p219 = scmp.ne.s32.totalorder %s202, %s218
      %p220 = scmp.eq.s32.totalorder %s21, 0
      %p221 = por %p219, %p220
      %s222 = ssub.s32 %s15, %s22
      %p223 = scmp.eq.s32.totalorder %s222, 0
      %s225 = sadd.s32 %s224, 1
      %s226 = scalar_select %p223, %s224, %s225
      %p229 = pneg %p223
      %p230 = scmp.eq.s32.totalorder %s15, 1
      %p231 = por %p229, %p230
      %p232 = scmp.ne.s32.totalorder %s224, %s227
      %p233 = scmp.eq.s32.totalorder %s15, 0
      %p234 = por %p232, %p233
      %p235 = scmp.ne.s32.totalorder %s224, %s227
      %p236 = scmp.eq.s32.totalorder %s20, 1
      %p237 = por %p235, %p236
      %p238 = scmp.ne.s32.totalorder %s227, %s228
      %p239 = scmp.eq.s32.totalorder %s20, 0
      %p240 = por %p238, %p239
      %p241 = scmp.ne.s32.totalorder %s227, %s228
      %p242 = scmp.eq.s32.totalorder %s21, 1
      %p243 = por %p241, %p242
      %p245 = scmp.ne.s32.totalorder %s228, %s244
      %p246 = scmp.eq.s32.totalorder %s21, 0
      %p247 = por %p245, %p246
      %p248 = scmp.le.s32.totalorder 1, %s15
      %p249 = scmp.lt.s32.totalorder %s15, 3
      %p250 = pnand %p248, %p249
      %p251 = pneg %p250
      // Predicated region
      $region9: #{decoder_forward.1} parent=5 // pred_check
        _
      $region10: #{decoder_forward.1} parent=5 // pred_check_branch
        %253 = sbr.rel (%p250) target = $region12
      $region11: #{decoder_forward.1} parent=5 // pred_region
        %s254 = ssub.s32 %s15, 1
        // Predicated region
        $region13: #{decoder_forward.1} parent=11 // pred_check
          %p255 = pneg %p36
        $region14: #{decoder_forward.1} parent=11 // pred_check_branch
          %257 = sbr.rel (%p255) target = $region16
        $region15: #{decoder_forward.1} parent=11 // pred_region
          _
        $region16: #{decoder_forward.1} parent=11 // pred_fallthru
          _
        // Predicated region
        $region17: #{decoder_forward.1} parent=11 // pred_check
          %p258 = pneg %p57
        $region18: #{decoder_forward.1} parent=11 // pred_check_branch
          %260 = sbr.rel (%p258) target = $region20
        $region19: #{decoder_forward.1} parent=11 // pred_region
          _
        $region20: #{decoder_forward.1} parent=11 // pred_fallthru
          _
        // Predicated region
        $region21: #{decoder_forward.1} parent=11 // pred_check
          %p261 = pneg %p78
        $region22: #{decoder_forward.1} parent=11 // pred_check_branch
          %263 = sbr.rel (%p261) target = $region24
        $region23: #{decoder_forward.1} parent=11 // pred_region
          _
        $region24: #{decoder_forward.1} parent=11 // pred_fallthru
          _
        // Predicated region
        $region25: #{decoder_forward.1} parent=11 // pred_check
          %p264 = pneg %p99
        $region26: #{decoder_forward.1} parent=11 // pred_check_branch
          %266 = sbr.rel (%p264) target = $region28
        $region27: #{decoder_forward.1} parent=11 // pred_region
          _
        $region28: #{decoder_forward.1} parent=11 // pred_fallthru
          _
        // Predicated region
        $region29: #{decoder_forward.1} parent=11 // pred_check
          %p267 = pneg %p120
        $region30: #{decoder_forward.1} parent=11 // pred_check_branch
          %269 = sbr.rel (%p267) target = $region32
        $region31: #{decoder_forward.1} parent=11 // pred_region
          _
        $region32: #{decoder_forward.1} parent=11 // pred_fallthru
          _
        // Predicated region
        $region33: #{decoder_forward.1} parent=11 // pred_check
          %p270 = pneg %p141
        $region34: #{decoder_forward.1} parent=11 // pred_check_branch
          %272 = sbr.rel (%p270) target = $region36
        $region35: #{decoder_forward.1} parent=11 // pred_region
          _
        $region36: #{decoder_forward.1} parent=11 // pred_fallthru
          _
        // Predicated region
        $region37: #{decoder_forward.1} parent=11 // pred_check
          %p273 = pneg %p162
        $region38: #{decoder_forward.1} parent=11 // pred_check_branch
          %275 = sbr.rel (%p273) target = $region40
        $region39: #{decoder_forward.1} parent=11 // pred_region
          _
        $region40: #{decoder_forward.1} parent=11 // pred_fallthru
          _
      $region12: #{decoder_forward.1} parent=5 // pred_fallthru
        _
      %p276 = scmp.lt.s32.totalorder %s15, 2
      // Predicated region
      $region41: #{decoder_forward.1} parent=5 // pred_check
        %p277 = pneg %p276
      $region42: #{decoder_forward.1} parent=5 // pred_check_branch
        %279 = sbr.rel (%p277) target = $region44
      $region43: #{decoder_forward.1} parent=5 // pred_region
        // Predicated region
        $region45: #{decoder_forward.1} parent=43 // pred_check
          %p280 = pneg %p182
        $region46: #{decoder_forward.1} parent=43 // pred_check_branch
          %282 = sbr.rel (%p280) target = $region48
        $region47: #{decoder_forward.1} parent=43 // pred_region
          %s283 = sand.u32 %s172, 1
          %s284 = sand.u32 %s172, 1
          %s285 = smul.addr %s284, 1024
          %s286 = scalar_lea.vmem [#allocation3], %s285
          %s287 = smul.u32 4, %s15
          %s288 = smul.addr %s287, 4
          %s289 = scalar_lea.vmem %s7, %s288
          // Predicated region
          $region49: #{decoder_forward.1} parent=47 // pred_check
            _
          $region50: #{decoder_forward.1} parent=47 // pred_check_branch
            %291 = sbr.rel (0) target = $region52
          $region51: #{decoder_forward.1} parent=47 // pred_region
            // Predicated region
            $region53: #{decoder_forward.1} parent=51 // pred_check
              _
            $region54: #{decoder_forward.1} parent=51 // pred_check_branch
              %293 = sbr.rel (0) target = $region56
            $region55: #{decoder_forward.1} parent=51 // pred_region
              loop: start=0, step=1, limit=1
              $region57: #{decoder_forward.1} parent=55 // loop_pre_header
                _
              $region58: #{decoder_forward.1} parent=55 // loop_header
                %s295 = sphi 0, %s299
                %p296 = scmp.ge.s32.totalorder %s295, 1
                %s300 = sphi %s289, %s289
                %s301 = sphi %s286, %s286
              $region59: #{decoder_forward.1} parent=55 // loop_header_branch
                %298 = sbr.rel (%p296) target = $region63
              $region60: #{decoder_forward.1} parent=55 // loop_body
                %v302 = vld [vmem:[%s300] sm:$0xff]
                %303 = vst [vmem:[%s301] sm:$0xff] %v302
                %v304 = vld [vmem:[%s300 + $0x8] sm:$0xff]
                %305 = vst [vmem:[%s301 + $0x8] sm:$0xff] %v304
                %v306 = vld [vmem:[%s300 + $0x20] sm:$0xff]
                %307 = vst [vmem:[%s301 + $0x10] sm:$0xff] %v306
                %v308 = vld [vmem:[%s300 + $0x28] sm:$0xff]
                %309 = vst [vmem:[%s301 + $0x18] sm:$0xff] %v308
                %v310 = vld [vmem:[%s300 + $0x40] sm:$0xff]
                %311 = vst [vmem:[%s301 + $0x20] sm:$0xff] %v310
                %v312 = vld [vmem:[%s300 + $0x48] sm:$0xff]
                %313 = vst [vmem:[%s301 + $0x28] sm:$0xff] %v312
                %v314 = vld [vmem:[%s300 + $0x60] sm:$0xff]
                %315 = vst [vmem:[%s301 + $0x30] sm:$0xff] %v314
                %v316 = vld [vmem:[%s300 + $0x68] sm:$0xff]
                %317 = vst [vmem:[%s301 + $0x38] sm:$0xff] %v316
                %v318 = vld [vmem:[%s300 + $0x80] sm:$0xff]
                %319 = vst [vmem:[%s301 + $0x40] sm:$0xff] %v318
                %v320 = vld [vmem:[%s300 + $0x88] sm:$0xff]
                %321 = vst [vmem:[%s301 + $0x48] sm:$0xff] %v320
                %v322 = vld [vmem:[%s300 + $0xa0] sm:$0xff]
                %323 = vst [vmem:[%s301 + $0x50] sm:$0xff] %v322
                %v324 = vld [vmem:[%s300 + $0xa8] sm:$0xff]
                %325 = vst [vmem:[%s301 + $0x58] sm:$0xff] %v324
                %v326 = vld [vmem:[%s300 + $0xc0] sm:$0xff]
                %327 = vst [vmem:[%s301 + $0x60] sm:$0xff] %v326
                %v328 = vld [vmem:[%s300 + $0xc8] sm:$0xff]
                %329 = vst [vmem:[%s301 + $0x68] sm:$0xff] %v328
                %v330 = vld [vmem:[%s300 + $0xe0] sm:$0xff]
                %331 = vst [vmem:[%s301 + $0x70] sm:$0xff] %v330
                %v332 = vld [vmem:[%s300 + $0xe8] sm:$0xff]
                %333 = vst [vmem:[%s301 + $0x78] sm:$0xff] %v332
                %v334 = vld [vmem:[%s300 + $0x100] sm:$0xff]
                %335 = vst [vmem:[%s301 + $0x80] sm:$0xff] %v334
                %v336 = vld [vmem:[%s300 + $0x108] sm:$0xff]
                %337 = vst [vmem:[%s301 + $0x88] sm:$0xff] %v336
                %v338 = vld [vmem:[%s300 + $0x120] sm:$0xff]
                %339 = vst [vmem:[%s301 + $0x90] sm:$0xff] %v338
                %v340 = vld [vmem:[%s300 + $0x128] sm:$0xff]
                %341 = vst [vmem:[%s301 + $0x98] sm:$0xff] %v340
                %v342 = vld [vmem:[%s300 + $0x140] sm:$0xff]
                %343 = vst [vmem:[%s301 + $0xa0] sm:$0xff] %v342
                %v344 = vld [vmem:[%s300 + $0x148] sm:$0xff]
                %345 = vst [vmem:[%s301 + $0xa8] sm:$0xff] %v344
                %v346 = vld [vmem:[%s300 + $0x160] sm:$0xff]
                %347 = vst [vmem:[%s301 + $0xb0] sm:$0xff] %v346
                %v348 = vld [vmem:[%s300 + $0x168] sm:$0xff]
                %349 = vst [vmem:[%s301 + $0xb8] sm:$0xff] %v348
                %v350 = vld [vmem:[%s300 + $0x180] sm:$0xff]
                %351 = vst [vmem:[%s301 + $0xc0] sm:$0xff] %v350
                %v352 = vld [vmem:[%s300 + $0x188] sm:$0xff]
                %353 = vst [vmem:[%s301 + $0xc8] sm:$0xff] %v352
                %v354 = vld [vmem:[%s300 + $0x1a0] sm:$0xff]
                %355 = vst [vmem:[%s301 + $0xd0] sm:$0xff] %v354
                %v356 = vld [vmem:[%s300 + $0x1a8] sm:$0xff]
                %357 = vst [vmem:[%s301 + $0xd8] sm:$0xff] %v356
                %v358 = vld [vmem:[%s300 + $0x1c0] sm:$0xff]
                %359 = vst [vmem:[%s301 + $0xe0] sm:$0xff] %v358
                %v360 = vld [vmem:[%s300 + $0x1c8] sm:$0xff]
                %361 = vst [vmem:[%s301 + $0xe8] sm:$0xff] %v360
                %v362 = vld [vmem:[%s300 + $0x1e0] sm:$0xff]
                %363 = vst [vmem:[%s301 + $0xf0] sm:$0xff] %v362
                %v364 = vld [vmem:[%s300 + $0x1e8] sm:$0xff]
                %365 = vst [vmem:[%s301 + $0xf8] sm:$0xff] %v364
                %v366 = vld [vmem:[%s300 + $0x200] sm:$0xff]
                %367 = vst [vmem:[%s301 + $0x100] sm:$0xff] %v366
                %v368 = vld [vmem:[%s300 + $0x208] sm:$0xff]
                %369 = vst [vmem:[%s301 + $0x108] sm:$0xff] %v368
                %v370 = vld [vmem:[%s300 + $0x220] sm:$0xff]
                %371 = vst [vmem:[%s301 + $0x110] sm:$0xff] %v370
                %v372 = vld [vmem:[%s300 + $0x228] sm:$0xff]
                %373 = vst [vmem:[%s301 + $0x118] sm:$0xff] %v372
                %v374 = vld [vmem:[%s300 + $0x240] sm:$0xff]
                %375 = vst [vmem:[%s301 + $0x120] sm:$0xff] %v374
                %v376 = vld [vmem:[%s300 + $0x248] sm:$0xff]
                %377 = vst [vmem:[%s301 + $0x128] sm:$0xff] %v376
                %v378 = vld [vmem:[%s300 + $0x260] sm:$0xff]
                %379 = vst [vmem:[%s301 + $0x130] sm:$0xff] %v378
                %v380 = vld [vmem:[%s300 + $0x268] sm:$0xff]
                %381 = vst [vmem:[%s301 + $0x138] sm:$0xff] %v380
                %v382 = vld [vmem:[%s300 + $0x280] sm:$0xff]
                %383 = vst [vmem:[%s301 + $0x140] sm:$0xff] %v382
                %v384 = vld [vmem:[%s300 + $0x288] sm:$0xff]
                %385 = vst [vmem:[%s301 + $0x148] sm:$0xff] %v384
                %v386 = vld [vmem:[%s300 + $0x2a0] sm:$0xff]
                %387 = vst [vmem:[%s301 + $0x150] sm:$0xff] %v386
                %v388 = vld [vmem:[%s300 + $0x2a8] sm:$0xff]
                %389 = vst [vmem:[%s301 + $0x158] sm:$0xff] %v388
                %v390 = vld [vmem:[%s300 + $0x2c0] sm:$0xff]
                %391 = vst [vmem:[%s301 + $0x160] sm:$0xff] %v390
                %v392 = vld [vmem:[%s300 + $0x2c8] sm:$0xff]
                %393 = vst [vmem:[%s301 + $0x168] sm:$0xff] %v392
                %v394 = vld [vmem:[%s300 + $0x2e0] sm:$0xff]
                %395 = vst [vmem:[%s301 + $0x170] sm:$0xff] %v394
                %v396 = vld [vmem:[%s300 + $0x2e8] sm:$0xff]
                %397 = vst [vmem:[%s301 + $0x178] sm:$0xff] %v396
                %v398 = vld [vmem:[%s300 + $0x300] sm:$0xff]
                %399 = vst [vmem:[%s301 + $0x180] sm:$0xff] %v398
                %v400 = vld [vmem:[%s300 + $0x308] sm:$0xff]
                %401 = vst [vmem:[%s301 + $0x188] sm:$0xff] %v400
                %v402 = vld [vmem:[%s300 + $0x320] sm:$0xff]
                %403 = vst [vmem:[%s301 + $0x190] sm:$0xff] %v402
                %v404 = vld [vmem:[%s300 + $0x328] sm:$0xff]
                %405 = vst [vmem:[%s301 + $0x198] sm:$0xff] %v404
                %v406 = vld [vmem:[%s300 + $0x340] sm:$0xff]
                %407 = vst [vmem:[%s301 + $0x1a0] sm:$0xff] %v406
                %v408 = vld [vmem:[%s300 + $0x348] sm:$0xff]
                %409 = vst [vmem:[%s301 + $0x1a8] sm:$0xff] %v408
                %v410 = vld [vmem:[%s300 + $0x360] sm:$0xff]
                %411 = vst [vmem:[%s301 + $0x1b0] sm:$0xff] %v410
                %v412 = vld [vmem:[%s300 + $0x368] sm:$0xff]
                %413 = vst [vmem:[%s301 + $0x1b8] sm:$0xff] %v412
                %v414 = vld [vmem:[%s300 + $0x380] sm:$0xff]
                %415 = vst [vmem:[%s301 + $0x1c0] sm:$0xff] %v414
                %v416 = vld [vmem:[%s300 + $0x388] sm:$0xff]
                %417 = vst [vmem:[%s301 + $0x1c8] sm:$0xff] %v416
                %v418 = vld [vmem:[%s300 + $0x3a0] sm:$0xff]
                %419 = vst [vmem:[%s301 + $0x1d0] sm:$0xff] %v418
                %v420 = vld [vmem:[%s300 + $0x3a8] sm:$0xff]
                %421 = vst [vmem:[%s301 + $0x1d8] sm:$0xff] %v420
                %v422 = vld [vmem:[%s300 + $0x3c0] sm:$0xff]
                %423 = vst [vmem:[%s301 + $0x1e0] sm:$0xff] %v422
                %v424 = vld [vmem:[%s300 + $0x3c8] sm:$0xff]
                %425 = vst [vmem:[%s301 + $0x1e8] sm:$0xff] %v424
                %v426 = vld [vmem:[%s300 + $0x3e0] sm:$0xff]
                %427 = vst [vmem:[%s301 + $0x1f0] sm:$0xff] %v426
                %v428 = vld [vmem:[%s300 + $0x3e8] sm:$0xff]
                %429 = vst [vmem:[%s301 + $0x1f8] sm:$0xff] %v428
                %v430 = vld [vmem:[%s300 + $0x400] sm:$0xff]
                %431 = vst [vmem:[%s301 + $0x200] sm:$0xff] %v430
                %v432 = vld [vmem:[%s300 + $0x408] sm:$0xff]
                %433 = vst [vmem:[%s301 + $0x208] sm:$0xff] %v432
                %v434 = vld [vmem:[%s300 + $0x420] sm:$0xff]
                %435 = vst [vmem:[%s301 + $0x210] sm:$0xff] %v434
                %v436 = vld [vmem:[%s300 + $0x428] sm:$0xff]
                %437 = vst [vmem:[%s301 + $0x218] sm:$0xff] %v436
                %v438 = vld [vmem:[%s300 + $0x440] sm:$0xff]
                %439 = vst [vmem:[%s301 + $0x220] sm:$0xff] %v438
                %v440 = vld [vmem:[%s300 + $0x448] sm:$0xff]
                %441 = vst [vmem:[%s301 + $0x228] sm:$0xff] %v440
                %v442 = vld [vmem:[%s300 + $0x460] sm:$0xff]
                %443 = vst [vmem:[%s301 + $0x230] sm:$0xff] %v442
                %v444 = vld [vmem:[%s300 + $0x468] sm:$0xff]
                %445 = vst [vmem:[%s301 + $0x238] sm:$0xff] %v444
                %v446 = vld [vmem:[%s300 + $0x480] sm:$0xff]
                %447 = vst [vmem:[%s301 + $0x240] sm:$0xff] %v446
                %v448 = vld [vmem:[%s300 + $0x488] sm:$0xff]
                %449 = vst [vmem:[%s301 + $0x248] sm:$0xff] %v448
                %v450 = vld [vmem:[%s300 + $0x4a0] sm:$0xff]
                %451 = vst [vmem:[%s301 + $0x250] sm:$0xff] %v450
                %v452 = vld [vmem:[%s300 + $0x4a8] sm:$0xff]
                %453 = vst [vmem:[%s301 + $0x258] sm:$0xff] %v452
                %v454 = vld [vmem:[%s300 + $0x4c0] sm:$0xff]
                %455 = vst [vmem:[%s301 + $0x260] sm:$0xff] %v454
                %v456 = vld [vmem:[%s300 + $0x4c8] sm:$0xff]
                %457 = vst [vmem:[%s301 + $0x268] sm:$0xff] %v456
                %v458 = vld [vmem:[%s300 + $0x4e0] sm:$0xff]
                %459 = vst [vmem:[%s301 + $0x270] sm:$0xff] %v458
                %v460 = vld [vmem:[%s300 + $0x4e8] sm:$0xff]
                %461 = vst [vmem:[%s301 + $0x278] sm:$0xff] %v460
                %v462 = vld [vmem:[%s300 + $0x500] sm:$0xff]
                %463 = vst [vmem:[%s301 + $0x280] sm:$0xff] %v462
                %v464 = vld [vmem:[%s300 + $0x508] sm:$0xff]
                %465 = vst [vmem:[%s301 + $0x288] sm:$0xff] %v464
                %v466 = vld [vmem:[%s300 + $0x520] sm:$0xff]
                %467 = vst [vmem:[%s301 + $0x290] sm:$0xff] %v466
                %v468 = vld [vmem:[%s300 + $0x528] sm:$0xff]
                %469 = vst [vmem:[%s301 + $0x298] sm:$0xff] %v468
                %v470 = vld [vmem:[%s300 + $0x540] sm:$0xff]
                %471 = vst [vmem:[%s301 + $0x2a0] sm:$0xff] %v470
                %v472 = vld [vmem:[%s300 + $0x548] sm:$0xff]
                %473 = vst [vmem:[%s301 + $0x2a8] sm:$0xff] %v472
                %v474 = vld [vmem:[%s300 + $0x560] sm:$0xff]
                %475 = vst [vmem:[%s301 + $0x2b0] sm:$0xff] %v474
                %v476 = vld [vmem:[%s300 + $0x568] sm:$0xff]
                %477 = vst [vmem:[%s301 + $0x2b8] sm:$0xff] %v476
                %v478 = vld [vmem:[%s300 + $0x580] sm:$0xff]
                %479 = vst [vmem:[%s301 + $0x2c0] sm:$0xff] %v478
                %v480 = vld [vmem:[%s300 + $0x588] sm:$0xff]
                %481 = vst [vmem:[%s301 + $0x2c8] sm:$0xff] %v480
                %v482 = vld [vmem:[%s300 + $0x5a0] sm:$0xff]
                %483 = vst [vmem:[%s301 + $0x2d0] sm:$0xff] %v482
                %v484 = vld [vmem:[%s300 + $0x5a8] sm:$0xff]
                %485 = vst [vmem:[%s301 + $0x2d8] sm:$0xff] %v484
                %v486 = vld [vmem:[%s300 + $0x5c0] sm:$0xff]
                %487 = vst [vmem:[%s301 + $0x2e0] sm:$0xff] %v486
                %v488 = vld [vmem:[%s300 + $0x5c8] sm:$0xff]
                %489 = vst [vmem:[%s301 + $0x2e8] sm:$0xff] %v488
                %v490 = vld [vmem:[%s300 + $0x5e0] sm:$0xff]
                %491 = vst [vmem:[%s301 + $0x2f0] sm:$0xff] %v490
                %v492 = vld [vmem:[%s300 + $0x5e8] sm:$0xff]
                %493 = vst [vmem:[%s301 + $0x2f8] sm:$0xff] %v492
                %v494 = vld [vmem:[%s300 + $0x600] sm:$0xff]
                %495 = vst [vmem:[%s301 + $0x300] sm:$0xff] %v494
                %v496 = vld [vmem:[%s300 + $0x608] sm:$0xff]
                %497 = vst [vmem:[%s301 + $0x308] sm:$0xff] %v496
                %v498 = vld [vmem:[%s300 + $0x620] sm:$0xff]
                %499 = vst [vmem:[%s301 + $0x310] sm:$0xff] %v498
                %v500 = vld [vmem:[%s300 + $0x628] sm:$0xff]
                %501 = vst [vmem:[%s301 + $0x318] sm:$0xff] %v500
                %v502 = vld [vmem:[%s300 + $0x640] sm:$0xff]
                %503 = vst [vmem:[%s301 + $0x320] sm:$0xff] %v502
                %v504 = vld [vmem:[%s300 + $0x648] sm:$0xff]
                %505 = vst [vmem:[%s301 + $0x328] sm:$0xff] %v504
                %v506 = vld [vmem:[%s300 + $0x660] sm:$0xff]
                %507 = vst [vmem:[%s301 + $0x330] sm:$0xff] %v506
                %v508 = vld [vmem:[%s300 + $0x668] sm:$0xff]
                %509 = vst [vmem:[%s301 + $0x338] sm:$0xff] %v508
                %v510 = vld [vmem:[%s300 + $0x680] sm:$0xff]
                %511 = vst [vmem:[%s301 + $0x340] sm:$0xff] %v510
                %v512 = vld [vmem:[%s300 + $0x688] sm:$0xff]
                %513 = vst [vmem:[%s301 + $0x348] sm:$0xff] %v512
                %v514 = vld [vmem:[%s300 + $0x6a0] sm:$0xff]
                %515 = vst [vmem:[%s301 + $0x350] sm:$0xff] %v514
                %v516 = vld [vmem:[%s300 + $0x6a8] sm:$0xff]
                %517 = vst [vmem:[%s301 + $0x358] sm:$0xff] %v516
                %v518 = vld [vmem:[%s300 + $0x6c0] sm:$0xff]
                %519 = vst [vmem:[%s301 + $0x360] sm:$0xff] %v518
                %v520 = vld [vmem:[%s300 + $0x6c8] sm:$0xff]
                %521 = vst [vmem:[%s301 + $0x368] sm:$0xff] %v520
                %v522 = vld [vmem:[%s300 + $0x6e0] sm:$0xff]
                %523 = vst [vmem:[%s301 + $0x370] sm:$0xff] %v522
                %v524 = vld [vmem:[%s300 + $0x6e8] sm:$0xff]
                %525 = vst [vmem:[%s301 + $0x378] sm:$0xff] %v524
                %v526 = vld [vmem:[%s300 + $0x700] sm:$0xff]
                %527 = vst [vmem:[%s301 + $0x380] sm:$0xff] %v526
                %v528 = vld [vmem:[%s300 + $0x708] sm:$0xff]
                %529 = vst [vmem:[%s301 + $0x388] sm:$0xff] %v528
                %v530 = vld [vmem:[%s300 + $0x720] sm:$0xff]
                %531 = vst [vmem:[%s301 + $0x390] sm:$0xff] %v530
                %v532 = vld [vmem:[%s300 + $0x728] sm:$0xff]
                %533 = vst [vmem:[%s301 + $0x398] sm:$0xff] %v532
                %v534 = vld [vmem:[%s300 + $0x740] sm:$0xff]
                %535 = vst [vmem:[%s301 + $0x3a0] sm:$0xff] %v534
                %v536 = vld [vmem:[%s300 + $0x748] sm:$0xff]
                %537 = vst [vmem:[%s301 + $0x3a8] sm:$0xff] %v536
                %v538 = vld [vmem:[%s300 + $0x760] sm:$0xff]
                %539 = vst [vmem:[%s301 + $0x3b0] sm:$0xff] %v538
                %v540 = vld [vmem:[%s300 + $0x768] sm:$0xff]
                %541 = vst [vmem:[%s301 + $0x3b8] sm:$0xff] %v540
                %v542 = vld [vmem:[%s300 + $0x780] sm:$0xff]
                %543 = vst [vmem:[%s301 + $0x3c0] sm:$0xff] %v542
                %v544 = vld [vmem:[%s300 + $0x788] sm:$0xff]
                %545 = vst [vmem:[%s301 + $0x3c8] sm:$0xff] %v544
                %v546 = vld [vmem:[%s300 + $0x7a0] sm:$0xff]
                %547 = vst [vmem:[%s301 + $0x3d0] sm:$0xff] %v546
                %v548 = vld [vmem:[%s300 + $0x7a8] sm:$0xff]
                %549 = vst [vmem:[%s301 + $0x3d8] sm:$0xff] %v548
                %v550 = vld [vmem:[%s300 + $0x7c0] sm:$0xff]
                %551 = vst [vmem:[%s301 + $0x3e0] sm:$0xff] %v550
                %v552 = vld [vmem:[%s300 + $0x7c8] sm:$0xff]
                %553 = vst [vmem:[%s301 + $0x3e8] sm:$0xff] %v552
                %v554 = vld [vmem:[%s300 + $0x7e0] sm:$0xff]
                %555 = vst [vmem:[%s301 + $0x3f0] sm:$0xff] %v554
                %v556 = vld [vmem:[%s300 + $0x7e8] sm:$0xff]
                %557 = vst [vmem:[%s301 + $0x3f8] sm:$0xff] %v556
              $region61: #{decoder_forward.1} parent=55 // loop_footer
                %s299 = sadd.s32 1, %s295
              $region62: #{decoder_forward.1} parent=55 // loop_footer_branch
                %294 = sbr.rel target = $region58
              $region63: #{decoder_forward.1} parent=55 // loop_exit
                _
            $region56: #{decoder_forward.1} parent=51 // pred_fallthru
              _
            // Predicated region
            $region64: #{decoder_forward.1} parent=51 // pred_check
              _
            $region65: #{decoder_forward.1} parent=51 // pred_check_branch
              %559 = sbr.rel target = $region67
            $region66: #{decoder_forward.1} parent=51 // pred_region
              _
            $region67: #{decoder_forward.1} parent=51 // pred_fallthru
              _
          $region52: #{decoder_forward.1} parent=47 // pred_fallthru
            _
          %560 = vnop
        $region48: #{decoder_forward.1} parent=43 // pred_fallthru
          _
        // Predicated region
        $region68: #{decoder_forward.1} parent=43 // pred_check
          %p561 = pneg %p208
        $region69: #{decoder_forward.1} parent=43 // pred_check_branch
          %563 = sbr.rel (%p561) target = $region71
        $region70: #{decoder_forward.1} parent=43 // pred_region
          %s564 = smul.u32 4, %s15
          %p565 = scmp.lt.s32.totalorder %s564, 7
          %s566 = scalar_select %p565, %s564, 7
          %s567 = scalar_lea.vmem %s8, %s566
          %s568 = smul.u32 4, %s15
        $region71: #{decoder_forward.1} parent=43 // pred_fallthru
          _
      $region44: #{decoder_forward.1} parent=5 // pred_fallthru
        _
      %p569 = scmp.le.s32.totalorder 1, %s15
      %p570 = scmp.lt.s32.totalorder %s15, 3
      %p571 = pnand %p569, %p570
      %p572 = pneg %p571
      // Predicated region
      $region72: #{decoder_forward.1} parent=5 // pred_check
        _
      $region73: #{decoder_forward.1} parent=5 // pred_check_branch
        %574 = sbr.rel (%p571) target = $region75
      $region74: #{decoder_forward.1} parent=5 // pred_region
        %s575 = ssub.s32 %s15, 1
        %s576 = sand.u32 %s175, 1
        %s577 = sand.u32 %s175, 1
        %s578 = smul.addr %s577, 1024
        %s579 = scalar_lea.vmem [#allocation3], %s578
        // Predicated region
        $region76: #{decoder_forward.1} parent=74 // pred_check
          %p580 = pneg %p188
        $region77: #{decoder_forward.1} parent=74 // pred_check_branch
          %582 = sbr.rel (%p580) target = $region79
        $region78: #{decoder_forward.1} parent=74 // pred_region
          _
        $region79: #{decoder_forward.1} parent=74 // pred_fallthru
          _
        %p583 = pneg %p36
        %p584 = pneg %p33
        %p585 = pneg %p57
        %p586 = pneg %p54
        %p587 = pneg %p78
        %p588 = pneg %p75
        %p589 = pneg %p99
        %p590 = pneg %p96
        %p591 = pneg %p120
        %p592 = pneg %p117
        %p593 = pneg %p141
        %p594 = pneg %p138
        %p595 = pneg %p162
        %p596 = pneg %p159
        %s597 = sand.u32 %s175, 1
        %s598 = sand.u32 %s175, 1
        %s599 = smul.addr %s598, 1024
        %s600 = scalar_lea.vmem [#allocation3], %s599
        %p601 = pneg %p188
        %p602 = pneg %p185
        %s603 = smul.u32 4, %s20
        %p604 = scmp.lt.s32.totalorder %s603, 7
        %s605 = scalar_select %p604, %s603, 7
        %s606 = scalar_lea.vmem %s8, %s605
        %p607 = pneg %p214
        %p608 = pneg %p211
        %p609 = pneg %p240
        %p610 = pneg %p237
        %s611 = sand.u32 %s227, 1
        %s612 = sand.u32 %s227, 1
        %s613 = smul.addr %s612, 64
        %s614 = scalar_lea.vmem [#allocation4], %s613
        %s615 = smul.u32 4, %s20
        %s616 = smul.u32 4, %s20
        %p617 = scmp.lt.s32.totalorder %s616, 7
        %s618 = scalar_select %p617, %s616, 7
        %s619 = scalar_lea.vmem %s8, %s618
        %s620 = smul.u32 4, %s20
        %s621 = smul.u32 4, %s20
        %p623 = scmp.eq.s32.totalorder %s20, 0
        // Predicated region
        $region80: #{decoder_forward.1} parent=74 // pred_check
          %p624 = pneg %p623
        $region81: #{decoder_forward.1} parent=74 // pred_check_branch
          %626 = sbr.rel (%p624) target = $region83
        $region82: #{decoder_forward.1} parent=74 // pred_region
          %v627 = vld [vmem:[%s0] sm:$0xf]
          %v628 = vld [vmem:[%s0 + $0x4] sm:$0xf]
          %v629 = vld [vmem:[%s1] sm:$0xff]
          %v630 = vld [vmem:[%s1 + $0x8] sm:$0xff]
          %v631 = vld [vmem:[%s1 + $0x10] sm:$0xff]
          %v632 = vld [vmem:[%s1 + $0x18] sm:$0xff]
          %v633 = vld [vmem:[%s1 + $0x20] sm:$0xff]
          %v634 = vld [vmem:[%s1 + $0x28] sm:$0xff]
          %v635 = vld [vmem:[%s1 + $0x30] sm:$0xff]
          %v636 = vld [vmem:[%s1 + $0x38] sm:$0xff]
          %v637 = vld [vmem:[%s1 + $0x40] sm:$0xff]
          %v638 = vld [vmem:[%s1 + $0x48] sm:$0xff]
          %v639 = vld [vmem:[%s1 + $0x50] sm:$0xff]
          %v640 = vld [vmem:[%s1 + $0x58] sm:$0xff]
          %v641 = vld [vmem:[%s1 + $0x60] sm:$0xff]
          %v642 = vld [vmem:[%s1 + $0x68] sm:$0xff]
          %v643 = vld [vmem:[%s1 + $0x70] sm:$0xff]
          %v644 = vld [vmem:[%s1 + $0x78] sm:$0xff]
          %v645 = vld [vmem:[%s1 + $0x80] sm:$0xff]
          %v646 = vld [vmem:[%s1 + $0x88] sm:$0xff]
          %v647 = vld [vmem:[%s1 + $0x90] sm:$0xff]
          %v648 = vld [vmem:[%s1 + $0x98] sm:$0xff]
          %v649 = vld [vmem:[%s1 + $0xa0] sm:$0xff]
          %v650 = vld [vmem:[%s1 + $0xa8] sm:$0xff]
          %v651 = vld [vmem:[%s1 + $0xb0] sm:$0xff]
          %v652 = vld [vmem:[%s1 + $0xb8] sm:$0xff]
          %v653 = vld [vmem:[%s1 + $0xc0] sm:$0xff]
          %v654 = vld [vmem:[%s1 + $0xc8] sm:$0xff]
          %v655 = vld [vmem:[%s1 + $0xd0] sm:$0xff]
          %v656 = vld [vmem:[%s1 + $0xd8] sm:$0xff]
          %v657 = vld [vmem:[%s1 + $0xe0] sm:$0xff]
          %v658 = vld [vmem:[%s1 + $0xe8] sm:$0xff]
          %v659 = vld [vmem:[%s1 + $0xf0] sm:$0xff]
          %v660 = vld [vmem:[%s1 + $0xf8] sm:$0xff]
          %v661 = vld [vmem:[%s2] sm:$0xf]
          %v663 = vlaneseq
          %v664 = vshrl.u32 %v663, 7
          %v665 = vsub.s32 0, %v664
          %v666 = vrot.slane %v661, %v665
          %v667 = vlaneseq
          %v668 = vshrl.u32 %v667, 7
          %v669 = vsub.s32 1, %v668
          %v670 = vrot.slane %v661, %v669
          %v671 = vlaneseq
          %v672 = vshrl.u32 %v671, 7
          %v673 = vsub.s32 2, %v672
          %v674 = vrot.slane %v661, %v673
          %v675 = vlaneseq
          %v676 = vshrl.u32 %v675, 7
          %v677 = vsub.s32 3, %v676
          %v678 = vrot.slane %v661, %v677
          %v685 = vunpack.c.l.b16 %v627
          %v686 = vunpack.c.l.b16 %v628
          %v687 = vpack.c.b16 %v686, %v685
          %v721 = vunpack.c.l.b16 %v629
          %v722 = vunpack.c.h.b16 %v629
          %v723 = vunpack.c.l.b16 %v630
          %v724 = vunpack.c.h.b16 %v630
          %v725 = vunpack.c.l.b16 %v631
          %v726 = vunpack.c.h.b16 %v631
          %v727 = vunpack.c.l.b16 %v632
          %v728 = vunpack.c.h.b16 %v632
          %v729 = vunpack.c.l.b16 %v633
          %v730 = vunpack.c.h.b16 %v633
          %v731 = vunpack.c.l.b16 %v634
          %v732 = vunpack.c.h.b16 %v634
          %v733 = vunpack.c.l.b16 %v635
          %v734 = vunpack.c.h.b16 %v635
          %v735 = vunpack.c.l.b16 %v636
          %v736 = vunpack.c.h.b16 %v636
          %v737 = vunpack.c.l.b16 %v637
          %v738 = vunpack.c.h.b16 %v637
          %v739 = vunpack.c.l.b16 %v638
          %v740 = vunpack.c.h.b16 %v638
          %v741 = vunpack.c.l.b16 %v639
          %v742 = vunpack.c.h.b16 %v639
          %v743 = vunpack.c.l.b16 %v640
          %v744 = vunpack.c.h.b16 %v640
          %v745 = vunpack.c.l.b16 %v641
          %v746 = vunpack.c.h.b16 %v641
          %v747 = vunpack.c.l.b16 %v642
          %v748 = vunpack.c.h.b16 %v642
          %v749 = vunpack.c.l.b16 %v643
          %v750 = vunpack.c.h.b16 %v643
          %v751 = vunpack.c.l.b16 %v644
          %v752 = vunpack.c.h.b16 %v644
          %v753 = vunpack.c.l.b16 %v645
          %v754 = vunpack.c.h.b16 %v645
          %v755 = vunpack.c.l.b16 %v646
          %v756 = vunpack.c.h.b16 %v646
          %v757 = vunpack.c.l.b16 %v647
          %v758 = vunpack.c.h.b16 %v647
          %v759 = vunpack.c.l.b16 %v648
          %v760 = vunpack.c.h.b16 %v648
          %v761 = vunpack.c.l.b16 %v649
          %v762 = vunpack.c.h.b16 %v649
          %v763 = vunpack.c.l.b16 %v650
          %v764 = vunpack.c.h.b16 %v650
          %v765 = vunpack.c.l.b16 %v651
          %v766 = vunpack.c.h.b16 %v651
          %v767 = vunpack.c.l.b16 %v652
          %v768 = vunpack.c.h.b16 %v652
          %v769 = vunpack.c.l.b16 %v653
          %v770 = vunpack.c.h.b16 %v653
          %v771 = vunpack.c.l.b16 %v654
          %v772 = vunpack.c.h.b16 %v654
          %v773 = vunpack.c.l.b16 %v655
          %v774 = vunpack.c.h.b16 %v655
          %v775 = vunpack.c.l.b16 %v656
          %v776 = vunpack.c.h.b16 %v656
          %v777 = vunpack.c.l.b16 %v657
          %v778 = vunpack.c.h.b16 %v657
          %v779 = vunpack.c.l.b16 %v658
          %v780 = vunpack.c.h.b16 %v658
          %v781 = vunpack.c.l.b16 %v659
          %v782 = vunpack.c.h.b16 %v659
          %v783 = vunpack.c.l.b16 %v660
          %v784 = vunpack.c.h.b16 %v660
          %v785 = vpack.c.b16 %v725, %v721
          %v786 = vpack.c.b16 %v726, %v722
          %v787 = vpack.c.b16 %v727, %v723
          %v788 = vpack.c.b16 %v728, %v724
          %v789 = vpack.c.b16 %v733, %v729
          %v790 = vpack.c.b16 %v734, %v730
          %v791 = vpack.c.b16 %v735, %v731
          %v792 = vpack.c.b16 %v736, %v732
          %v793 = vpack.c.b16 %v741, %v737
          %v794 = vpack.c.b16 %v742, %v738
          %v795 = vpack.c.b16 %v743, %v739
          %v796 = vpack.c.b16 %v744, %v740
          %v797 = vpack.c.b16 %v749, %v745
          %v798 = vpack.c.b16 %v750, %v746
          %v799 = vpack.c.b16 %v751, %v747
          %v800 = vpack.c.b16 %v752, %v748
          %v801 = vpack.c.b16 %v757, %v753
          %v802 = vpack.c.b16 %v758, %v754
          %v803 = vpack.c.b16 %v759, %v755
          %v804 = vpack.c.b16 %v760, %v756
          %v805 = vpack.c.b16 %v765, %v761
          %v806 = vpack.c.b16 %v766, %v762
          %v807 = vpack.c.b16 %v767, %v763
          %v808 = vpack.c.b16 %v768, %v764
          %v809 = vpack.c.b16 %v773, %v769
          %v810 = vpack.c.b16 %v774, %v770
          %v811 = vpack.c.b16 %v775, %v771
          %v812 = vpack.c.b16 %v776, %v772
          %v813 = vpack.c.b16 %v781, %v777
          %v814 = vpack.c.b16 %v782, %v778
          %v815 = vpack.c.b16 %v783, %v779
          %v816 = vpack.c.b16 %v784, %v780
          %849 = vmatprep.subr.bf16.mxu0 %v786
          %850 = vmatpush1.bf16.msra.mxu0 %v785
          %851 = vmatprep.subr.bf16.mxu0 %v790
          %852 = vmatpush1.bf16.msra.mxu0 %v789
          %853 = vmatprep.subr.bf16.mxu0 %v794
          %854 = vmatpush1.bf16.msra.mxu0 %v793
          %855 = vmatprep.subr.bf16.mxu0 %v798
          %856 = vmatpush1.bf16.msra.mxu0 %v797
          %857 = vmatprep.subr.bf16.mxu0 %v802
          %858 = vmatpush1.bf16.msra.mxu0 %v801
          %859 = vmatprep.subr.bf16.mxu0 %v806
          %860 = vmatpush1.bf16.msra.mxu0 %v805
          %861 = vmatprep.subr.bf16.mxu0 %v810
          %862 = vmatpush1.bf16.msra.mxu0 %v809
          %863 = vmatprep.subr.bf16.mxu0 %v814
          %864 = vmatpush1.bf16.msra.mxu0 %v813
          %865 = vmatprep.subr.bf16.mxu0 0
          %866 = vmatpush1.bf16.msra.mxu0 0
          %867 = vmatprep.subr.bf16.mxu0 0
          %868 = vmatpush1.bf16.msra.mxu0 0
          %869 = vmatprep.subr.bf16.mxu0 0
          %870 = vmatpush1.bf16.msra.mxu0 0
          %871 = vmatprep.subr.bf16.mxu0 0
          %872 = vmatpush1.bf16.msra.mxu0 0
          %873 = vmatprep.subr.bf16.mxu0 0
          %874 = vmatpush1.bf16.msra.mxu0 0
          %875 = vmatprep.subr.bf16.mxu0 0
          %876 = vmatpush1.bf16.msra.mxu0 0
          %877 = vmatprep.subr.bf16.mxu0 0
          %878 = vmatpush1.bf16.msra.mxu0 0
          %879 = vmatprep.subr.bf16.mxu0 0
          %880 = vmatpush1.bf16.msra.mxu0 0
          %881 = vmatprep.mubr.bf16.mxu0 0
          %882 = vmatmul.mubr.bf16.gmra.mrb[0].mxu0 %v687
          %v883 = vpop.f32.mrb[0].mxu0
          %v884 = vadd.f32 %v666, %v883
          %v885 = vpop.f32.mrb[0].mxu0
          %v886 = vadd.f32 %v670, %v885
          %v887 = vpop.f32.mrb[0].mxu0
          %v888 = vadd.f32 %v666, %v887
          %v889 = vpop.f32.mrb[0].mxu0
          %v890 = vadd.f32 %v670, %v889
          %891 = vdwg.mxu0
          %892 = vmatprep.subr.bf16.mxu0 %v788
          %893 = vmatpush1.bf16.msra.mxu0 %v787
          %894 = vmatprep.subr.bf16.mxu0 %v792
          %895 = vmatpush1.bf16.msra.mxu0 %v791
          %896 = vmatprep.subr.bf16.mxu0 %v796
          %897 = vmatpush1.bf16.msra.mxu0 %v795
          %898 = vmatprep.subr.bf16.mxu0 %v800
          %899 = vmatpush1.bf16.msra.mxu0 %v799
          %900 = vmatprep.subr.bf16.mxu0 %v804
          %901 = vmatpush1.bf16.msra.mxu0 %v803
          %902 = vmatprep.subr.bf16.mxu0 %v808
          %903 = vmatpush1.bf16.msra.mxu0 %v807
          %904 = vmatprep.subr.bf16.mxu0 %v812
          %905 = vmatpush1.bf16.msra.mxu0 %v811
          %906 = vmatprep.subr.bf16.mxu0 %v816
          %907 = vmatpush1.bf16.msra.mxu0 %v815
          %908 = vmatprep.subr.bf16.mxu0 0
          %909 = vmatpush1.bf16.msra.mxu0 0
          %910 = vmatprep.subr.bf16.mxu0 0
          %911 = vmatpush1.bf16.msra.mxu0 0
          %912 = vmatprep.subr.bf16.mxu0 0
          %913 = vmatpush1.bf16.msra.mxu0 0
          %914 = vmatprep.subr.bf16.mxu0 0
          %915 = vmatpush1.bf16.msra.mxu0 0
          %916 = vmatprep.subr.bf16.mxu0 0
          %917 = vmatpush1.bf16.msra.mxu0 0
          %918 = vmatprep.subr.bf16.mxu0 0
          %919 = vmatpush1.bf16.msra.mxu0 0
          %920 = vmatprep.subr.bf16.mxu0 0
          %921 = vmatpush1.bf16.msra.mxu0 0
          %922 = vmatprep.subr.bf16.mxu0 0
          %923 = vmatpush1.bf16.msra.mxu0 0
          %924 = vmatprep.mubr.bf16.mxu0 0
          %925 = vmatmul.mubr.bf16.gmra.mrb[0].mxu0 %v687
          %v926 = vpop.f32.mrb[0].mxu0
          %v927 = vadd.f32 %v674, %v926
          %v928 = vpop.f32.mrb[0].mxu0
          %v929 = vadd.f32 %v678, %v928
          %v930 = vpop.f32.mrb[0].mxu0
          %v931 = vadd.f32 %v674, %v930
          %v932 = vpop.f32.mrb[0].mxu0
          %v933 = vadd.f32 %v678, %v932
          %934 = vdwg.mxu0
          %vm935 = vcmp.gt.f32.partialorder %v884, 0.0
          %vm936 = vcmp.gt.f32.partialorder %v886, 0.0
          %vm937 = vcmp.gt.f32.partialorder %v927, 0.0
          %vm938 = vcmp.gt.f32.partialorder %v929, 0.0
          %vm939 = vcmp.gt.f32.partialorder %v888, 0.0
          %vm940 = vcmp.gt.f32.partialorder %v890, 0.0
          %vm941 = vcmp.gt.f32.partialorder %v931, 0.0
          %vm942 = vcmp.gt.f32.partialorder %v933, 0.0
          %v943 = vmul.f32 %v884, 0.01
          %v944 = vmul.f32 %v886, 0.01
          %v945 = vmul.f32 %v927, 0.01
          %v946 = vmul.f32 %v929, 0.01
          %v947 = vmul.f32 %v888, 0.01
          %v948 = vmul.f32 %v890, 0.01
          %v949 = vmul.f32 %v931, 0.01
          %v950 = vmul.f32 %v933, 0.01
          %v951 = vsel %vm935, %v884, %v943
          %v952 = vsel %vm936, %v886, %v944
          %v953 = vsel %vm937, %v927, %v945
          %v954 = vsel %vm938, %v929, %v946
          %v955 = vsel %vm939, %v888, %v947
          %v956 = vsel %vm940, %v890, %v948
          %v957 = vsel %vm941, %v931, %v949
          %v958 = vsel %vm942, %v933, %v950
          %v959 = vpack.c.bf16 %v955, %v951
          %v960 = vpack.c.bf16 %v956, %v952
          %v961 = vpack.c.bf16 %v957, %v953
          %v962 = vpack.c.bf16 %v958, %v954
          %v963 = vld [vmem:[%s3] sm:$0xff]
          %v964 = vld [vmem:[%s3 + $0x8] sm:$0xff]
          %v965 = vld [vmem:[%s3 + $0x10] sm:$0xff]
          %v966 = vld [vmem:[%s3 + $0x18] sm:$0xff]
          %v967 = vld [vmem:[%s3 + $0x20] sm:$0xff]
          %v968 = vld [vmem:[%s3 + $0x28] sm:$0xff]
          %v969 = vld [vmem:[%s3 + $0x30] sm:$0xff]
          %v970 = vld [vmem:[%s3 + $0x38] sm:$0xff]
          %v971 = vld [vmem:[%s3 + $0x40] sm:$0xff]
          %v972 = vld [vmem:[%s3 + $0x48] sm:$0xff]
          %v973 = vld [vmem:[%s3 + $0x50] sm:$0xff]
          %v974 = vld [vmem:[%s3 + $0x58] sm:$0xff]
          %v975 = vld [vmem:[%s3 + $0x60] sm:$0xff]
          %v976 = vld [vmem:[%s3 + $0x68] sm:$0xff]
          %v977 = vld [vmem:[%s3 + $0x70] sm:$0xff]
          %v978 = vld [vmem:[%s3 + $0x78] sm:$0xff]
          %v979 = vld [vmem:[%s3 + $0x80] sm:$0xff]
          %v980 = vld [vmem:[%s3 + $0x88] sm:$0xff]
          %v981 = vld [vmem:[%s3 + $0x90] sm:$0xff]
          %v982 = vld [vmem:[%s3 + $0x98] sm:$0xff]
          %v983 = vld [vmem:[%s3 + $0xa0] sm:$0xff]
          %v984 = vld [vmem:[%s3 + $0xa8] sm:$0xff]
          %v985 = vld [vmem:[%s3 + $0xb0] sm:$0xff]
          %v986 = vld [vmem:[%s3 + $0xb8] sm:$0xff]
          %v987 = vld [vmem:[%s3 + $0xc0] sm:$0xff]
          %v988 = vld [vmem:[%s3 + $0xc8] sm:$0xff]
          %v989 = vld [vmem:[%s3 + $0xd0] sm:$0xff]
          %v990 = vld [vmem:[%s3 + $0xd8] sm:$0xff]
          %v991 = vld [vmem:[%s3 + $0xe0] sm:$0xff]
          %v992 = vld [vmem:[%s3 + $0xe8] sm:$0xff]
          %v993 = vld [vmem:[%s3 + $0xf0] sm:$0xff]
          %v994 = vld [vmem:[%s3 + $0xf8] sm:$0xff]
          %v995 = vld [vmem:[%s3 + $0x100] sm:$0xff]
          %v996 = vld [vmem:[%s3 + $0x108] sm:$0xff]
          %v997 = vld [vmem:[%s3 + $0x110] sm:$0xff]
          %v998 = vld [vmem:[%s3 + $0x118] sm:$0xff]
          %v999 = vld [vmem:[%s3 + $0x120] sm:$0xff]
          %v1000 = vld [vmem:[%s3 + $0x128] sm:$0xff]
          %v1001 = vld [vmem:[%s3 + $0x130] sm:$0xff]
          %v1002 = vld [vmem:[%s3 + $0x138] sm:$0xff]
          %v1003 = vld [vmem:[%s3 + $0x140] sm:$0xff]
          %v1004 = vld [vmem:[%s3 + $0x148] sm:$0xff]
          %v1005 = vld [vmem:[%s3 + $0x150] sm:$0xff]
          %v1006 = vld [vmem:[%s3 + $0x158] sm:$0xff]
          %v1007 = vld [vmem:[%s3 + $0x160] sm:$0xff]
          %v1008 = vld [vmem:[%s3 + $0x168] sm:$0xff]
          %v1009 = vld [vmem:[%s3 + $0x170] sm:$0xff]
          %v1010 = vld [vmem:[%s3 + $0x178] sm:$0xff]
          %v1011 = vld [vmem:[%s3 + $0x180] sm:$0xff]
          %v1012 = vld [vmem:[%s3 + $0x188] sm:$0xff]
          %v1013 = vld [vmem:[%s3 + $0x190] sm:$0xff]
          %v1014 = vld [vmem:[%s3 + $0x198] sm:$0xff]
          %v1015 = vld [vmem:[%s3 + $0x1a0] sm:$0xff]
          %v1016 = vld [vmem:[%s3 + $0x1a8] sm:$0xff]
          %v1017 = vld [vmem:[%s3 + $0x1b0] sm:$0xff]
          %v1018 = vld [vmem:[%s3 + $0x1b8] sm:$0xff]
          %v1019 = vld [vmem:[%s3 + $0x1c0] sm:$0xff]
          %v1020 = vld [vmem:[%s3 + $0x1c8] sm:$0xff]
          %v1021 = vld [vmem:[%s3 + $0x1d0] sm:$0xff]
          %v1022 = vld [vmem:[%s3 + $0x1d8] sm:$0xff]
          %v1023 = vld [vmem:[%s3 + $0x1e0] sm:$0xff]
          %v1024 = vld [vmem:[%s3 + $0x1e8] sm:$0xff]
          %v1025 = vld [vmem:[%s3 + $0x1f0] sm:$0xff]
          %v1026 = vld [vmem:[%s3 + $0x1f8] sm:$0xff]
          %v1027 = vld [vmem:[%s3 + $0x200] sm:$0xff]
          %v1028 = vld [vmem:[%s3 + $0x208] sm:$0xff]
          %v1029 = vld [vmem:[%s3 + $0x210] sm:$0xff]
          %v1030 = vld [vmem:[%s3 + $0x218] sm:$0xff]
          %v1031 = vld [vmem:[%s3 + $0x220] sm:$0xff]
          %v1032 = vld [vmem:[%s3 + $0x228] sm:$0xff]
          %v1033 = vld [vmem:[%s3 + $0x230] sm:$0xff]
          %v1034 = vld [vmem:[%s3 + $0x238] sm:$0xff]
          %v1035 = vld [vmem:[%s3 + $0x240] sm:$0xff]
          %v1036 = vld [vmem:[%s3 + $0x248] sm:$0xff]
          %v1037 = vld [vmem:[%s3 + $0x250] sm:$0xff]
          %v1038 = vld [vmem:[%s3 + $0x258] sm:$0xff]
          %v1039 = vld [vmem:[%s3 + $0x260] sm:$0xff]
          %v1040 = vld [vmem:[%s3 + $0x268] sm:$0xff]
          %v1041 = vld [vmem:[%s3 + $0x270] sm:$0xff]
          %v1042 = vld [vmem:[%s3 + $0x278] sm:$0xff]
          %v1043 = vld [vmem:[%s3 + $0x280] sm:$0xff]
          %v1044 = vld [vmem:[%s3 + $0x288] sm:$0xff]
          %v1045 = vld [vmem:[%s3 + $0x290] sm:$0xff]
          %v1046 = vld [vmem:[%s3 + $0x298] sm:$0xff]
          %v1047 = vld [vmem:[%s3 + $0x2a0] sm:$0xff]
          %v1048 = vld [vmem:[%s3 + $0x2a8] sm:$0xff]
          %v1049 = vld [vmem:[%s3 + $0x2b0] sm:$0xff]
          %v1050 = vld [vmem:[%s3 + $0x2b8] sm:$0xff]
          %v1051 = vld [vmem:[%s3 + $0x2c0] sm:$0xff]
          %v1052 = vld [vmem:[%s3 + $0x2c8] sm:$0xff]
          %v1053 = vld [vmem:[%s3 + $0x2d0] sm:$0xff]
          %v1054 = vld [vmem:[%s3 + $0x2d8] sm:$0xff]
          %v1055 = vld [vmem:[%s3 + $0x2e0] sm:$0xff]
          %v1056 = vld [vmem:[%s3 + $0x2e8] sm:$0xff]
          %v1057 = vld [vmem:[%s3 + $0x2f0] sm:$0xff]
          %v1058 = vld [vmem:[%s3 + $0x2f8] sm:$0xff]
          %v1059 = vld [vmem:[%s3 + $0x300] sm:$0xff]
          %v1060 = vld [vmem:[%s3 + $0x308] sm:$0xff]
          %v1061 = vld [vmem:[%s3 + $0x310] sm:$0xff]
          %v1062 = vld [vmem:[%s3 + $0x318] sm:$0xff]
          %v1063 = vld [vmem:[%s3 + $0x320] sm:$0xff]
          %v1064 = vld [vmem:[%s3 + $0x328] sm:$0xff]
          %v1065 = vld [vmem:[%s3 + $0x330] sm:$0xff]
          %v1066 = vld [vmem:[%s3 + $0x338] sm:$0xff]
          %v1067 = vld [vmem:[%s3 + $0x340] sm:$0xff]
          %v1068 = vld [vmem:[%s3 + $0x348] sm:$0xff]
          %v1069 = vld [vmem:[%s3 + $0x350] sm:$0xff]
          %v1070 = vld [vmem:[%s3 + $0x358] sm:$0xff]
          %v1071 = vld [vmem:[%s3 + $0x360] sm:$0xff]
          %v1072 = vld [vmem:[%s3 + $0x368] sm:$0xff]
          %v1073 = vld [vmem:[%s3 + $0x370] sm:$0xff]
          %v1074 = vld [vmem:[%s3 + $0x378] sm:$0xff]
          %v1075 = vld [vmem:[%s3 + $0x380] sm:$0xff]
          %v1076 = vld [vmem:[%s3 + $0x388] sm:$0xff]
          %v1077 = vld [vmem:[%s3 + $0x390] sm:$0xff]
          %v1078 = vld [vmem:[%s3 + $0x398] sm:$0xff]
          %v1079 = vld [vmem:[%s3 + $0x3a0] sm:$0xff]
          %v1080 = vld [vmem:[%s3 + $0x3a8] sm:$0xff]
          %v1081 = vld [vmem:[%s3 + $0x3b0] sm:$0xff]
          %v1082 = vld [vmem:[%s3 + $0x3b8] sm:$0xff]
          %v1083 = vld [vmem:[%s3 + $0x3c0] sm:$0xff]
          %v1084 = vld [vmem:[%s3 + $0x3c8] sm:$0xff]
          %v1085 = vld [vmem:[%s3 + $0x3d0] sm:$0xff]
          %v1086 = vld [vmem:[%s3 + $0x3d8] sm:$0xff]
          %v1087 = vld [vmem:[%s3 + $0x3e0] sm:$0xff]
          %v1088 = vld [vmem:[%s3 + $0x3e8] sm:$0xff]
          %v1089 = vld [vmem:[%s3 + $0x3f0] sm:$0xff]
          %v1090 = vld [vmem:[%s3 + $0x3f8] sm:$0xff]
          %v1091 = vld [vmem:[%s4] sm:$0xf]
          %v1093 = vlaneseq
          %v1094 = vshrl.u32 %v1093, 7
          %v1095 = vsub.s32 0, %v1094
          %v1096 = vrot.slane %v1091, %v1095
          %v1097 = vlaneseq
          %v1098 = vshrl.u32 %v1097, 7
          %v1099 = vsub.s32 1, %v1098
          %v1100 = vrot.slane %v1091, %v1099
          %v1101 = vlaneseq
          %v1102 = vshrl.u32 %v1101, 7
          %v1103 = vsub.s32 2, %v1102
          %v1104 = vrot.slane %v1091, %v1103
          %v1105 = vlaneseq
          %v1106 = vshrl.u32 %v1105, 7
          %v1107 = vsub.s32 3, %v1106
          %v1108 = vrot.slane %v1091, %v1107
          %v1241 = vunpack.c.l.b16 %v963
          %v1242 = vunpack.c.h.b16 %v963
          %v1243 = vunpack.c.l.b16 %v964
          %v1244 = vunpack.c.h.b16 %v964
          %v1245 = vunpack.c.l.b16 %v965
          %v1246 = vunpack.c.h.b16 %v965
          %v1247 = vunpack.c.l.b16 %v966
          %v1248 = vunpack.c.h.b16 %v966
          %v1249 = vunpack.c.l.b16 %v967
          %v1250 = vunpack.c.h.b16 %v967
          %v1251 = vunpack.c.l.b16 %v968
          %v1252 = vunpack.c.h.b16 %v968
          %v1253 = vunpack.c.l.b16 %v969
          %v1254 = vunpack.c.h.b16 %v969
          %v1255 = vunpack.c.l.b16 %v970
          %v1256 = vunpack.c.h.b16 %v970
          %v1257 = vunpack.c.l.b16 %v971
          %v1258 = vunpack.c.h.b16 %v971
          %v1259 = vunpack.c.l.b16 %v972
          %v1260 = vunpack.c.h.b16 %v972
          %v1261 = vunpack.c.l.b16 %v973
          %v1262 = vunpack.c.h.b16 %v973
          %v1263 = vunpack.c.l.b16 %v974
          %v1264 = vunpack.c.h.b16 %v974
          %v1265 = vunpack.c.l.b16 %v975
          %v1266 = vunpack.c.h.b16 %v975
          %v1267 = vunpack.c.l.b16 %v976
          %v1268 = vunpack.c.h.b16 %v976
          %v1269 = vunpack.c.l.b16 %v977
          %v1270 = vunpack.c.h.b16 %v977
          %v1271 = vunpack.c.l.b16 %v978
          %v1272 = vunpack.c.h.b16 %v978
          %v1273 = vunpack.c.l.b16 %v979
          %v1274 = vunpack.c.h.b16 %v979
          %v1275 = vunpack.c.l.b16 %v980
          %v1276 = vunpack.c.h.b16 %v980
          %v1277 = vunpack.c.l.b16 %v981
          %v1278 = vunpack.c.h.b16 %v981
          %v1279 = vunpack.c.l.b16 %v982
          %v1280 = vunpack.c.h.b16 %v982
          %v1281 = vunpack.c.l.b16 %v983
          %v1282 = vunpack.c.h.b16 %v983
          %v1283 = vunpack.c.l.b16 %v984
          %v1284 = vunpack.c.h.b16 %v984
          %v1285 = vunpack.c.l.b16 %v985
          %v1286 = vunpack.c.h.b16 %v985
          %v1287 = vunpack.c.l.b16 %v986
          %v1288 = vunpack.c.h.b16 %v986
          %v1289 = vunpack.c.l.b16 %v987
          %v1290 = vunpack.c.h.b16 %v987
          %v1291 = vunpack.c.l.b16 %v988
          %v1292 = vunpack.c.h.b16 %v988
          %v1293 = vunpack.c.l.b16 %v989
          %v1294 = vunpack.c.h.b16 %v989
          %v1295 = vunpack.c.l.b16 %v990
          %v1296 = vunpack.c.h.b16 %v990
          %v1297 = vunpack.c.l.b16 %v991
          %v1298 = vunpack.c.h.b16 %v991
          %v1299 = vunpack.c.l.b16 %v992
          %v1300 = vunpack.c.h.b16 %v992
          %v1301 = vunpack.c.l.b16 %v993
          %v1302 = vunpack.c.h.b16 %v993
          %v1303 = vunpack.c.l.b16 %v994
          %v1304 = vunpack.c.h.b16 %v994
          %v1305 = vunpack.c.l.b16 %v995
          %v1306 = vunpack.c.h.b16 %v995
          %v1307 = vunpack.c.l.b16 %v996
          %v1308 = vunpack.c.h.b16 %v996
          %v1309 = vunpack.c.l.b16 %v997
          %v1310 = vunpack.c.h.b16 %v997
          %v1311 = vunpack.c.l.b16 %v998
          %v1312 = vunpack.c.h.b16 %v998
          %v1313 = vunpack.c.l.b16 %v999
          %v1314 = vunpack.c.h.b16 %v999
          %v1315 = vunpack.c.l.b16 %v1000
          %v1316 = vunpack.c.h.b16 %v1000
          %v1317 = vunpack.c.l.b16 %v1001
          %v1318 = vunpack.c.h.b16 %v1001
          %v1319 = vunpack.c.l.b16 %v1002
          %v1320 = vunpack.c.h.b16 %v1002
          %v1321 = vunpack.c.l.b16 %v1003
          %v1322 = vunpack.c.h.b16 %v1003
          %v1323 = vunpack.c.l.b16 %v1004
          %v1324 = vunpack.c.h.b16 %v1004
          %v1325 = vunpack.c.l.b16 %v1005
          %v1326 = vunpack.c.h.b16 %v1005
          %v1327 = vunpack.c.l.b16 %v1006
          %v1328 = vunpack.c.h.b16 %v1006
          %v1329 = vunpack.c.l.b16 %v1007
          %v1330 = vunpack.c.h.b16 %v1007
          %v1331 = vunpack.c.l.b16 %v1008
          %v1332 = vunpack.c.h.b16 %v1008
          %v1333 = vunpack.c.l.b16 %v1009
          %v1334 = vunpack.c.h.b16 %v1009
          %v1335 = vunpack.c.l.b16 %v1010
          %v1336 = vunpack.c.h.b16 %v1010
          %v1337 = vunpack.c.l.b16 %v1011
          %v1338 = vunpack.c.h.b16 %v1011
          %v1339 = vunpack.c.l.b16 %v1012
          %v1340 = vunpack.c.h.b16 %v1012
          %v1341 = vunpack.c.l.b16 %v1013
          %v1342 = vunpack.c.h.b16 %v1013
          %v1343 = vunpack.c.l.b16 %v1014
          %v1344 = vunpack.c.h.b16 %v1014
          %v1345 = vunpack.c.l.b16 %v1015
          %v1346 = vunpack.c.h.b16 %v1015
          %v1347 = vunpack.c.l.b16 %v1016
          %v1348 = vunpack.c.h.b16 %v1016
          %v1349 = vunpack.c.l.b16 %v1017
          %v1350 = vunpack.c.h.b16 %v1017
          %v1351 = vunpack.c.l.b16 %v1018
          %v1352 = vunpack.c.h.b16 %v1018
          %v1353 = vunpack.c.l.b16 %v1019
          %v1354 = vunpack.c.h.b16 %v1019
          %v1355 = vunpack.c.l.b16 %v1020
          %v1356 = vunpack.c.h.b16 %v1020
          %v1357 = vunpack.c.l.b16 %v1021
          %v1358 = vunpack.c.h.b16 %v1021
          %v1359 = vunpack.c.l.b16 %v1022
          %v1360 = vunpack.c.h.b16 %v1022
          %v1361 = vunpack.c.l.b16 %v1023
          %v1362 = vunpack.c.h.b16 %v1023
          %v1363 = vunpack.c.l.b16 %v1024
          %v1364 = vunpack.c.h.b16 %v1024
          %v1365 = vunpack.c.l.b16 %v1025
          %v1366 = vunpack.c.h.b16 %v1025
          %v1367 = vunpack.c.l.b16 %v1026
          %v1368 = vunpack.c.h.b16 %v1026
          %v1369 = vunpack.c.l.b16 %v1027
          %v1370 = vunpack.c.h.b16 %v1027
          %v1371 = vunpack.c.l.b16 %v1028
          %v1372 = vunpack.c.h.b16 %v1028
          %v1373 = vunpack.c.l.b16 %v1029
          %v1374 = vunpack.c.h.b16 %v1029
          %v1375 = vunpack.c.l.b16 %v1030
          %v1376 = vunpack.c.h.b16 %v1030
          %v1377 = vunpack.c.l.b16 %v1031
          %v1378 = vunpack.c.h.b16 %v1031
          %v1379 = vunpack.c.l.b16 %v1032
          %v1380 = vunpack.c.h.b16 %v1032
          %v1381 = vunpack.c.l.b16 %v1033
          %v1382 = vunpack.c.h.b16 %v1033
          %v1383 = vunpack.c.l.b16 %v1034
          %v1384 = vunpack.c.h.b16 %v1034
          %v1385 = vunpack.c.l.b16 %v1035
          %v1386 = vunpack.c.h.b16 %v1035
          %v1387 = vunpack.c.l.b16 %v1036
          %v1388 = vunpack.c.h.b16 %v1036
          %v1389 = vunpack.c.l.b16 %v1037
          %v1390 = vunpack.c.h.b16 %v1037
          %v1391 = vunpack.c.l.b16 %v1038
          %v1392 = vunpack.c.h.b16 %v1038
          %v1393 = vunpack.c.l.b16 %v1039
          %v1394 = vunpack.c.h.b16 %v1039
          %v1395 = vunpack.c.l.b16 %v1040
          %v1396 = vunpack.c.h.b16 %v1040
          %v1397 = vunpack.c.l.b16 %v1041
          %v1398 = vunpack.c.h.b16 %v1041
          %v1399 = vunpack.c.l.b16 %v1042
          %v1400 = vunpack.c.h.b16 %v1042
          %v1401 = vunpack.c.l.b16 %v1043
          %v1402 = vunpack.c.h.b16 %v1043
          %v1403 = vunpack.c.l.b16 %v1044
          %v1404 = vunpack.c.h.b16 %v1044
          %v1405 = vunpack.c.l.b16 %v1045
          %v1406 = vunpack.c.h.b16 %v1045
          %v1407 = vunpack.c.l.b16 %v1046
          %v1408 = vunpack.c.h.b16 %v1046
          %v1409 = vunpack.c.l.b16 %v1047
          %v1410 = vunpack.c.h.b16 %v1047
          %v1411 = vunpack.c.l.b16 %v1048
          %v1412 = vunpack.c.h.b16 %v1048
          %v1413 = vunpack.c.l.b16 %v1049
          %v1414 = vunpack.c.h.b16 %v1049
          %v1415 = vunpack.c.l.b16 %v1050
          %v1416 = vunpack.c.h.b16 %v1050
          %v1417 = vunpack.c.l.b16 %v1051
          %v1418 = vunpack.c.h.b16 %v1051
          %v1419 = vunpack.c.l.b16 %v1052
          %v1420 = vunpack.c.h.b16 %v1052
          %v1421 = vunpack.c.l.b16 %v1053
          %v1422 = vunpack.c.h.b16 %v1053
          %v1423 = vunpack.c.l.b16 %v1054
          %v1424 = vunpack.c.h.b16 %v1054
          %v1425 = vunpack.c.l.b16 %v1055
          %v1426 = vunpack.c.h.b16 %v1055
          %v1427 = vunpack.c.l.b16 %v1056
          %v1428 = vunpack.c.h.b16 %v1056
          %v1429 = vunpack.c.l.b16 %v1057
          %v1430 = vunpack.c.h.b16 %v1057
          %v1431 = vunpack.c.l.b16 %v1058
          %v1432 = vunpack.c.h.b16 %v1058
          %v1433 = vunpack.c.l.b16 %v1059
          %v1434 = vunpack.c.h.b16 %v1059
          %v1435 = vunpack.c.l.b16 %v1060
          %v1436 = vunpack.c.h.b16 %v1060
          %v1437 = vunpack.c.l.b16 %v1061
          %v1438 = vunpack.c.h.b16 %v1061
          %v1439 = vunpack.c.l.b16 %v1062
          %v1440 = vunpack.c.h.b16 %v1062
          %v1441 = vunpack.c.l.b16 %v1063
          %v1442 = vunpack.c.h.b16 %v1063
          %v1443 = vunpack.c.l.b16 %v1064
          %v1444 = vunpack.c.h.b16 %v1064
          %v1445 = vunpack.c.l.b16 %v1065
          %v1446 = vunpack.c.h.b16 %v1065
          %v1447 = vunpack.c.l.b16 %v1066
          %v1448 = vunpack.c.h.b16 %v1066
          %v1449 = vunpack.c.l.b16 %v1067
          %v1450 = vunpack.c.h.b16 %v1067
          %v1451 = vunpack.c.l.b16 %v1068
          %v1452 = vunpack.c.h.b16 %v1068
          %v1453 = vunpack.c.l.b16 %v1069
          %v1454 = vunpack.c.h.b16 %v1069
          %v1455 = vunpack.c.l.b16 %v1070
          %v1456 = vunpack.c.h.b16 %v1070
          %v1457 = vunpack.c.l.b16 %v1071
          %v1458 = vunpack.c.h.b16 %v1071
          %v1459 = vunpack.c.l.b16 %v1072
          %v1460 = vunpack.c.h.b16 %v1072
          %v1461 = vunpack.c.l.b16 %v1073
          %v1462 = vunpack.c.h.b16 %v1073
          %v1463 = vunpack.c.l.b16 %v1074
          %v1464 = vunpack.c.h.b16 %v1074
          %v1465 = vunpack.c.l.b16 %v1075
          %v1466 = vunpack.c.h.b16 %v1075
          %v1467 = vunpack.c.l.b16 %v1076
          %v1468 = vunpack.c.h.b16 %v1076
          %v1469 = vunpack.c.l.b16 %v1077
          %v1470 = vunpack.c.h.b16 %v1077
          %v1471 = vunpack.c.l.b16 %v1078
          %v1472 = vunpack.c.h.b16 %v1078
          %v1473 = vunpack.c.l.b16 %v1079
          %v1474 = vunpack.c.h.b16 %v1079
          %v1475 = vunpack.c.l.b16 %v1080
          %v1476 = vunpack.c.h.b16 %v1080
          %v1477 = vunpack.c.l.b16 %v1081
          %v1478 = vunpack.c.h.b16 %v1081
          %v1479 = vunpack.c.l.b16 %v1082
          %v1480 = vunpack.c.h.b16 %v1082
          %v1481 = vunpack.c.l.b16 %v1083
          %v1482 = vunpack.c.h.b16 %v1083
          %v1483 = vunpack.c.l.b16 %v1084
          %v1484 = vunpack.c.h.b16 %v1084
          %v1485 = vunpack.c.l.b16 %v1085
          %v1486 = vunpack.c.h.b16 %v1085
          %v1487 = vunpack.c.l.b16 %v1086
          %v1488 = vunpack.c.h.b16 %v1086
          %v1489 = vunpack.c.l.b16 %v1087
          %v1490 = vunpack.c.h.b16 %v1087
          %v1491 = vunpack.c.l.b16 %v1088
          %v1492 = vunpack.c.h.b16 %v1088
          %v1493 = vunpack.c.l.b16 %v1089
          %v1494 = vunpack.c.h.b16 %v1089
          %v1495 = vunpack.c.l.b16 %v1090
          %v1496 = vunpack.c.h.b16 %v1090
          %v1497 = vpack.c.b16 %v1245, %v1241
          %v1498 = vpack.c.b16 %v1246, %v1242
          %v1499 = vpack.c.b16 %v1247, %v1243
          %v1500 = vpack.c.b16 %v1248, %v1244
          %v1501 = vpack.c.b16 %v1253, %v1249
          %v1502 = vpack.c.b16 %v1254, %v1250
          %v1503 = vpack.c.b16 %v1255, %v1251
          %v1504 = vpack.c.b16 %v1256, %v1252
          %v1505 = vpack.c.b16 %v1261, %v1257
          %v1506 = vpack.c.b16 %v1262, %v1258
          %v1507 = vpack.c.b16 %v1263, %v1259
          %v1508 = vpack.c.b16 %v1264, %v1260
          %v1509 = vpack.c.b16 %v1269, %v1265
          %v1510 = vpack.c.b16 %v1270, %v1266
          %v1511 = vpack.c.b16 %v1271, %v1267
          %v1512 = vpack.c.b16 %v1272, %v1268
          %v1513 = vpack.c.b16 %v1277, %v1273
          %v1514 = vpack.c.b16 %v1278, %v1274
          %v1515 = vpack.c.b16 %v1279, %v1275
          %v1516 = vpack.c.b16 %v1280, %v1276
          %v1517 = vpack.c.b16 %v1285, %v1281
          %v1518 = vpack.c.b16 %v1286, %v1282
          %v1519 = vpack.c.b16 %v1287, %v1283
          %v1520 = vpack.c.b16 %v1288, %v1284
          %v1521 = vpack.c.b16 %v1293, %v1289
          %v1522 = vpack.c.b16 %v1294, %v1290
          %v1523 = vpack.c.b16 %v1295, %v1291
          %v1524 = vpack.c.b16 %v1296, %v1292
          %v1525 = vpack.c.b16 %v1301, %v1297
          %v1526 = vpack.c.b16 %v1302, %v1298
          %v1527 = vpack.c.b16 %v1303, %v1299
          %v1528 = vpack.c.b16 %v1304, %v1300
          %v1529 = vpack.c.b16 %v1309, %v1305
          %v1530 = vpack.c.b16 %v1310, %v1306
          %v1531 = vpack.c.b16 %v1311, %v1307
          %v1532 = vpack.c.b16 %v1312, %v1308
          %v1533 = vpack.c.b16 %v1317, %v1313
          %v1534 = vpack.c.b16 %v1318, %v1314
          %v1535 = vpack.c.b16 %v1319, %v1315
          %v1536 = vpack.c.b16 %v1320, %v1316
          %v1537 = vpack.c.b16 %v1325, %v1321
          %v1538 = vpack.c.b16 %v1326, %v1322
          %v1539 = vpack.c.b16 %v1327, %v1323
          %v1540 = vpack.c.b16 %v1328, %v1324
          %v1541 = vpack.c.b16 %v1333, %v1329
          %v1542 = vpack.c.b16 %v1334, %v1330
          %v1543 = vpack.c.b16 %v1335, %v1331
          %v1544 = vpack.c.b16 %v1336, %v1332
          %v1545 = vpack.c.b16 %v1341, %v1337
          %v1546 = vpack.c.b16 %v1342, %v1338
          %v1547 = vpack.c.b16 %v1343, %v1339
          %v1548 = vpack.c.b16 %v1344, %v1340
          %v1549 = vpack.c.b16 %v1349, %v1345
          %v1550 = vpack.c.b16 %v1350, %v1346
          %v1551 = vpack.c.b16 %v1351, %v1347
          %v1552 = vpack.c.b16 %v1352, %v1348
          %v1553 = vpack.c.b16 %v1357, %v1353
          %v1554 = vpack.c.b16 %v1358, %v1354
          %v1555 = vpack.c.b16 %v1359, %v1355
          %v1556 = vpack.c.b16 %v1360, %v1356
          %v1557 = vpack.c.b16 %v1365, %v1361
          %v1558 = vpack.c.b16 %v1366, %v1362
          %v1559 = vpack.c.b16 %v1367, %v1363
          %v1560 = vpack.c.b16 %v1368, %v1364
          %v1561 = vpack.c.b16 %v1373, %v1369
          %v1562 = vpack.c.b16 %v1374, %v1370
          %v1563 = vpack.c.b16 %v1375, %v1371
          %v1564 = vpack.c.b16 %v1376, %v1372
          %v1565 = vpack.c.b16 %v1381, %v1377
          %v1566 = vpack.c.b16 %v1382, %v1378
          %v1567 = vpack.c.b16 %v1383, %v1379
          %v1568 = vpack.c.b16 %v1384, %v1380
          %v1569 = vpack.c.b16 %v1389, %v1385
          %v1570 = vpack.c.b16 %v1390, %v1386
          %v1571 = vpack.c.b16 %v1391, %v1387
          %v1572 = vpack.c.b16 %v1392, %v1388
          %v1573 = vpack.c.b16 %v1397, %v1393
          %v1574 = vpack.c.b16 %v1398, %v1394
          %v1575 = vpack.c.b16 %v1399, %v1395
          %v1576 = vpack.c.b16 %v1400, %v1396
          %v1577 = vpack.c.b16 %v1405, %v1401
          %v1578 = vpack.c.b16 %v1406, %v1402
          %v1579 = vpack.c.b16 %v1407, %v1403
          %v1580 = vpack.c.b16 %v1408, %v1404
          %v1581 = vpack.c.b16 %v1413, %v1409
          %v1582 = vpack.c.b16 %v1414, %v1410
          %v1583 = vpack.c.b16 %v1415, %v1411
          %v1584 = vpack.c.b16 %v1416, %v1412
          %v1585 = vpack.c.b16 %v1421, %v1417
          %v1586 = vpack.c.b16 %v1422, %v1418
          %v1587 = vpack.c.b16 %v1423, %v1419
          %v1588 = vpack.c.b16 %v1424, %v1420
          %v1589 = vpack.c.b16 %v1429, %v1425
          %v1590 = vpack.c.b16 %v1430, %v1426
          %v1591 = vpack.c.b16 %v1431, %v1427
          %v1592 = vpack.c.b16 %v1432, %v1428
          %v1593 = vpack.c.b16 %v1437, %v1433
          %v1594 = vpack.c.b16 %v1438, %v1434
          %v1595 = vpack.c.b16 %v1439, %v1435
          %v1596 = vpack.c.b16 %v1440, %v1436
          %v1597 = vpack.c.b16 %v1445, %v1441
          %v1598 = vpack.c.b16 %v1446, %v1442
          %v1599 = vpack.c.b16 %v1447, %v1443
          %v1600 = vpack.c.b16 %v1448, %v1444
          %v1601 = vpack.c.b16 %v1453, %v1449
          %v1602 = vpack.c.b16 %v1454, %v1450
          %v1603 = vpack.c.b16 %v1455, %v1451
          %v1604 = vpack.c.b16 %v1456, %v1452
          %v1605 = vpack.c.b16 %v1461, %v1457
          %v1606 = vpack.c.b16 %v1462, %v1458
          %v1607 = vpack.c.b16 %v1463, %v1459
          %v1608 = vpack.c.b16 %v1464, %v1460
          %v1609 = vpack.c.b16 %v1469, %v1465
          %v1610 = vpack.c.b16 %v1470, %v1466
          %v1611 = vpack.c.b16 %v1471, %v1467
          %v1612 = vpack.c.b16 %v1472, %v1468
          %v1613 = vpack.c.b16 %v1477, %v1473
          %v1614 = vpack.c.b16 %v1478, %v1474
          %v1615 = vpack.c.b16 %v1479, %v1475
          %v1616 = vpack.c.b16 %v1480, %v1476
          %v1617 = vpack.c.b16 %v1485, %v1481
          %v1618 = vpack.c.b16 %v1486, %v1482
          %v1619 = vpack.c.b16 %v1487, %v1483
          %v1620 = vpack.c.b16 %v1488, %v1484
          %v1621 = vpack.c.b16 %v1493, %v1489
          %v1622 = vpack.c.b16 %v1494, %v1490
          %v1623 = vpack.c.b16 %v1495, %v1491
          %v1624 = vpack.c.b16 %v1496, %v1492
          %1753 = vmatprep.subr.bf16.mxu0 %v1498
          %1754 = vmatpush1.bf16.msra.mxu0 %v1497
          %1755 = vmatprep.subr.bf16.mxu0 %v1502
          %1756 = vmatpush1.bf16.msra.mxu0 %v1501
          %1757 = vmatprep.subr.bf16.mxu0 %v1506
          %1758 = vmatpush1.bf16.msra.mxu0 %v1505
          %1759 = vmatprep.subr.bf16.mxu0 %v1510
          %1760 = vmatpush1.bf16.msra.mxu0 %v1509
          %1761 = vmatprep.subr.bf16.mxu0 %v1514
          %1762 = vmatpush1.bf16.msra.mxu0 %v1513
          %1763 = vmatprep.subr.bf16.mxu0 %v1518
          %1764 = vmatpush1.bf16.msra.mxu0 %v1517
          %1765 = vmatprep.subr.bf16.mxu0 %v1522
          %1766 = vmatpush1.bf16.msra.mxu0 %v1521
          %1767 = vmatprep.subr.bf16.mxu0 %v1526
          %1768 = vmatpush1.bf16.msra.mxu0 %v1525
          %1769 = vmatprep.subr.bf16.mxu0 %v1530
          %1770 = vmatpush1.bf16.msra.mxu0 %v1529
          %1771 = vmatprep.subr.bf16.mxu0 %v1534
          %1772 = vmatpush1.bf16.msra.mxu0 %v1533
          %1773 = vmatprep.subr.bf16.mxu0 %v1538
          %1774 = vmatpush1.bf16.msra.mxu0 %v1537
          %1775 = vmatprep.subr.bf16.mxu0 %v1542
          %1776 = vmatpush1.bf16.msra.mxu0 %v1541
          %1777 = vmatprep.subr.bf16.mxu0 %v1546
          %1778 = vmatpush1.bf16.msra.mxu0 %v1545
          %1779 = vmatprep.subr.bf16.mxu0 %v1550
          %1780 = vmatpush1.bf16.msra.mxu0 %v1549
          %1781 = vmatprep.subr.bf16.mxu0 %v1554
          %1782 = vmatpush1.bf16.msra.mxu0 %v1553
          %1783 = vmatprep.subr.bf16.mxu0 %v1558
          %1784 = vmatpush1.bf16.msra.mxu0 %v1557
          %1785 = vmatprep.mubr.bf16.mxu0 %v960
          %1786 = vmatmul.mubr.bf16.gmra.mrb[0].mxu0 %v959
          %v1787 = vpop.f32.mrb[0].mxu0
          %v1788 = vadd.f32 %v1096, %v1787
          %v1789 = vpop.f32.mrb[0].mxu0
          %v1790 = vadd.f32 %v1100, %v1789
          %v1791 = vpop.f32.mrb[0].mxu0
          %v1792 = vadd.f32 %v1096, %v1791
          %v1793 = vpop.f32.mrb[0].mxu0
          %v1794 = vadd.f32 %v1100, %v1793
          %1795 = vdwg.mxu0
          %1796 = vmatprep.subr.bf16.mxu0 %v1562
          %1797 = vmatpush1.bf16.msra.mxu0 %v1561
          %1798 = vmatprep.subr.bf16.mxu0 %v1566
          %1799 = vmatpush1.bf16.msra.mxu0 %v1565
          %1800 = vmatprep.subr.bf16.mxu0 %v1570
          %1801 = vmatpush1.bf16.msra.mxu0 %v1569
          %1802 = vmatprep.subr.bf16.mxu0 %v1574
          %1803 = vmatpush1.bf16.msra.mxu0 %v1573
          %1804 = vmatprep.subr.bf16.mxu0 %v1578
          %1805 = vmatpush1.bf16.msra.mxu0 %v1577
          %1806 = vmatprep.subr.bf16.mxu0 %v1582
          %1807 = vmatpush1.bf16.msra.mxu0 %v1581
          %1808 = vmatprep.subr.bf16.mxu0 %v1586
          %1809 = vmatpush1.bf16.msra.mxu0 %v1585
          %1810 = vmatprep.subr.bf16.mxu0 %v1590
          %1811 = vmatpush1.bf16.msra.mxu0 %v1589
          %1812 = vmatprep.subr.bf16.mxu0 %v1594
          %1813 = vmatpush1.bf16.msra.mxu0 %v1593
          %1814 = vmatprep.subr.bf16.mxu0 %v1598
          %1815 = vmatpush1.bf16.msra.mxu0 %v1597
          %1816 = vmatprep.subr.bf16.mxu0 %v1602
          %1817 = vmatpush1.bf16.msra.mxu0 %v1601
          %1818 = vmatprep.subr.bf16.mxu0 %v1606
          %1819 = vmatpush1.bf16.msra.mxu0 %v1605
          %1820 = vmatprep.subr.bf16.mxu0 %v1610
          %1821 = vmatpush1.bf16.msra.mxu0 %v1609
          %1822 = vmatprep.subr.bf16.mxu0 %v1614
          %1823 = vmatpush1.bf16.msra.mxu0 %v1613
          %1824 = vmatprep.subr.bf16.mxu0 %v1618
          %1825 = vmatpush1.bf16.msra.mxu0 %v1617
          %1826 = vmatprep.subr.bf16.mxu0 %v1622
          %1827 = vmatpush1.bf16.msra.mxu0 %v1621
          %1828 = vmatprep.mubr.bf16.mxu0 %v962
          %1829 = vmatmul.mubr.bf16.gmra.mrb[0].mxu0 %v961
          %v1830 = vpop.f32.mrb[0].mxu0
          %v1831 = vadd.f32 %v1788, %v1830
          %v1832 = vpop.f32.mrb[0].mxu0
          %v1833 = vadd.f32 %v1790, %v1832
          %v1834 = vpop.f32.mrb[0].mxu0
          %v1835 = vadd.f32 %v1792, %v1834
          %v1836 = vpop.f32.mrb[0].mxu0
          %v1837 = vadd.f32 %v1794, %v1836
          %1838 = vdwg.mxu0
          %1839 = vmatprep.subr.bf16.mxu0 %v1500
          %1840 = vmatpush1.bf16.msra.mxu0 %v1499
          %1841 = vmatprep.subr.bf16.mxu0 %v1504
          %1842 = vmatpush1.bf16.msra.mxu0 %v1503
          %1843 = vmatprep.subr.bf16.mxu0 %v1508
          %1844 = vmatpush1.bf16.msra.mxu0 %v1507
          %1845 = vmatprep.subr.bf16.mxu0 %v1512
          %1846 = vmatpush1.bf16.msra.mxu0 %v1511
          %1847 = vmatprep.subr.bf16.mxu0 %v1516
          %1848 = vmatpush1.bf16.msra.mxu0 %v1515
          %1849 = vmatprep.subr.bf16.mxu0 %v1520
          %1850 = vmatpush1.bf16.msra.mxu0 %v1519
          %1851 = vmatprep.subr.bf16.mxu0 %v1524
          %1852 = vmatpush1.bf16.msra.mxu0 %v1523
          %1853 = vmatprep.subr.bf16.mxu0 %v1528
          %1854 = vmatpush1.bf16.msra.mxu0 %v1527
          %1855 = vmatprep.subr.bf16.mxu0 %v1532
          %1856 = vmatpush1.bf16.msra.mxu0 %v1531
          %1857 = vmatprep.subr.bf16.mxu0 %v1536
          %1858 = vmatpush1.bf16.msra.mxu0 %v1535
          %1859 = vmatprep.subr.bf16.mxu0 %v1540
          %1860 = vmatpush1.bf16.msra.mxu0 %v1539
          %1861 = vmatprep.subr.bf16.mxu0 %v1544
          %1862 = vmatpush1.bf16.msra.mxu0 %v1543
          %1863 = vmatprep.subr.bf16.mxu0 %v1548
          %1864 = vmatpush1.bf16.msra.mxu0 %v1547
          %1865 = vmatprep.subr.bf16.mxu0 %v1552
          %1866 = vmatpush1.bf16.msra.mxu0 %v1551
          %1867 = vmatprep.subr.bf16.mxu0 %v1556
          %1868 = vmatpush1.bf16.msra.mxu0 %v1555
          %1869 = vmatprep.subr.bf16.mxu0 %v1560
          %1870 = vmatpush1.bf16.msra.mxu0 %v1559
          %1871 = vmatprep.mubr.bf16.mxu0 %v960
          %1872 = vmatmul.mubr.bf16.gmra.mrb[0].mxu0 %v959
          %v1873 = vpop.f32.mrb[0].mxu0
          %v1874 = vadd.f32 %v1104, %v1873
          %v1875 = vpop.f32.mrb[0].mxu0
          %v1876 = vadd.f32 %v1108, %v1875
          %v1877 = vpop.f32.mrb[0].mxu0
          %v1878 = vadd.f32 %v1104, %v1877
          %v1879 = vpop.f32.mrb[0].mxu0
          %v1880 = vadd.f32 %v1108, %v1879
          %1881 = vdwg.mxu0
          %1882 = vmatprep.subr.bf16.mxu0 %v1564
          %1883 = vmatpush1.bf16.msra.mxu0 %v1563
          %1884 = vmatprep.subr.bf16.mxu0 %v1568
          %1885 = vmatpush1.bf16.msra.mxu0 %v1567
          %1886 = vmatprep.subr.bf16.mxu0 %v1572
          %1887 = vmatpush1.bf16.msra.mxu0 %v1571
          %1888 = vmatprep.subr.bf16.mxu0 %v1576
          %1889 = vmatpush1.bf16.msra.mxu0 %v1575
          %1890 = vmatprep.subr.bf16.mxu0 %v1580
          %1891 = vmatpush1.bf16.msra.mxu0 %v1579
          %1892 = vmatprep.subr.bf16.mxu0 %v1584
          %1893 = vmatpush1.bf16.msra.mxu0 %v1583
          %1894 = vmatprep.subr.bf16.mxu0 %v1588
          %1895 = vmatpush1.bf16.msra.mxu0 %v1587
          %1896 = vmatprep.subr.bf16.mxu0 %v1592
          %1897 = vmatpush1.bf16.msra.mxu0 %v1591
          %1898 = vmatprep.subr.bf16.mxu0 %v1596
          %1899 = vmatpush1.bf16.msra.mxu0 %v1595
          %1900 = vmatprep.subr.bf16.mxu0 %v1600
          %1901 = vmatpush1.bf16.msra.mxu0 %v1599
          %1902 = vmatprep.subr.bf16.mxu0 %v1604
          %1903 = vmatpush1.bf16.msra.mxu0 %v1603
          %1904 = vmatprep.subr.bf16.mxu0 %v1608
          %1905 = vmatpush1.bf16.msra.mxu0 %v1607
          %1906 = vmatprep.subr.bf16.mxu0 %v1612
          %1907 = vmatpush1.bf16.msra.mxu0 %v1611
          %1908 = vmatprep.subr.bf16.mxu0 %v1616
          %1909 = vmatpush1.bf16.msra.mxu0 %v1615
          %1910 = vmatprep.subr.bf16.mxu0 %v1620
          %1911 = vmatpush1.bf16.msra.mxu0 %v1619
          %1912 = vmatprep.subr.bf16.mxu0 %v1624
          %1913 = vmatpush1.bf16.msra.mxu0 %v1623
          %1914 = vmatprep.mubr.bf16.mxu0 %v962
          %1915 = vmatmul.mubr.bf16.gmra.mrb[0].mxu0 %v961
          %v1916 = vpop.f32.mrb[0].mxu0
          %v1917 = vadd.f32 %v1874, %v1916
          %v1918 = vpop.f32.mrb[0].mxu0
          %v1919 = vadd.f32 %v1876, %v1918
          %v1920 = vpop.f32.mrb[0].mxu0
          %v1921 = vadd.f32 %v1878, %v1920
          %v1922 = vpop.f32.mrb[0].mxu0
          %v1923 = vadd.f32 %v1880, %v1922
          %1924 = vdwg.mxu0
          %v1925 = vlaneseq
          %v1926 = vshrl.u32 %v1925, 7
          %v1927 = vadd.s32 %v1926, 8
          %vm1928 = vcmp.lt.s32.totalorder %v1926, 2
          %vm1929 = vcmp.lt.s32.totalorder %v1927, 2
          %v1930 = vsel %vm1928, %v1831, 0.0
          %v1931 = vsel %vm1928, %v1833, 0.0
          %v1932 = vsel %vm1928, %v1917, 0.0
          %v1933 = vsel %vm1928, %v1919, 0.0
          %v1934 = vsel %vm1929, %v1835, 0.0
          %v1935 = vsel %vm1929, %v1837, 0.0
          %v1936 = vsel %vm1929, %v1921, 0.0
          %v1937 = vsel %vm1929, %v1923, 0.0
          %v1938 = vadd.f32 %v1930, %v1934
          %v1939 = vrot.slane %v1938, 4
          %v1940 = vadd.f32 %v1938, %v1939
          %v1941 = vrot.slane %v1940, 2
          %v1942 = vadd.f32 %v1940, %v1941
          %v1943 = vrot.slane %v1942, 1
          %v1944 = vadd.f32 %v1942, %v1943
          %v1945 = vadd.f32 %v1931, %v1935
          %v1946 = vrot.slane %v1945, 4
          %v1947 = vadd.f32 %v1945, %v1946
          %v1948 = vrot.slane %v1947, 2
          %v1949 = vadd.f32 %v1947, %v1948
          %v1950 = vrot.slane %v1949, 1
          %v1951 = vadd.f32 %v1949, %v1950
          %v1952 = vadd.f32 %v1932, %v1936
          %v1953 = vrot.slane %v1952, 4
          %v1954 = vadd.f32 %v1952, %v1953
          %v1955 = vrot.slane %v1954, 2
          %v1956 = vadd.f32 %v1954, %v1955
          %v1957 = vrot.slane %v1956, 1
          %v1958 = vadd.f32 %v1956, %v1957
          %v1959 = vadd.f32 %v1933, %v1937
          %v1960 = vrot.slane %v1959, 4
          %v1961 = vadd.f32 %v1959, %v1960
          %v1962 = vrot.slane %v1961, 2
          %v1963 = vadd.f32 %v1961, %v1962
          %v1964 = vrot.slane %v1963, 1
          %v1965 = vadd.f32 %v1963, %v1964
          %v1966 = vmul.f32 %v1944, 0.5
          %v1967 = vmul.f32 %v1951, 0.5
          %v1968 = vmul.f32 %v1958, 0.5
          %v1969 = vmul.f32 %v1965, 0.5
          %v1970 = vmul.f32 %v1930, %v1930
          %v1971 = vmul.f32 %v1931, %v1931
          %v1972 = vmul.f32 %v1932, %v1932
          %v1973 = vmul.f32 %v1933, %v1933
          %v1974 = vmul.f32 %v1934, %v1934
          %v1975 = vmul.f32 %v1935, %v1935
          %v1976 = vmul.f32 %v1936, %v1936
          %v1977 = vmul.f32 %v1937, %v1937
          %v1978 = vadd.f32 %v1970, %v1974
          %v1979 = vrot.slane %v1978, 4
          %v1980 = vadd.f32 %v1978, %v1979
          %v1981 = vrot.slane %v1980, 2
          %v1982 = vadd.f32 %v1980, %v1981
          %v1983 = vrot.slane %v1982, 1
          %v1984 = vadd.f32 %v1982, %v1983
          %v1985 = vadd.f32 %v1971, %v1975
          %v1986 = vrot.slane %v1985, 4
          %v1987 = vadd.f32 %v1985, %v1986
          %v1988 = vrot.slane %v1987, 2
          %v1989 = vadd.f32 %v1987, %v1988
          %v1990 = vrot.slane %v1989, 1
          %v1991 = vadd.f32 %v1989, %v1990
          %v1992 = vadd.f32 %v1972, %v1976
          %v1993 = vrot.slane %v1992, 4
          %v1994 = vadd.f32 %v1992, %v1993
          %v1995 = vrot.slane %v1994, 2
          %v1996 = vadd.f32 %v1994, %v1995
          %v1997 = vrot.slane %v1996, 1
          %v1998 = vadd.f32 %v1996, %v1997
          %v1999 = vadd.f32 %v1973, %v1977
          %v2000 = vrot.slane %v1999, 4
          %v2001 = vadd.f32 %v1999, %v2000
          %v2002 = vrot.slane %v2001, 2
          %v2003 = vadd.f32 %v2001, %v2002
          %v2004 = vrot.slane %v2003, 1
          %v2005 = vadd.f32 %v2003, %v2004
          %v2006 = vmul.f32 %v1984, 0.5
          %v2007 = vmul.f32 %v1991, 0.5
          %v2008 = vmul.f32 %v1998, 0.5
          %v2009 = vmul.f32 %v2005, 0.5
          %v2010 = vmul.f32 %v1966, %v1966
          %v2011 = vmul.f32 %v1967, %v1967
          %v2012 = vmul.f32 %v1968, %v1968
          %v2013 = vmul.f32 %v1969, %v1969
          %v2014 = vsub.f32 %v2006, %v2010
          %v2015 = vsub.f32 %v2007, %v2011
          %v2016 = vsub.f32 %v2008, %v2012
          %v2017 = vsub.f32 %v2009, %v2013
          %v2018 = vmax.f32 %v2014, 0.0
          %v2019 = vmax.f32 %v2015, 0.0
          %v2020 = vmax.f32 %v2016, 0.0
          %v2021 = vmax.f32 %v2017, 0.0
          %v2022 = vld [vmem:[%s5] sm:$0xf]
          %v2023 = vadd.f32 %v2018, 1e-05
          %v2024 = vadd.f32 %v2019, 1e-05
          %v2025 = vadd.f32 %v2020, 1e-05
          %v2026 = vadd.f32 %v2021, 1e-05
          %v2027 = vrsqrt.pop %v2023
          %v2028 = vrsqrt.pop %v2024
          %v2029 = vrsqrt.pop %v2025
          %v2030 = vrsqrt.pop %v2026
          %v2035 = vcombine.low %v2027, %v2028
          %v2036 = vcombine.low %v2029, %v2030
          %v2038 = vunpack.c.l.s4 1966171168
          %v2039 = vunpack.c.0.s8 %v2038
          %v2040 = vlaneseq
          %v2041 = vshrl.u32 %v2040, 7
          %v2042 = vsub.s32 %v2039, %v2041
          %v2043 = vrot.slane %v2035, %v2042
          %v2045 = vunpack.c.l.s4 1966171168
          %v2046 = vunpack.c.0.s8 %v2045
          %v2047 = vlaneseq
          %v2048 = vshrl.u32 %v2047, 7
          %v2049 = vsub.s32 %v2046, %v2048
          %v2050 = vrot.slane %v2036, %v2049
          %v2051 = vcombine.low %v2043, %v2050
          %v2053 = vunpack.c.l.s4 1966171168
          %v2054 = vunpack.c.0.s8 %v2053
          %v2055 = vlaneseq
          %v2056 = vshrl.u32 %v2055, 7
          %v2057 = vsub.s32 %v2054, %v2056
          %v2058 = vrot.slane %v2051, %v2057
          %v2060 = vmul.f32 %v2022, %v2058
          %v2061 = vld [vmem:[%s6] sm:$0xf]
          %v2063 = vlaneseq
          %v2064 = vshrl.u32 %v2063, 7
          %v2065 = vsub.s32 0, %v2064
          %v2066 = vrot.slane %v2060, %v2065
          %v2067 = vlaneseq
          %v2068 = vshrl.u32 %v2067, 7
          %v2069 = vsub.s32 1, %v2068
          %v2070 = vrot.slane %v2060, %v2069
          %v2071 = vlaneseq
          %v2072 = vshrl.u32 %v2071, 7
          %v2073 = vsub.s32 2, %v2072
          %v2074 = vrot.slane %v2060, %v2073
          %v2075 = vlaneseq
          %v2076 = vshrl.u32 %v2075, 7
          %v2077 = vsub.s32 3, %v2076
          %v2078 = vrot.slane %v2060, %v2077
          %v2083 = vmul.f32 %v1966, %v2066
          %v2084 = vmul.f32 %v1967, %v2070
          %v2085 = vmul.f32 %v1968, %v2074
          %v2086 = vmul.f32 %v1969, %v2078
          %v2091 = vcombine.low %v2083, %v2084
          %v2092 = vcombine.low %v2085, %v2086
          %v2094 = vunpack.c.l.s4 1966171168
          %v2095 = vunpack.c.0.s8 %v2094
          %v2096 = vlaneseq
          %v2097 = vshrl.u32 %v2096, 7
          %v2098 = vsub.s32 %v2095, %v2097
          %v2099 = vrot.slane %v2091, %v2098
          %v2101 = vunpack.c.l.s4 1966171168
          %v2102 = vunpack.c.0.s8 %v2101
          %v2103 = vlaneseq
          %v2104 = vshrl.u32 %v2103, 7
          %v2105 = vsub.s32 %v2102, %v2104
          %v2106 = vrot.slane %v2092, %v2105
          %v2107 = vcombine.low %v2099, %v2106
          %v2109 = vunpack.c.l.s4 1966171168
          %v2110 = vunpack.c.0.s8 %v2109
          %v2111 = vlaneseq
          %v2112 = vshrl.u32 %v2111, 7
          %v2113 = vsub.s32 %v2110, %v2112
          %v2114 = vrot.slane %v2107, %v2113
          %v2116 = vsub.f32 %v2061, %v2114
          %v2117 = vmul.f32 %v1831, %v2066
          %v2118 = vmul.f32 %v1833, %v2070
          %v2119 = vmul.f32 %v1917, %v2074
          %v2120 = vmul.f32 %v1919, %v2078
          %v2121 = vmul.f32 %v1835, %v2066
          %v2122 = vmul.f32 %v1837, %v2070
          %v2123 = vmul.f32 %v1921, %v2074
          %v2124 = vmul.f32 %v1923, %v2078
          %v2126 = vlaneseq
          %v2127 = vshrl.u32 %v2126, 7
          %v2128 = vsub.s32 0, %v2127
          %v2129 = vrot.slane %v2116, %v2128
          %v2130 = vlaneseq
          %v2131 = vshrl.u32 %v2130, 7
          %v2132 = vsub.s32 1, %v2131
          %v2133 = vrot.slane %v2116, %v2132
          %v2134 = vlaneseq
          %v2135 = vshrl.u32 %v2134, 7
          %v2136 = vsub.s32 2, %v2135
          %v2137 = vrot.slane %v2116, %v2136
          %v2138 = vlaneseq
          %v2139 = vshrl.u32 %v2138, 7
          %v2140 = vsub.s32 3, %v2139
          %v2141 = vrot.slane %v2116, %v2140
          %v2146 = vadd.f32 %v2117, %v2129
          %v2147 = vadd.f32 %v2118, %v2133
          %v2148 = vadd.f32 %v2119, %v2137
          %v2149 = vadd.f32 %v2120, %v2141
          %v2150 = vadd.f32 %v2121, %v2129
          %v2151 = vadd.f32 %v2122, %v2133
          %v2152 = vadd.f32 %v2123, %v2137
          %v2153 = vadd.f32 %v2124, %v2141
          %vm2154 = vcmp.gt.f32.partialorder %v2146, 0.0
          %vm2155 = vcmp.gt.f32.partialorder %v2147, 0.0
          %vm2156 = vcmp.gt.f32.partialorder %v2148, 0.0
          %vm2157 = vcmp.gt.f32.partialorder %v2149, 0.0
          %vm2158 = vcmp.gt.f32.partialorder %v2150, 0.0
          %vm2159 = vcmp.gt.f32.partialorder %v2151, 0.0
          %vm2160 = vcmp.gt.f32.partialorder %v2152, 0.0
          %vm2161 = vcmp.gt.f32.partialorder %v2153, 0.0
          %v2162 = vmul.f32 %v2146, 0.01
          %v2163 = vmul.f32 %v2147, 0.01
          %v2164 = vmul.f32 %v2148, 0.01
          %v2165 = vmul.f32 %v2149, 0.01
          %v2166 = vmul.f32 %v2150, 0.01
          %v2167 = vmul.f32 %v2151, 0.01
          %v2168 = vmul.f32 %v2152, 0.01
          %v2169 = vmul.f32 %v2153, 0.01
          %v2170 = vsel %vm2154, %v2146, %v2162
          %v2171 = vsel %vm2155, %v2147, %v2163
          %v2172 = vsel %vm2156, %v2148, %v2164
          %v2173 = vsel %vm2157, %v2149, %v2165
          %v2174 = vsel %vm2158, %v2150, %v2166
          %v2175 = vsel %vm2159, %v2151, %v2167
          %v2176 = vsel %vm2160, %v2152, %v2168
          %v2177 = vsel %vm2161, %v2153, %v2169
          %v2178 = vpack.c.bf16 %v2174, %v2170
          %v2179 = vpack.c.bf16 %v2175, %v2171
          %v2180 = vpack.c.bf16 %v2176, %v2172
          %v2181 = vpack.c.bf16 %v2177, %v2173
          %2182 = vst [vmem:[#allocation2] sm:$0xff] %v2178
          %2183 = vst [vmem:[#allocation2 + $0x8] sm:$0xff] %v2179
          %2184 = vst [vmem:[#allocation2 + $0x10] sm:$0xff] %v2180
          %2185 = vst [vmem:[#allocation2 + $0x18] sm:$0xff] %v2181
        $region83: #{decoder_forward.1} parent=74 // pred_fallthru
          _
        %v2186 = vld [vmem:[#allocation2] sm:$0xff]
        %v2187 = vld [vmem:[#allocation2 + $0x8] sm:$0xff]
        %v2188 = vld [vmem:[#allocation2 + $0x10] sm:$0xff]
        %v2189 = vld [vmem:[#allocation2 + $0x18] sm:$0xff]
        %v2190 = vld [vmem:[%s579] sm:$0xff]
        %v2191 = vld [vmem:[%s579 + $0x8] sm:$0xff]
        %v2192 = vld [vmem:[%s579 + $0x10] sm:$0xff]
        %v2193 = vld [vmem:[%s579 + $0x18] sm:$0xff]
        %v2194 = vld [vmem:[%s579 + $0x20] sm:$0xff]
        %v2195 = vld [vmem:[%s579 + $0x28] sm:$0xff]
        %v2196 = vld [vmem:[%s579 + $0x30] sm:$0xff]
        %v2197 = vld [vmem:[%s579 + $0x38] sm:$0xff]
        %v2198 = vld [vmem:[%s579 + $0x40] sm:$0xff]
        %v2199 = vld [vmem:[%s579 + $0x48] sm:$0xff]
        %v2200 = vld [vmem:[%s579 + $0x50] sm:$0xff]
        %v2201 = vld [vmem:[%s579 + $0x58] sm:$0xff]
        %v2202 = vld [vmem:[%s579 + $0x60] sm:$0xff]
        %v2203 = vld [vmem:[%s579 + $0x68] sm:$0xff]
        %v2204 = vld [vmem:[%s579 + $0x70] sm:$0xff]
        %v2205 = vld [vmem:[%s579 + $0x78] sm:$0xff]
        %v2206 = vld [vmem:[%s579 + $0x80] sm:$0xff]
        %v2207 = vld [vmem:[%s579 + $0x88] sm:$0xff]
        %v2208 = vld [vmem:[%s579 + $0x90] sm:$0xff]
        %v2209 = vld [vmem:[%s579 + $0x98] sm:$0xff]
        %v2210 = vld [vmem:[%s579 + $0xa0] sm:$0xff]
        %v2211 = vld [vmem:[%s579 + $0xa8] sm:$0xff]
        %v2212 = vld [vmem:[%s579 + $0xb0] sm:$0xff]
        %v2213 = vld [vmem:[%s579 + $0xb8] sm:$0xff]
        %v2214 = vld [vmem:[%s579 + $0xc0] sm:$0xff]
        %v2215 = vld [vmem:[%s579 + $0xc8] sm:$0xff]
        %v2216 = vld [vmem:[%s579 + $0xd0] sm:$0xff]
        %v2217 = vld [vmem:[%s579 + $0xd8] sm:$0xff]
        %v2218 = vld [vmem:[%s579 + $0xe0] sm:$0xff]
        %v2219 = vld [vmem:[%s579 + $0xe8] sm:$0xff]
        %v2220 = vld [vmem:[%s579 + $0xf0] sm:$0xff]
        %v2221 = vld [vmem:[%s579 + $0xf8] sm:$0xff]
        %v2222 = vld [vmem:[%s579 + $0x100] sm:$0xff]
        %v2223 = vld [vmem:[%s579 + $0x108] sm:$0xff]
        %v2224 = vld [vmem:[%s579 + $0x110] sm:$0xff]
        %v2225 = vld [vmem:[%s579 + $0x118] sm:$0xff]
        %v2226 = vld [vmem:[%s579 + $0x120] sm:$0xff]
        %v2227 = vld [vmem:[%s579 + $0x128] sm:$0xff]
        %v2228 = vld [vmem:[%s579 + $0x130] sm:$0xff]
        %v2229 = vld [vmem:[%s579 + $0x138] sm:$0xff]
        %v2230 = vld [vmem:[%s579 + $0x140] sm:$0xff]
        %v2231 = vld [vmem:[%s579 + $0x148] sm:$0xff]
        %v2232 = vld [vmem:[%s579 + $0x150] sm:$0xff]
        %v2233 = vld [vmem:[%s579 + $0x158] sm:$0xff]
        %v2234 = vld [vmem:[%s579 + $0x160] sm:$0xff]
        %v2235 = vld [vmem:[%s579 + $0x168] sm:$0xff]
        %v2236 = vld [vmem:[%s579 + $0x170] sm:$0xff]
        %v2237 = vld [vmem:[%s579 + $0x178] sm:$0xff]
        %v2238 = vld [vmem:[%s579 + $0x180] sm:$0xff]
        %v2239 = vld [vmem:[%s579 + $0x188] sm:$0xff]
        %v2240 = vld [vmem:[%s579 + $0x190] sm:$0xff]
        %v2241 = vld [vmem:[%s579 + $0x198] sm:$0xff]
        %v2242 = vld [vmem:[%s579 + $0x1a0] sm:$0xff]
        %v2243 = vld [vmem:[%s579 + $0x1a8] sm:$0xff]
        %v2244 = vld [vmem:[%s579 + $0x1b0] sm:$0xff]
        %v2245 = vld [vmem:[%s579 + $0x1b8] sm:$0xff]
        %v2246 = vld [vmem:[%s579 + $0x1c0] sm:$0xff]
        %v2247 = vld [vmem:[%s579 + $0x1c8] sm:$0xff]
        %v2248 = vld [vmem:[%s579 + $0x1d0] sm:$0xff]
        %v2249 = vld [vmem:[%s579 + $0x1d8] sm:$0xff]
        %v2250 = vld [vmem:[%s579 + $0x1e0] sm:$0xff]
        %v2251 = vld [vmem:[%s579 + $0x1e8] sm:$0xff]
        %v2252 = vld [vmem:[%s579 + $0x1f0] sm:$0xff]
        %v2253 = vld [vmem:[%s579 + $0x1f8] sm:$0xff]
        %v2254 = vld [vmem:[%s579 + $0x200] sm:$0xff]
        %v2255 = vld [vmem:[%s579 + $0x208] sm:$0xff]
        %v2256 = vld [vmem:[%s579 + $0x210] sm:$0xff]
        %v2257 = vld [vmem:[%s579 + $0x218] sm:$0xff]
        %v2258 = vld [vmem:[%s579 + $0x220] sm:$0xff]
        %v2259 = vld [vmem:[%s579 + $0x228] sm:$0xff]
        %v2260 = vld [vmem:[%s579 + $0x230] sm:$0xff]
        %v2261 = vld [vmem:[%s579 + $0x238] sm:$0xff]
        %v2262 = vld [vmem:[%s579 + $0x240] sm:$0xff]
        %v2263 = vld [vmem:[%s579 + $0x248] sm:$0xff]
        %v2264 = vld [vmem:[%s579 + $0x250] sm:$0xff]
        %v2265 = vld [vmem:[%s579 + $0x258] sm:$0xff]
        %v2266 = vld [vmem:[%s579 + $0x260] sm:$0xff]
        %v2267 = vld [vmem:[%s579 + $0x268] sm:$0xff]
        %v2268 = vld [vmem:[%s579 + $0x270] sm:$0xff]
        %v2269 = vld [vmem:[%s579 + $0x278] sm:$0xff]
        %v2270 = vld [vmem:[%s579 + $0x280] sm:$0xff]
        %v2271 = vld [vmem:[%s579 + $0x288] sm:$0xff]
        %v2272 = vld [vmem:[%s579 + $0x290] sm:$0xff]
        %v2273 = vld [vmem:[%s579 + $0x298] sm:$0xff]
        %v2274 = vld [vmem:[%s579 + $0x2a0] sm:$0xff]
        %v2275 = vld [vmem:[%s579 + $0x2a8] sm:$0xff]
        %v2276 = vld [vmem:[%s579 + $0x2b0] sm:$0xff]
        %v2277 = vld [vmem:[%s579 + $0x2b8] sm:$0xff]
        %v2278 = vld [vmem:[%s579 + $0x2c0] sm:$0xff]
        %v2279 = vld [vmem:[%s579 + $0x2c8] sm:$0xff]
        %v2280 = vld [vmem:[%s579 + $0x2d0] sm:$0xff]
        %v2281 = vld [vmem:[%s579 + $0x2d8] sm:$0xff]
        %v2282 = vld [vmem:[%s579 + $0x2e0] sm:$0xff]
        %v2283 = vld [vmem:[%s579 + $0x2e8] sm:$0xff]
        %v2284 = vld [vmem:[%s579 + $0x2f0] sm:$0xff]
        %v2285 = vld [vmem:[%s579 + $0x2f8] sm:$0xff]
        %v2286 = vld [vmem:[%s579 + $0x300] sm:$0xff]
        %v2287 = vld [vmem:[%s579 + $0x308] sm:$0xff]
        %v2288 = vld [vmem:[%s579 + $0x310] sm:$0xff]
        %v2289 = vld [vmem:[%s579 + $0x318] sm:$0xff]
        %v2290 = vld [vmem:[%s579 + $0x320] sm:$0xff]
        %v2291 = vld [vmem:[%s579 + $0x328] sm:$0xff]
        %v2292 = vld [vmem:[%s579 + $0x330] sm:$0xff]
        %v2293 = vld [vmem:[%s579 + $0x338] sm:$0xff]
        %v2294 = vld [vmem:[%s579 + $0x340] sm:$0xff]
        %v2295 = vld [vmem:[%s579 + $0x348] sm:$0xff]
        %v2296 = vld [vmem:[%s579 + $0x350] sm:$0xff]
        %v2297 = vld [vmem:[%s579 + $0x358] sm:$0xff]
        %v2298 = vld [vmem:[%s579 + $0x360] sm:$0xff]
        %v2299 = vld [vmem:[%s579 + $0x368] sm:$0xff]
        %v2300 = vld [vmem:[%s579 + $0x370] sm:$0xff]
        %v2301 = vld [vmem:[%s579 + $0x378] sm:$0xff]
        %v2302 = vld [vmem:[%s579 + $0x380] sm:$0xff]
        %v2303 = vld [vmem:[%s579 + $0x388] sm:$0xff]
        %v2304 = vld [vmem:[%s579 + $0x390] sm:$0xff]
        %v2305 = vld [vmem:[%s579 + $0x398] sm:$0xff]
        %v2306 = vld [vmem:[%s579 + $0x3a0] sm:$0xff]
        %v2307 = vld [vmem:[%s579 + $0x3a8] sm:$0xff]
        %v2308 = vld [vmem:[%s579 + $0x3b0] sm:$0xff]
        %v2309 = vld [vmem:[%s579 + $0x3b8] sm:$0xff]
        %v2310 = vld [vmem:[%s579 + $0x3c0] sm:$0xff]
        %v2311 = vld [vmem:[%s579 + $0x3c8] sm:$0xff]
        %v2312 = vld [vmem:[%s579 + $0x3d0] sm:$0xff]
        %v2313 = vld [vmem:[%s579 + $0x3d8] sm:$0xff]
        %v2314 = vld [vmem:[%s579 + $0x3e0] sm:$0xff]
        %v2315 = vld [vmem:[%s579 + $0x3e8] sm:$0xff]
        %v2316 = vld [vmem:[%s579 + $0x3f0] sm:$0xff]
        %v2317 = vld [vmem:[%s579 + $0x3f8] sm:$0xff]
        %v2318 = vld [vmem:[%s619] sm:$0xf]
        %v2320 = vlaneseq
        %v2321 = vshrl.u32 %v2320, 7
        %v2322 = vsub.s32 0, %v2321
        %v2323 = vrot.slane %v2318, %v2322
        %v2324 = vlaneseq
        %v2325 = vshrl.u32 %v2324, 7
        %v2326 = vsub.s32 1, %v2325
        %v2327 = vrot.slane %v2318, %v2326
        %v2328 = vlaneseq
        %v2329 = vshrl.u32 %v2328, 7
        %v2330 = vsub.s32 2, %v2329
        %v2331 = vrot.slane %v2318, %v2330
        %v2332 = vlaneseq
        %v2333 = vshrl.u32 %v2332, 7
        %v2334 = vsub.s32 3, %v2333
        %v2335 = vrot.slane %v2318, %v2334
        %v2468 = vunpack.c.l.b16 %v2190
        %v2469 = vunpack.c.h.b16 %v2190
        %v2470 = vunpack.c.l.b16 %v2191
        %v2471 = vunpack.c.h.b16 %v2191
        %v2472 = vunpack.c.l.b16 %v2192
        %v2473 = vunpack.c.h.b16 %v2192
        %v2474 = vunpack.c.l.b16 %v2193
        %v2475 = vunpack.c.h.b16 %v2193
        %v2476 = vunpack.c.l.b16 %v2194
        %v2477 = vunpack.c.h.b16 %v2194
        %v2478 = vunpack.c.l.b16 %v2195
        %v2479 = vunpack.c.h.b16 %v2195
        %v2480 = vunpack.c.l.b16 %v2196
        %v2481 = vunpack.c.h.b16 %v2196
        %v2482 = vunpack.c.l.b16 %v2197
        %v2483 = vunpack.c.h.b16 %v2197
        %v2484 = vunpack.c.l.b16 %v2198
        %v2485 = vunpack.c.h.b16 %v2198
        %v2486 = vunpack.c.l.b16 %v2199
        %v2487 = vunpack.c.h.b16 %v2199
        %v2488 = vunpack.c.l.b16 %v2200
        %v2489 = vunpack.c.h.b16 %v2200
        %v2490 = vunpack.c.l.b16 %v2201
        %v2491 = vunpack.c.h.b16 %v2201
        %v2492 = vunpack.c.l.b16 %v2202
        %v2493 = vunpack.c.h.b16 %v2202
        %v2494 = vunpack.c.l.b16 %v2203
        %v2495 = vunpack.c.h.b16 %v2203
        %v2496 = vunpack.c.l.b16 %v2204
        %v2497 = vunpack.c.h.b16 %v2204
        %v2498 = vunpack.c.l.b16 %v2205
        %v2499 = vunpack.c.h.b16 %v2205
        %v2500 = vunpack.c.l.b16 %v2206
        %v2501 = vunpack.c.h.b16 %v2206
        %v2502 = vunpack.c.l.b16 %v2207
        %v2503 = vunpack.c.h.b16 %v2207
        %v2504 = vunpack.c.l.b16 %v2208
        %v2505 = vunpack.c.h.b16 %v2208
        %v2506 = vunpack.c.l.b16 %v2209
        %v2507 = vunpack.c.h.b16 %v2209
        %v2508 = vunpack.c.l.b16 %v2210
        %v2509 = vunpack.c.h.b16 %v2210
        %v2510 = vunpack.c.l.b16 %v2211
        %v2511 = vunpack.c.h.b16 %v2211
        %v2512 = vunpack.c.l.b16 %v2212
        %v2513 = vunpack.c.h.b16 %v2212
        %v2514 = vunpack.c.l.b16 %v2213
        %v2515 = vunpack.c.h.b16 %v2213
        %v2516 = vunpack.c.l.b16 %v2214
        %v2517 = vunpack.c.h.b16 %v2214
        %v2518 = vunpack.c.l.b16 %v2215
        %v2519 = vunpack.c.h.b16 %v2215
        %v2520 = vunpack.c.l.b16 %v2216
        %v2521 = vunpack.c.h.b16 %v2216
        %v2522 = vunpack.c.l.b16 %v2217
        %v2523 = vunpack.c.h.b16 %v2217
        %v2524 = vunpack.c.l.b16 %v2218
        %v2525 = vunpack.c.h.b16 %v2218
        %v2526 = vunpack.c.l.b16 %v2219
        %v2527 = vunpack.c.h.b16 %v2219
        %v2528 = vunpack.c.l.b16 %v2220
        %v2529 = vunpack.c.h.b16 %v2220
        %v2530 = vunpack.c.l.b16 %v2221
        %v2531 = vunpack.c.h.b16 %v2221
        %v2532 = vunpack.c.l.b16 %v2222
        %v2533 = vunpack.c.h.b16 %v2222
        %v2534 = vunpack.c.l.b16 %v2223
        %v2535 = vunpack.c.h.b16 %v2223
        %v2536 = vunpack.c.l.b16 %v2224
        %v2537 = vunpack.c.h.b16 %v2224
        %v2538 = vunpack.c.l.b16 %v2225
        %v2539 = vunpack.c.h.b16 %v2225
        %v2540 = vunpack.c.l.b16 %v2226
        %v2541 = vunpack.c.h.b16 %v2226
        %v2542 = vunpack.c.l.b16 %v2227
        %v2543 = vunpack.c.h.b16 %v2227
        %v2544 = vunpack.c.l.b16 %v2228
        %v2545 = vunpack.c.h.b16 %v2228
        %v2546 = vunpack.c.l.b16 %v2229
        %v2547 = vunpack.c.h.b16 %v2229
        %v2548 = vunpack.c.l.b16 %v2230
        %v2549 = vunpack.c.h.b16 %v2230
        %v2550 = vunpack.c.l.b16 %v2231
        %v2551 = vunpack.c.h.b16 %v2231
        %v2552 = vunpack.c.l.b16 %v2232
        %v2553 = vunpack.c.h.b16 %v2232
        %v2554 = vunpack.c.l.b16 %v2233
        %v2555 = vunpack.c.h.b16 %v2233
        %v2556 = vunpack.c.l.b16 %v2234
        %v2557 = vunpack.c.h.b16 %v2234
        %v2558 = vunpack.c.l.b16 %v2235
        %v2559 = vunpack.c.h.b16 %v2235
        %v2560 = vunpack.c.l.b16 %v2236
        %v2561 = vunpack.c.h.b16 %v2236
        %v2562 = vunpack.c.l.b16 %v2237
        %v2563 = vunpack.c.h.b16 %v2237
        %v2564 = vunpack.c.l.b16 %v2238
        %v2565 = vunpack.c.h.b16 %v2238
        %v2566 = vunpack.c.l.b16 %v2239
        %v2567 = vunpack.c.h.b16 %v2239
        %v2568 = vunpack.c.l.b16 %v2240
        %v2569 = vunpack.c.h.b16 %v2240
        %v2570 = vunpack.c.l.b16 %v2241
        %v2571 = vunpack.c.h.b16 %v2241
        %v2572 = vunpack.c.l.b16 %v2242
        %v2573 = vunpack.c.h.b16 %v2242
        %v2574 = vunpack.c.l.b16 %v2243
        %v2575 = vunpack.c.h.b16 %v2243
        %v2576 = vunpack.c.l.b16 %v2244
        %v2577 = vunpack.c.h.b16 %v2244
        %v2578 = vunpack.c.l.b16 %v2245
        %v2579 = vunpack.c.h.b16 %v2245
        %v2580 = vunpack.c.l.b16 %v2246
        %v2581 = vunpack.c.h.b16 %v2246
        %v2582 = vunpack.c.l.b16 %v2247
        %v2583 = vunpack.c.h.b16 %v2247
        %v2584 = vunpack.c.l.b16 %v2248
        %v2585 = vunpack.c.h.b16 %v2248
        %v2586 = vunpack.c.l.b16 %v2249
        %v2587 = vunpack.c.h.b16 %v2249
        %v2588 = vunpack.c.l.b16 %v2250
        %v2589 = vunpack.c.h.b16 %v2250
        %v2590 = vunpack.c.l.b16 %v2251
        %v2591 = vunpack.c.h.b16 %v2251
        %v2592 = vunpack.c.l.b16 %v2252
        %v2593 = vunpack.c.h.b16 %v2252
        %v2594 = vunpack.c.l.b16 %v2253
        %v2595 = vunpack.c.h.b16 %v2253
        %v2596 = vunpack.c.l.b16 %v2254
        %v2597 = vunpack.c.h.b16 %v2254
        %v2598 = vunpack.c.l.b16 %v2255
        %v2599 = vunpack.c.h.b16 %v2255
        %v2600 = vunpack.c.l.b16 %v2256
        %v2601 = vunpack.c.h.b16 %v2256
        %v2602 = vunpack.c.l.b16 %v2257
        %v2603 = vunpack.c.h.b16 %v2257
        %v2604 = vunpack.c.l.b16 %v2258
        %v2605 = vunpack.c.h.b16 %v2258
        %v2606 = vunpack.c.l.b16 %v2259
        %v2607 = vunpack.c.h.b16 %v2259
        %v2608 = vunpack.c.l.b16 %v2260
        %v2609 = vunpack.c.h.b16 %v2260
        %v2610 = vunpack.c.l.b16 %v2261
        %v2611 = vunpack.c.h.b16 %v2261
        %v2612 = vunpack.c.l.b16 %v2262
        %v2613 = vunpack.c.h.b16 %v2262
        %v2614 = vunpack.c.l.b16 %v2263
        %v2615 = vunpack.c.h.b16 %v2263
        %v2616 = vunpack.c.l.b16 %v2264
        %v2617 = vunpack.c.h.b16 %v2264
        %v2618 = vunpack.c.l.b16 %v2265
        %v2619 = vunpack.c.h.b16 %v2265
        %v2620 = vunpack.c.l.b16 %v2266
        %v2621 = vunpack.c.h.b16 %v2266
        %v2622 = vunpack.c.l.b16 %v2267
        %v2623 = vunpack.c.h.b16 %v2267
        %v2624 = vunpack.c.l.b16 %v2268
        %v2625 = vunpack.c.h.b16 %v2268
        %v2626 = vunpack.c.l.b16 %v2269
        %v2627 = vunpack.c.h.b16 %v2269
        %v2628 = vunpack.c.l.b16 %v2270
        %v2629 = vunpack.c.h.b16 %v2270
        %v2630 = vunpack.c.l.b16 %v2271
        %v2631 = vunpack.c.h.b16 %v2271
        %v2632 = vunpack.c.l.b16 %v2272
        %v2633 = vunpack.c.h.b16 %v2272
        %v2634 = vunpack.c.l.b16 %v2273
        %v2635 = vunpack.c.h.b16 %v2273
        %v2636 = vunpack.c.l.b16 %v2274
        %v2637 = vunpack.c.h.b16 %v2274
        %v2638 = vunpack.c.l.b16 %v2275
        %v2639 = vunpack.c.h.b16 %v2275
        %v2640 = vunpack.c.l.b16 %v2276
        %v2641 = vunpack.c.h.b16 %v2276
        %v2642 = vunpack.c.l.b16 %v2277
        %v2643 = vunpack.c.h.b16 %v2277
        %v2644 = vunpack.c.l.b16 %v2278
        %v2645 = vunpack.c.h.b16 %v2278
        %v2646 = vunpack.c.l.b16 %v2279
        %v2647 = vunpack.c.h.b16 %v2279
        %v2648 = vunpack.c.l.b16 %v2280
        %v2649 = vunpack.c.h.b16 %v2280
        %v2650 = vunpack.c.l.b16 %v2281
        %v2651 = vunpack.c.h.b16 %v2281
        %v2652 = vunpack.c.l.b16 %v2282
        %v2653 = vunpack.c.h.b16 %v2282
        %v2654 = vunpack.c.l.b16 %v2283
        %v2655 = vunpack.c.h.b16 %v2283
        %v2656 = vunpack.c.l.b16 %v2284
        %v2657 = vunpack.c.h.b16 %v2284
        %v2658 = vunpack.c.l.b16 %v2285
        %v2659 = vunpack.c.h.b16 %v2285
        %v2660 = vunpack.c.l.b16 %v2286
        %v2661 = vunpack.c.h.b16 %v2286
        %v2662 = vunpack.c.l.b16 %v2287
        %v2663 = vunpack.c.h.b16 %v2287
        %v2664 = vunpack.c.l.b16 %v2288
        %v2665 = vunpack.c.h.b16 %v2288
        %v2666 = vunpack.c.l.b16 %v2289
        %v2667 = vunpack.c.h.b16 %v2289
        %v2668 = vunpack.c.l.b16 %v2290
        %v2669 = vunpack.c.h.b16 %v2290
        %v2670 = vunpack.c.l.b16 %v2291
        %v2671 = vunpack.c.h.b16 %v2291
        %v2672 = vunpack.c.l.b16 %v2292
        %v2673 = vunpack.c.h.b16 %v2292
        %v2674 = vunpack.c.l.b16 %v2293
        %v2675 = vunpack.c.h.b16 %v2293
        %v2676 = vunpack.c.l.b16 %v2294
        %v2677 = vunpack.c.h.b16 %v2294
        %v2678 = vunpack.c.l.b16 %v2295
        %v2679 = vunpack.c.h.b16 %v2295
        %v2680 = vunpack.c.l.b16 %v2296
        %v2681 = vunpack.c.h.b16 %v2296
        %v2682 = vunpack.c.l.b16 %v2297
        %v2683 = vunpack.c.h.b16 %v2297
        %v2684 = vunpack.c.l.b16 %v2298
        %v2685 = vunpack.c.h.b16 %v2298
        %v2686 = vunpack.c.l.b16 %v2299
        %v2687 = vunpack.c.h.b16 %v2299
        %v2688 = vunpack.c.l.b16 %v2300
        %v2689 = vunpack.c.h.b16 %v2300
        %v2690 = vunpack.c.l.b16 %v2301
        %v2691 = vunpack.c.h.b16 %v2301
        %v2692 = vunpack.c.l.b16 %v2302
        %v2693 = vunpack.c.h.b16 %v2302
        %v2694 = vunpack.c.l.b16 %v2303
        %v2695 = vunpack.c.h.b16 %v2303
        %v2696 = vunpack.c.l.b16 %v2304
        %v2697 = vunpack.c.h.b16 %v2304
        %v2698 = vunpack.c.l.b16 %v2305
        %v2699 = vunpack.c.h.b16 %v2305
        %v2700 = vunpack.c.l.b16 %v2306
        %v2701 = vunpack.c.h.b16 %v2306
        %v2702 = vunpack.c.l.b16 %v2307
        %v2703 = vunpack.c.h.b16 %v2307
        %v2704 = vunpack.c.l.b16 %v2308
        %v2705 = vunpack.c.h.b16 %v2308
        %v2706 = vunpack.c.l.b16 %v2309
        %v2707 = vunpack.c.h.b16 %v2309
        %v2708 = vunpack.c.l.b16 %v2310
        %v2709 = vunpack.c.h.b16 %v2310
        %v2710 = vunpack.c.l.b16 %v2311
        %v2711 = vunpack.c.h.b16 %v2311
        %v2712 = vunpack.c.l.b16 %v2312
        %v2713 = vunpack.c.h.b16 %v2312
        %v2714 = vunpack.c.l.b16 %v2313
        %v2715 = vunpack.c.h.b16 %v2313
        %v2716 = vunpack.c.l.b16 %v2314
        %v2717 = vunpack.c.h.b16 %v2314
        %v2718 = vunpack.c.l.b16 %v2315
        %v2719 = vunpack.c.h.b16 %v2315
        %v2720 = vunpack.c.l.b16 %v2316
        %v2721 = vunpack.c.h.b16 %v2316
        %v2722 = vunpack.c.l.b16 %v2317
        %v2723 = vunpack.c.h.b16 %v2317
        %v2724 = vpack.c.b16 %v2472, %v2468
        %v2725 = vpack.c.b16 %v2473, %v2469
        %v2726 = vpack.c.b16 %v2474, %v2470
        %v2727 = vpack.c.b16 %v2475, %v2471
        %v2728 = vpack.c.b16 %v2480, %v2476
        %v2729 = vpack.c.b16 %v2481, %v2477
        %v2730 = vpack.c.b16 %v2482, %v2478
        %v2731 = vpack.c.b16 %v2483, %v2479
        %v2732 = vpack.c.b16 %v2488, %v2484
        %v2733 = vpack.c.b16 %v2489, %v2485
        %v2734 = vpack.c.b16 %v2490, %v2486
        %v2735 = vpack.c.b16 %v2491, %v2487
        %v2736 = vpack.c.b16 %v2496, %v2492
        %v2737 = vpack.c.b16 %v2497, %v2493
        %v2738 = vpack.c.b16 %v2498, %v2494
        %v2739 = vpack.c.b16 %v2499, %v2495
        %v2740 = vpack.c.b16 %v2504, %v2500
        %v2741 = vpack.c.b16 %v2505, %v2501
        %v2742 = vpack.c.b16 %v2506, %v2502
        %v2743 = vpack.c.b16 %v2507, %v2503
        %v2744 = vpack.c.b16 %v2512, %v2508
        %v2745 = vpack.c.b16 %v2513, %v2509
        %v2746 = vpack.c.b16 %v2514, %v2510
        %v2747 = vpack.c.b16 %v2515, %v2511
        %v2748 = vpack.c.b16 %v2520, %v2516
        %v2749 = vpack.c.b16 %v2521, %v2517
        %v2750 = vpack.c.b16 %v2522, %v2518
        %v2751 = vpack.c.b16 %v2523, %v2519
        %v2752 = vpack.c.b16 %v2528, %v2524
        %v2753 = vpack.c.b16 %v2529, %v2525
        %v2754 = vpack.c.b16 %v2530, %v2526
        %v2755 = vpack.c.b16 %v2531, %v2527
        %v2756 = vpack.c.b16 %v2536, %v2532
        %v2757 = vpack.c.b16 %v2537, %v2533
        %v2758 = vpack.c.b16 %v2538, %v2534
        %v2759 = vpack.c.b16 %v2539, %v2535
        %v2760 = vpack.c.b16 %v2544, %v2540
        %v2761 = vpack.c.b16 %v2545, %v2541
        %v2762 = vpack.c.b16 %v2546, %v2542
        %v2763 = vpack.c.b16 %v2547, %v2543
        %v2764 = vpack.c.b16 %v2552, %v2548
        %v2765 = vpack.c.b16 %v2553, %v2549
        %v2766 = vpack.c.b16 %v2554, %v2550
        %v2767 = vpack.c.b16 %v2555, %v2551
        %v2768 = vpack.c.b16 %v2560, %v2556
        %v2769 = vpack.c.b16 %v2561, %v2557
        %v2770 = vpack.c.b16 %v2562, %v2558
        %v2771 = vpack.c.b16 %v2563, %v2559
        %v2772 = vpack.c.b16 %v2568, %v2564
        %v2773 = vpack.c.b16 %v2569, %v2565
        %v2774 = vpack.c.b16 %v2570, %v2566
        %v2775 = vpack.c.b16 %v2571, %v2567
        %v2776 = vpack.c.b16 %v2576, %v2572
        %v2777 = vpack.c.b16 %v2577, %v2573
        %v2778 = vpack.c.b16 %v2578, %v2574
        %v2779 = vpack.c.b16 %v2579, %v2575
        %v2780 = vpack.c.b16 %v2584, %v2580
        %v2781 = vpack.c.b16 %v2585, %v2581
        %v2782 = vpack.c.b16 %v2586, %v2582
        %v2783 = vpack.c.b16 %v2587, %v2583
        %v2784 = vpack.c.b16 %v2592, %v2588
        %v2785 = vpack.c.b16 %v2593, %v2589
        %v2786 = vpack.c.b16 %v2594, %v2590
        %v2787 = vpack.c.b16 %v2595, %v2591
        %v2788 = vpack.c.b16 %v2600, %v2596
        %v2789 = vpack.c.b16 %v2601, %v2597
        %v2790 = vpack.c.b16 %v2602, %v2598
        %v2791 = vpack.c.b16 %v2603, %v2599
        %v2792 = vpack.c.b16 %v2608, %v2604
        %v2793 = vpack.c.b16 %v2609, %v2605
        %v2794 = vpack.c.b16 %v2610, %v2606
        %v2795 = vpack.c.b16 %v2611, %v2607
        %v2796 = vpack.c.b16 %v2616, %v2612
        %v2797 = vpack.c.b16 %v2617, %v2613
        %v2798 = vpack.c.b16 %v2618, %v2614
        %v2799 = vpack.c.b16 %v2619, %v2615
        %v2800 = vpack.c.b16 %v2624, %v2620
        %v2801 = vpack.c.b16 %v2625, %v2621
        %v2802 = vpack.c.b16 %v2626, %v2622
        %v2803 = vpack.c.b16 %v2627, %v2623
        %v2804 = vpack.c.b16 %v2632, %v2628
        %v2805 = vpack.c.b16 %v2633, %v2629
        %v2806 = vpack.c.b16 %v2634, %v2630
        %v2807 = vpack.c.b16 %v2635, %v2631
        %v2808 = vpack.c.b16 %v2640, %v2636
        %v2809 = vpack.c.b16 %v2641, %v2637
        %v2810 = vpack.c.b16 %v2642, %v2638
        %v2811 = vpack.c.b16 %v2643, %v2639
        %v2812 = vpack.c.b16 %v2648, %v2644
        %v2813 = vpack.c.b16 %v2649, %v2645
        %v2814 = vpack.c.b16 %v2650, %v2646
        %v2815 = vpack.c.b16 %v2651, %v2647
        %v2816 = vpack.c.b16 %v2656, %v2652
        %v2817 = vpack.c.b16 %v2657, %v2653
        %v2818 = vpack.c.b16 %v2658, %v2654
        %v2819 = vpack.c.b16 %v2659, %v2655
        %v2820 = vpack.c.b16 %v2664, %v2660
        %v2821 = vpack.c.b16 %v2665, %v2661
        %v2822 = vpack.c.b16 %v2666, %v2662
        %v2823 = vpack.c.b16 %v2667, %v2663
        %v2824 = vpack.c.b16 %v2672, %v2668
        %v2825 = vpack.c.b16 %v2673, %v2669
        %v2826 = vpack.c.b16 %v2674, %v2670
        %v2827 = vpack.c.b16 %v2675, %v2671
        %v2828 = vpack.c.b16 %v2680, %v2676
        %v2829 = vpack.c.b16 %v2681, %v2677
        %v2830 = vpack.c.b16 %v2682, %v2678
        %v2831 = vpack.c.b16 %v2683, %v2679
        %v2832 = vpack.c.b16 %v2688, %v2684
        %v2833 = vpack.c.b16 %v2689, %v2685
        %v2834 = vpack.c.b16 %v2690, %v2686
        %v2835 = vpack.c.b16 %v2691, %v2687
        %v2836 = vpack.c.b16 %v2696, %v2692
        %v2837 = vpack.c.b16 %v2697, %v2693
        %v2838 = vpack.c.b16 %v2698, %v2694
        %v2839 = vpack.c.b16 %v2699, %v2695
        %v2840 = vpack.c.b16 %v2704, %v2700
        %v2841 = vpack.c.b16 %v2705, %v2701
        %v2842 = vpack.c.b16 %v2706, %v2702
        %v2843 = vpack.c.b16 %v2707, %v2703
        %v2844 = vpack.c.b16 %v2712, %v2708
        %v2845 = vpack.c.b16 %v2713, %v2709
        %v2846 = vpack.c.b16 %v2714, %v2710
        %v2847 = vpack.c.b16 %v2715, %v2711
        %v2848 = vpack.c.b16 %v2720, %v2716
        %v2849 = vpack.c.b16 %v2721, %v2717
        %v2850 = vpack.c.b16 %v2722, %v2718
        %v2851 = vpack.c.b16 %v2723, %v2719
        %2980 = vmatprep.subr.bf16.mxu0 %v2725
        %2981 = vmatpush1.bf16.msra.mxu0 %v2724
        %2982 = vmatprep.subr.bf16.mxu0 %v2729
        %2983 = vmatpush1.bf16.msra.mxu0 %v2728
        %2984 = vmatprep.subr.bf16.mxu0 %v2733
        %2985 = vmatpush1.bf16.msra.mxu0 %v2732
        %2986 = vmatprep.subr.bf16.mxu0 %v2737
        %2987 = vmatpush1.bf16.msra.mxu0 %v2736
        %2988 = vmatprep.subr.bf16.mxu0 %v2741
        %2989 = vmatpush1.bf16.msra.mxu0 %v2740
        %2990 = vmatprep.subr.bf16.mxu0 %v2745
        %2991 = vmatpush1.bf16.msra.mxu0 %v2744
        %2992 = vmatprep.subr.bf16.mxu0 %v2749
        %2993 = vmatpush1.bf16.msra.mxu0 %v2748
        %2994 = vmatprep.subr.bf16.mxu0 %v2753
        %2995 = vmatpush1.bf16.msra.mxu0 %v2752
        %2996 = vmatprep.subr.bf16.mxu0 %v2757
        %2997 = vmatpush1.bf16.msra.mxu0 %v2756
        %2998 = vmatprep.subr.bf16.mxu0 %v2761
        %2999 = vmatpush1.bf16.msra.mxu0 %v2760
        %3000 = vmatprep.subr.bf16.mxu0 %v2765
        %3001 = vmatpush1.bf16.msra.mxu0 %v2764
        %3002 = vmatprep.subr.bf16.mxu0 %v2769
        %3003 = vmatpush1.bf16.msra.mxu0 %v2768
        %3004 = vmatprep.subr.bf16.mxu0 %v2773
        %3005 = vmatpush1.bf16.msra.mxu0 %v2772
        %3006 = vmatprep.subr.bf16.mxu0 %v2777
        %3007 = vmatpush1.bf16.msra.mxu0 %v2776
        %3008 = vmatprep.subr.bf16.mxu0 %v2781
        %3009 = vmatpush1.bf16.msra.mxu0 %v2780
        %3010 = vmatprep.subr.bf16.mxu0 %v2785
        %3011 = vmatpush1.bf16.msra.mxu0 %v2784
        %3012 = vmatprep.mubr.bf16.mxu0 %v2187
        %3013 = vmatmul.mubr.bf16.gmra.mrb[0].mxu0 %v2186
        %v3014 = vpop.f32.mrb[0].mxu0
        %v3015 = vadd.f32 %v2323, %v3014
        %v3016 = vpop.f32.mrb[0].mxu0
        %v3017 = vadd.f32 %v2327, %v3016
        %v3018 = vpop.f32.mrb[0].mxu0
        %v3019 = vadd.f32 %v2323, %v3018
        %v3020 = vpop.f32.mrb[0].mxu0
        %v3021 = vadd.f32 %v2327, %v3020
        %3022 = vdwg.mxu0
        %3023 = vmatprep.subr.bf16.mxu0 %v2789
        %3024 = vmatpush1.bf16.msra.mxu0 %v2788
        %3025 = vmatprep.subr.bf16.mxu0 %v2793
        %3026 = vmatpush1.bf16.msra.mxu0 %v2792
        %3027 = vmatprep.subr.bf16.mxu0 %v2797
        %3028 = vmatpush1.bf16.msra.mxu0 %v2796
        %3029 = vmatprep.subr.bf16.mxu0 %v2801
        %3030 = vmatpush1.bf16.msra.mxu0 %v2800
        %3031 = vmatprep.subr.bf16.mxu0 %v2805
        %3032 = vmatpush1.bf16.msra.mxu0 %v2804
        %3033 = vmatprep.subr.bf16.mxu0 %v2809
        %3034 = vmatpush1.bf16.msra.mxu0 %v2808
        %3035 = vmatprep.subr.bf16.mxu0 %v2813
        %3036 = vmatpush1.bf16.msra.mxu0 %v2812
        %3037 = vmatprep.subr.bf16.mxu0 %v2817
        %3038 = vmatpush1.bf16.msra.mxu0 %v2816
        %3039 = vmatprep.subr.bf16.mxu0 %v2821
        %3040 = vmatpush1.bf16.msra.mxu0 %v2820
        %3041 = vmatprep.subr.bf16.mxu0 %v2825
        %3042 = vmatpush1.bf16.msra.mxu0 %v2824
        %3043 = vmatprep.subr.bf16.mxu0 %v2829
        %3044 = vmatpush1.bf16.msra.mxu0 %v2828
        %3045 = vmatprep.subr.bf16.mxu0 %v2833
        %3046 = vmatpush1.bf16.msra.mxu0 %v2832
        %3047 = vmatprep.subr.bf16.mxu0 %v2837
        %3048 = vmatpush1.bf16.msra.mxu0 %v2836
        %3049 = vmatprep.subr.bf16.mxu0 %v2841
        %3050 = vmatpush1.bf16.msra.mxu0 %v2840
        %3051 = vmatprep.subr.bf16.mxu0 %v2845
        %3052 = vmatpush1.bf16.msra.mxu0 %v2844
        %3053 = vmatprep.subr.bf16.mxu0 %v2849
        %3054 = vmatpush1.bf16.msra.mxu0 %v2848
        %3055 = vmatprep.mubr.bf16.mxu0 %v2189
        %3056 = vmatmul.mubr.bf16.gmra.mrb[0].mxu0 %v2188
        %v3057 = vpop.f32.mrb[0].mxu0
        %v3058 = vadd.f32 %v3015, %v3057
        %v3059 = vpop.f32.mrb[0].mxu0
        %v3060 = vadd.f32 %v3017, %v3059
        %v3061 = vpop.f32.mrb[0].mxu0
        %v3062 = vadd.f32 %v3019, %v3061
        %v3063 = vpop.f32.mrb[0].mxu0
        %v3064 = vadd.f32 %v3021, %v3063
        %3065 = vdwg.mxu0
        %3066 = vmatprep.subr.bf16.mxu0 %v2727
        %3067 = vmatpush1.bf16.msra.mxu0 %v2726
        %3068 = vmatprep.subr.bf16.mxu0 %v2731
        %3069 = vmatpush1.bf16.msra.mxu0 %v2730
        %3070 = vmatprep.subr.bf16.mxu0 %v2735
        %3071 = vmatpush1.bf16.msra.mxu0 %v2734
        %3072 = vmatprep.subr.bf16.mxu0 %v2739
        %3073 = vmatpush1.bf16.msra.mxu0 %v2738
        %3074 = vmatprep.subr.bf16.mxu0 %v2743
        %3075 = vmatpush1.bf16.msra.mxu0 %v2742
        %3076 = vmatprep.subr.bf16.mxu0 %v2747
        %3077 = vmatpush1.bf16.msra.mxu0 %v2746
        %3078 = vmatprep.subr.bf16.mxu0 %v2751
        %3079 = vmatpush1.bf16.msra.mxu0 %v2750
        %3080 = vmatprep.subr.bf16.mxu0 %v2755
        %3081 = vmatpush1.bf16.msra.mxu0 %v2754
        %3082 = vmatprep.subr.bf16.mxu0 %v2759
        %3083 = vmatpush1.bf16.msra.mxu0 %v2758
        %3084 = vmatprep.subr.bf16.mxu0 %v2763
        %3085 = vmatpush1.bf16.msra.mxu0 %v2762
        %3086 = vmatprep.subr.bf16.mxu0 %v2767
        %3087 = vmatpush1.bf16.msra.mxu0 %v2766
        %3088 = vmatprep.subr.bf16.mxu0 %v2771
        %3089 = vmatpush1.bf16.msra.mxu0 %v2770
        %3090 = vmatprep.subr.bf16.mxu0 %v2775
        %3091 = vmatpush1.bf16.msra.mxu0 %v2774
        %3092 = vmatprep.subr.bf16.mxu0 %v2779
        %3093 = vmatpush1.bf16.msra.mxu0 %v2778
        %3094 = vmatprep.subr.bf16.mxu0 %v2783
        %3095 = vmatpush1.bf16.msra.mxu0 %v2782
        %3096 = vmatprep.subr.bf16.mxu0 %v2787
        %3097 = vmatpush1.bf16.msra.mxu0 %v2786
        %3098 = vmatprep.mubr.bf16.mxu0 %v2187
        %3099 = vmatmul.mubr.bf16.gmra.mrb[0].mxu0 %v2186
        %v3100 = vpop.f32.mrb[0].mxu0
        %v3101 = vadd.f32 %v2331, %v3100
        %v3102 = vpop.f32.mrb[0].mxu0
        %v3103 = vadd.f32 %v2335, %v3102
        %v3104 = vpop.f32.mrb[0].mxu0
        %v3105 = vadd.f32 %v2331, %v3104
        %v3106 = vpop.f32.mrb[0].mxu0
        %v3107 = vadd.f32 %v2335, %v3106
        %3108 = vdwg.mxu0
        %3109 = vmatprep.subr.bf16.mxu0 %v2791
        %3110 = vmatpush1.bf16.msra.mxu0 %v2790
        %3111 = vmatprep.subr.bf16.mxu0 %v2795
        %3112 = vmatpush1.bf16.msra.mxu0 %v2794
        %3113 = vmatprep.subr.bf16.mxu0 %v2799
        %3114 = vmatpush1.bf16.msra.mxu0 %v2798
        %3115 = vmatprep.subr.bf16.mxu0 %v2803
        %3116 = vmatpush1.bf16.msra.mxu0 %v2802
        %3117 = vmatprep.subr.bf16.mxu0 %v2807
        %3118 = vmatpush1.bf16.msra.mxu0 %v2806
        %3119 = vmatprep.subr.bf16.mxu0 %v2811
        %3120 = vmatpush1.bf16.msra.mxu0 %v2810
        %3121 = vmatprep.subr.bf16.mxu0 %v2815
        %3122 = vmatpush1.bf16.msra.mxu0 %v2814
        %3123 = vmatprep.subr.bf16.mxu0 %v2819
        %3124 = vmatpush1.bf16.msra.mxu0 %v2818
        %3125 = vmatprep.subr.bf16.mxu0 %v2823
        %3126 = vmatpush1.bf16.msra.mxu0 %v2822
        %3127 = vmatprep.subr.bf16.mxu0 %v2827
        %3128 = vmatpush1.bf16.msra.mxu0 %v2826
        %3129 = vmatprep.subr.bf16.mxu0 %v2831
        %3130 = vmatpush1.bf16.msra.mxu0 %v2830
        %3131 = vmatprep.subr.bf16.mxu0 %v2835
        %3132 = vmatpush1.bf16.msra.mxu0 %v2834
        %3133 = vmatprep.subr.bf16.mxu0 %v2839
        %3134 = vmatpush1.bf16.msra.mxu0 %v2838
        %3135 = vmatprep.subr.bf16.mxu0 %v2843
        %3136 = vmatpush1.bf16.msra.mxu0 %v2842
        %3137 = vmatprep.subr.bf16.mxu0 %v2847
        %3138 = vmatpush1.bf16.msra.mxu0 %v2846
        %3139 = vmatprep.subr.bf16.mxu0 %v2851
        %3140 = vmatpush1.bf16.msra.mxu0 %v2850
        %3141 = vmatprep.mubr.bf16.mxu0 %v2189
        %3142 = vmatmul.mubr.bf16.gmra.mrb[0].mxu0 %v2188
        %v3143 = vpop.f32.mrb[0].mxu0
        %v3144 = vadd.f32 %v3101, %v3143
        %v3145 = vpop.f32.mrb[0].mxu0
        %v3146 = vadd.f32 %v3103, %v3145
        %v3147 = vpop.f32.mrb[0].mxu0
        %v3148 = vadd.f32 %v3105, %v3147
        %v3149 = vpop.f32.mrb[0].mxu0
        %v3150 = vadd.f32 %v3107, %v3149
        %3151 = vdwg.mxu0
        %3152 = vst [vmem:[%s614] sm:$0xff] %v3058
        %3153 = vst [vmem:[%s614 + $0x8] sm:$0xff] %v3060
        %3154 = vst [vmem:[%s614 + $0x10] sm:$0xff] %v3144
        %3155 = vst [vmem:[%s614 + $0x18] sm:$0xff] %v3146
        %3156 = vst [vmem:[%s614 + $0x20] sm:$0xff] %v3062
        %3157 = vst [vmem:[%s614 + $0x28] sm:$0xff] %v3064
        %3158 = vst [vmem:[%s614 + $0x30] sm:$0xff] %v3148
        %3159 = vst [vmem:[%s614 + $0x38] sm:$0xff] %v3150
        %s3160 = sand.u32 %s227, 1
        %s3161 = sand.u32 %s227, 1
        %s3162 = smul.addr %s3161, 64
        %s3163 = scalar_lea.vmem [#allocation4], %s3162
        // Predicated region
        $region84: #{decoder_forward.1} parent=74 // pred_check
          %p3164 = pneg %p237
        $region85: #{decoder_forward.1} parent=74 // pred_check_branch
          %3166 = sbr.rel (%p3164) target = $region87
        $region86: #{decoder_forward.1} parent=74 // pred_region
          %s3167 = smul.u32 4, %s20
          %s3168 = smul.addr %s3167, 8
          %s3169 = scalar_lea.vmem %s9, %s3168
          // Predicated region
          $region88: #{decoder_forward.1} parent=86 // pred_check
            _
          $region89: #{decoder_forward.1} parent=86 // pred_check_branch
            %3171 = sbr.rel (0) target = $region91
          $region90: #{decoder_forward.1} parent=86 // pred_region
            // Predicated region
            $region92: #{decoder_forward.1} parent=90 // pred_check
              _
            $region93: #{decoder_forward.1} parent=90 // pred_check_branch
              %3173 = sbr.rel (0) target = $region95
            $region94: #{decoder_forward.1} parent=90 // pred_region
              loop: start=0, step=1, limit=1
              $region96: #{decoder_forward.1} parent=94 // loop_pre_header
                _
              $region97: #{decoder_forward.1} parent=94 // loop_header
                %s3175 = sphi 0, %s3179
                %p3176 = scmp.ge.s32.totalorder %s3175, 1
                %s3180 = sphi %s3163, %s3163
                %s3181 = sphi %s3169, %s3169
              $region98: #{decoder_forward.1} parent=94 // loop_header_branch
                %3178 = sbr.rel (%p3176) target = $region102
              $region99: #{decoder_forward.1} parent=94 // loop_body
                %v3182 = vld [vmem:[%s3180] sm:$0xff]
                %3183 = vst [vmem:[%s3181] sm:$0xff] %v3182
                %v3184 = vld [vmem:[%s3180 + $0x8] sm:$0xff]
                %3185 = vst [vmem:[%s3181 + $0x8] sm:$0xff] %v3184
                %v3186 = vld [vmem:[%s3180 + $0x10] sm:$0xff]
                %3187 = vst [vmem:[%s3181 + $0x10] sm:$0xff] %v3186
                %v3188 = vld [vmem:[%s3180 + $0x18] sm:$0xff]
                %3189 = vst [vmem:[%s3181 + $0x18] sm:$0xff] %v3188
                %v3190 = vld [vmem:[%s3180 + $0x20] sm:$0xff]
                %3191 = vst [vmem:[%s3181 + $0x40] sm:$0xff] %v3190
                %v3192 = vld [vmem:[%s3180 + $0x28] sm:$0xff]
                %3193 = vst [vmem:[%s3181 + $0x48] sm:$0xff] %v3192
                %v3194 = vld [vmem:[%s3180 + $0x30] sm:$0xff]
                %3195 = vst [vmem:[%s3181 + $0x50] sm:$0xff] %v3194
                %v3196 = vld [vmem:[%s3180 + $0x38] sm:$0xff]
                %3197 = vst [vmem:[%s3181 + $0x58] sm:$0xff] %v3196
              $region100: #{decoder_forward.1} parent=94 // loop_footer
                %s3179 = sadd.s32 1, %s3175
              $region101: #{decoder_forward.1} parent=94 // loop_footer_branch
                %3174 = sbr.rel target = $region97
              $region102: #{decoder_forward.1} parent=94 // loop_exit
                _
            $region95: #{decoder_forward.1} parent=90 // pred_fallthru
              _
            // Predicated region
            $region103: #{decoder_forward.1} parent=90 // pred_check
              _
            $region104: #{decoder_forward.1} parent=90 // pred_check_branch
              %3199 = sbr.rel target = $region106
            $region105: #{decoder_forward.1} parent=90 // pred_region
              _
            $region106: #{decoder_forward.1} parent=90 // pred_fallthru
              _
          $region91: #{decoder_forward.1} parent=86 // pred_fallthru
            _
          %3200 = vnop
        $region87: #{decoder_forward.1} parent=74 // pred_fallthru
          _
      $region75: #{decoder_forward.1} parent=5 // pred_fallthru
        _
      %p3201 = scmp.le.s32.totalorder 2, %s15
      // Predicated region
      $region107: #{decoder_forward.1} parent=5 // pred_check
        %p3202 = pneg %p3201
      $region108: #{decoder_forward.1} parent=5 // pred_check_branch
        %3204 = sbr.rel (%p3202) target = $region110
      $region109: #{decoder_forward.1} parent=5 // pred_region
        %s3205 = ssub.s32 %s15, 2
        // Predicated region
        $region111: #{decoder_forward.1} parent=109 // pred_check
          %p3206 = pneg %p243
        $region112: #{decoder_forward.1} parent=109 // pred_check_branch
          %3208 = sbr.rel (%p3206) target = $region114
        $region113: #{decoder_forward.1} parent=109 // pred_region
          %s3209 = sand.u32 %s228, 1
          %s3210 = sand.u32 %s228, 1
          %s3211 = smul.addr %s3210, 64
          %s3212 = scalar_lea.vmem [#allocation4], %s3211
        $region114: #{decoder_forward.1} parent=109 // pred_fallthru
          _
      $region110: #{decoder_forward.1} parent=5 // pred_fallthru
        _
    $region6: #{decoder_forward.1} parent=1 // loop_footer
      %s19 = sadd.s32 1, %s15
    $region7: #{decoder_forward.1} parent=1 // loop_footer_branch
      %14 = sbr.rel target = $region3
    $region8: #{decoder_forward.1} parent=1 // loop_exit
      _

</llo_original>
